<compile_context>
chip_gen: v5e
topology: v5e:2x2
jax: 0.10.0
libtpu: 0.0.40
codegen_flags: <defaults>
</compile_context>

<pallas_src>
import jax
import jax.numpy as jnp
from jax.experimental import pallas as pl
from jax.experimental.pallas import tpu as pltpu


# -----------------------------------------------------------------------------
# Parameter-slab layout (shared between wrapper packing and kernel unpacking)
# -----------------------------------------------------------------------------
def _up8(n):
    return ((n + 7) // 8) * 8


def _slab_layout(H, d_lat):
    lanes = ((4 * H + 127) // 128) * 128
    vec = 0                       # row 0: w_ih | row 1: b_lstm | row 2: b_fc
    #                               row 3: sde_b1 | row 4: sde_b2
    whh = vec + 8                 # (H, 4H)
    wfc = whh + _up8(H)           # (H, d_lat) zero-padded to full lane width
    w1 = wfc + _up8(H)            # (d_lat, 4*d_lat)
    w2 = w1 + _up8(d_lat)         # (4*d_lat, 2*d_lat)
    rows = _up8(w2 + _up8(4 * d_lat))
    return dict(lanes=lanes, vec=vec, whh=whh, wfc=wfc, w1=w1, w2=w2, rows=rows)


# -----------------------------------------------------------------------------
# Tiny matmul on the VPU (avoids MXU push->pop latency on a serial chain)
# -----------------------------------------------------------------------------
def _vpu_small_matmul(a, w):
    """a: (B, K) @ w: (K, N); K, N tiny.  Unrolled broadcast-mul + tree add."""
    K = w.shape[0]
    terms = [a[:, k:k + 1] * w[k:k + 1, :] for k in range(K)]
    while len(terms) > 1:
        nxt = [terms[i] + terms[i + 1] for i in range(0, len(terms) - 1, 2)]
        if len(terms) % 2:
            nxt.append(terms[-1])
        terms = nxt
    return terms[0]


# -----------------------------------------------------------------------------
# Kernel
# -----------------------------------------------------------------------------
def _make_lstm_sde_kernel(H, d_lat, L):
    G = 4 * H
    Lv, Lwhh, Lwfc, Lw1, Lw2 = L["vec"], L["whh"], L["wfc"], L["w1"], L["w2"]

    def kernel(x_ref, slab_ref, noise_ref, out_ref):
        B = x_ref.shape[1]
        T = x_ref.shape[0]
        n_sde = noise_ref.shape[0]

        # ---- hoisted static slab slices (one packed operand -> one DMA) ----
        w_ih = slab_ref[Lv + 0:Lv + 1, :][:, :G]        # (1, 4H)  [i,f,o] cols pre-scaled 0.5
        b    = slab_ref[Lv + 1:Lv + 2, :][:, :G]        # (1, 4H)
        b_fc = slab_ref[Lv + 2:Lv + 3, :][:, :d_lat]    # (1, d_lat)
        b1   = slab_ref[Lv + 3:Lv + 4, :][:, :4 * d_lat]
        b2   = slab_ref[Lv + 4:Lv + 5, :][:, :2 * d_lat]
        w_hh = slab_ref[Lwhh:Lwhh + H, :][:, :G]        # (H, 4H)
        w_fc = slab_ref[Lwfc:Lwfc + H, :]               # (H, lanes), zero-padded past d_lat
        w1   = slab_ref[Lw1:Lw1 + d_lat, :][:, :4 * d_lat]
        w2   = slab_ref[Lw2:Lw2 + 4 * d_lat, :][:, :2 * d_lat]

        # ---- hoisted, non-recurrent input projection (D_in == 1 -> VPU) ----
        x = x_ref[...]                                  # (T, B, 1)
        pre = x * w_ih + b                              # (T, B, 4H), never touches the MXU

        h = jnp.zeros((B, H), jnp.float32)              # h0 = zeros (num_layers = 1)
        c = jnp.zeros((B, H), jnp.float32)              # c0 = zeros

        # ---- LSTM recurrence (statically unrolled over T) ----
        for t in range(T):
            gates = pre[t] + jnp.dot(h, w_hh, preferred_element_type=jnp.float32)
            # gate layout [i | f | o | g]; i/f/o pre-scaled by 0.5 wrapper-side so
            # sigmoid(x) = 0.5*tanh(x/2) + 0.5 needs only ONE tanh over all 4H lanes.
            t_all = jnp.tanh(gates)
            s_all = 0.5 * t_all + 0.5
            i_g = s_all[:, 0 * H:1 * H]
            f_g = s_all[:, 1 * H:2 * H]
            o_g = s_all[:, 2 * H:3 * H]
            g_g = t_all[:, 3 * H:4 * H]
            c = f_g * c + i_g * g_g
            h = o_g * jnp.tanh(c)

        # ---- fc on the last timestep (w_fc zero-padded to full lane width) ----
        z = jnp.dot(h, w_fc, preferred_element_type=jnp.float32)[:, :d_lat] + b_fc

        # ---- fused drift+diffusion Euler-Maruyama, unrolled, all on the VPU ----
        noise = noise_ref[...]                          # (n_sde, B, d_lat)
        for s in range(n_sde):
            hid = jnp.tanh(_vpu_small_matmul(z, w1) + b1)       # (B, 4*d_lat)
            fg = _vpu_small_matmul(hid, w2) + b2                # [f*dt | g*sqrt_dt]
            z = z + fg[:, :d_lat] + fg[:, d_lat:] * noise[s]

        out_ref[...] = z.astype(out_ref.dtype)

    return kernel


# -----------------------------------------------------------------------------
# Wrapper
# -----------------------------------------------------------------------------
def lstm_sde_forward(x, slab, noise, H, d_lat):
    """x: (B, T, 1) float32 (batch_first). Returns (B, d_lat) float32."""
    B, T, D_in = x.shape
    assert D_in == 1  # TODO(synk): D_in > 1 path not implemented
    L = _slab_layout(H, d_lat)
    x_tm = jnp.transpose(x, (1, 0, 2))                  # time-major (T, B, 1)

    vmem = pl.BlockSpec(memory_space=pltpu.MemorySpace.VMEM)
    return pl.pallas_call(
        _make_lstm_sde_kernel(H, d_lat, L),
        out_shape=jax.ShapeDtypeStruct((B, d_lat), jnp.float32),
        in_specs=[vmem, vmem, vmem],
        out_specs=vmem,
    )(x_tm, slab, noise)


# -----------------------------------------------------------------------------
# Raw parameter construction (PyTorch layouts / gate order [i, f, g, o])
# -----------------------------------------------------------------------------
def make_raw_params(key, input_size, lstm_size, output_size):
    H, D_in, D_lat = lstm_size, input_size, output_size
    keys = jax.random.split(key, 16)

    def u(k, shape, fan_in):
        bound = 1.0 / jnp.sqrt(jnp.float32(fan_in))
        return jax.random.uniform(k, shape, jnp.float32, -bound, bound)

    return {
        "w_ih": u(keys[0], (4 * H, D_in), H),
        "w_hh": u(keys[1], (4 * H, H), H),
        "b_ih": u(keys[2], (4 * H,), H),
        "b_hh": u(keys[3], (4 * H,), H),
        "w_fc": u(keys[4], (D_lat, H), H),
        "b_fc": u(keys[5], (D_lat,), H),
        "dw1": u(keys[6], (2 * D_lat, D_lat), D_lat),
        "db1": u(keys[7], (2 * D_lat,), D_lat),
        "dw2": u(keys[8], (D_lat, 2 * D_lat), 2 * D_lat),
        "db2": u(keys[9], (D_lat,), 2 * D_lat),
        "gw1": u(keys[10], (2 * D_lat, D_lat), D_lat),
        "gb1": u(keys[11], (2 * D_lat,), D_lat),
        "gw2": u(keys[12], (D_lat, 2 * D_lat), 2 * D_lat),
        "gb2": u(keys[13], (D_lat,), 2 * D_lat),
    }


# -----------------------------------------------------------------------------
# Wrapper-side parameter packing:
#  * transpose all weights (kernel does x @ W)
#  * permute LSTM gate columns [i,f,g,o] -> [i,f,o,g]
#  * scale i/f/o columns by 0.5 (sigmoid-as-tanh)
#  * fuse drift/diffusion MLPs, fold dt / sqrt(dt) into the 2nd layer
#  * pack everything into ONE lane-dense (rows, 128) f32 slab
# -----------------------------------------------------------------------------
def prepare_kernel_slab(raw, dt):
    H = raw["w_hh"].shape[1]
    d_lat = raw["w_fc"].shape[0]
    assert raw["w_ih"].shape[1] == 1  # TODO(synk): D_in > 1 not implemented
    dtf = jnp.float32(dt)
    sqrt_dt = jnp.sqrt(dtf)
    L = _slab_layout(H, d_lat)

    # gate permutation [i, f, g, o] -> [i, f, o, g]
    perm = jnp.concatenate([
        jnp.arange(0, 2 * H),            # i, f
        jnp.arange(3 * H, 4 * H),        # o
        jnp.arange(2 * H, 3 * H),        # g
    ])
    # sigmoid(x) = 0.5*tanh(x/2) + 0.5  ->  fold the /2 into i/f/o columns
    gate_scale = jnp.concatenate(
        [jnp.full((3 * H,), 0.5, jnp.float32), jnp.ones((H,), jnp.float32)])

    w_ih = raw["w_ih"].T[:, perm] * gate_scale                        # (1, 4H)
    w_hh = raw["w_hh"].T[:, perm] * gate_scale                        # (H, 4H)
    b_lstm = ((raw["b_ih"] + raw["b_hh"])[perm] * gate_scale)         # (4H,)

    # fused SDE layer 1: [drift | diffusion]
    sde_w1 = jnp.concatenate([raw["dw1"].T, raw["gw1"].T], axis=1)    # (d_lat, 4d)
    sde_b1 = jnp.concatenate([raw["db1"], raw["gb1"]])                # (4d,)

    # fused SDE layer 2: block-diagonal with dt / sqrt_dt folded in
    zero = jnp.zeros((2 * d_lat, d_lat), jnp.float32)
    sde_w2 = jnp.concatenate([
        jnp.concatenate([raw["dw2"].T * dtf, zero], axis=1),
        jnp.concatenate([zero, raw["gw2"].T * sqrt_dt], axis=1),
    ], axis=0)                                                        # (4d, 2d)
    sde_b2 = jnp.concatenate([raw["db2"] * dtf, raw["gb2"] * sqrt_dt])  # (2d,)

    slab = jnp.zeros((L["rows"], L["lanes"]), jnp.float32)

    def put(s, row, arr2d):
        rr, cc = arr2d.shape
        return s.at[row:row + rr, :cc].set(arr2d)

    slab = put(slab, L["vec"] + 0, w_ih)
    slab = put(slab, L["vec"] + 1, b_lstm.reshape(1, -1))
    slab = put(slab, L["vec"] + 2, raw["b_fc"].reshape(1, -1))
    slab = put(slab, L["vec"] + 3, sde_b1.reshape(1, -1))
    slab = put(slab, L["vec"] + 4, sde_b2.reshape(1, -1))
    slab = put(slab, L["whh"], w_hh)
    slab = put(slab, L["wfc"], raw["w_fc"].T)
    slab = put(slab, L["w1"], sde_w1)
    slab = put(slab, L["w2"], sde_w2)
    return slab


# -----------------------------------------------------------------------------
# Pure-JAX reference with the ORIGINAL (untransformed) math for a sanity check
# -----------------------------------------------------------------------------
def reference_forward(x, p, noise, dt):
    B, T, _ = x.shape
    H = p["w_hh"].shape[1]
    w_ih, w_hh = p["w_ih"].T, p["w_hh"].T
    b = (p["b_ih"] + p["b_hh"]).reshape(1, -1)
    h = jnp.zeros((B, H), jnp.float32)
    c = jnp.zeros((B, H), jnp.float32)
    for t in range(T):
        gates = x[:, t, :] @ w_ih + h @ w_hh + b
        i_g = jax.nn.sigmoid(gates[:, 0 * H:1 * H])
        f_g = jax.nn.sigmoid(gates[:, 1 * H:2 * H])
        g_g = jnp.tanh(gates[:, 2 * H:3 * H])
        o_g = jax.nn.sigmoid(gates[:, 3 * H:4 * H])
        c = f_g * c + i_g * g_g
        h = o_g * jnp.tanh(c)
    z = h @ p["w_fc"].T + p["b_fc"]
    sqrt_dt = jnp.sqrt(jnp.float32(dt))
    for s in range(noise.shape[0]):
        f_val = jnp.tanh(z @ p["dw1"].T + p["db1"]) @ p["dw2"].T + p["db2"]
        g_val = jnp.tanh(z @ p["gw1"].T + p["gb1"]) @ p["gw2"].T + p["gb2"]
        z = z + f_val * dt + g_val * (sqrt_dt * noise[s])
    return z


# -----------------------------------------------------------------------------
if __name__ == "__main__":
    # Shapes consistent with the module:
    #   input_size=1, lstm_size=32, output_size=4 (= D_lat), num_layers=1,
    #   t_sde=1.0, n_sde=10, batch=2, seq=8
    B, T = 2, 8
    input_size, lstm_size, output_size = 1, 32, 4
    t_sde, n_sde = 1.0, 10
    dt = t_sde / n_sde

    root = jax.random.PRNGKey(0)
    k_x, k_p, k_n = jax.random.split(root, 3)

    x = jax.random.normal(k_x, (B, T, input_size), jnp.float32)
    raw = make_raw_params(k_p, input_size, lstm_size, output_size)
    # Brownian increments drawn host-side (standard normals); dt folding is in the slab.
    noise = jax.random.normal(k_n, (n_sde, B, output_size), jnp.float32)

    slab = prepare_kernel_slab(raw, dt)

    out = lstm_sde_forward(x, slab, noise, lstm_size, output_size)
    out = jax.block_until_ready(out)

    ref = reference_forward(x, raw, noise, dt)
    assert out.shape == (B, output_size)
    # sigmoid-as-tanh, dt folding and the VPU tree-sum matmuls reassociate a few
    # float ops vs the reference -> slightly relaxed tolerance.
    assert jnp.allclose(out, ref, atol=5e-5, rtol=5e-4), (out, ref)

    print("KERNEL_OK")
</pallas_src>

<mosaic_0001>
module attributes {stable_mosaic.version = 11 : i64} {
  func.func @kernel(%arg0: memref<8x2x1xf32, #tpu.memory_space<vmem>>, %arg1: memref<96x128xf32, #tpu.memory_space<vmem>>, %arg2: memref<10x2x4xf32, #tpu.memory_space<vmem>>, %arg3: memref<2x4xf32, #tpu.memory_space<vmem>>) attributes {dimension_semantics = [], scalar_prefetch = 0 : i64, scratch_operands = 0 : i64, tpu.core_type = #tpu.core_type<tc>} {
    %c0 = arith.constant 0 : index
    %c0_0 = arith.constant 0 : index
    %0 = vector.load %arg1[%c0, %c0_0] : memref<96x128xf32, #tpu.memory_space<vmem>>, vector<1x128xf32>
    %c1 = arith.constant 1 : index
    %c0_1 = arith.constant 0 : index
    %1 = vector.load %arg1[%c1, %c0_1] : memref<96x128xf32, #tpu.memory_space<vmem>>, vector<1x128xf32>
    %c2 = arith.constant 2 : index
    %c0_2 = arith.constant 0 : index
    %2 = vector.load %arg1[%c2, %c0_2] : memref<96x128xf32, #tpu.memory_space<vmem>>, vector<1x128xf32>
    %3 = vector.extract_strided_slice %2 {offsets = [0, 0], sizes = [1, 4], strides = [1, 1]} : vector<1x128xf32> to vector<1x4xf32>
    %c3 = arith.constant 3 : index
    %c0_3 = arith.constant 0 : index
    %4 = vector.load %arg1[%c3, %c0_3] : memref<96x128xf32, #tpu.memory_space<vmem>>, vector<1x128xf32>
    %5 = vector.extract_strided_slice %4 {offsets = [0, 0], sizes = [1, 16], strides = [1, 1]} : vector<1x128xf32> to vector<1x16xf32>
    %c4 = arith.constant 4 : index
    %c0_4 = arith.constant 0 : index
    %6 = vector.load %arg1[%c4, %c0_4] : memref<96x128xf32, #tpu.memory_space<vmem>>, vector<1x128xf32>
    %7 = vector.extract_strided_slice %6 {offsets = [0, 0], sizes = [1, 8], strides = [1, 1]} : vector<1x128xf32> to vector<1x8xf32>
    %c8 = arith.constant 8 : index
    %c0_5 = arith.constant 0 : index
    %8 = vector.load %arg1[%c8, %c0_5] : memref<96x128xf32, #tpu.memory_space<vmem>>, vector<32x128xf32>
    %c40 = arith.constant 40 : index
    %c0_6 = arith.constant 0 : index
    %9 = vector.load %arg1[%c40, %c0_6] : memref<96x128xf32, #tpu.memory_space<vmem>>, vector<32x128xf32>
    %c72 = arith.constant 72 : index
    %c0_7 = arith.constant 0 : index
    %10 = vector.load %arg1[%c72, %c0_7] : memref<96x128xf32, #tpu.memory_space<vmem>>, vector<4x128xf32>
    %11 = vector.extract_strided_slice %10 {offsets = [0, 0], sizes = [4, 16], strides = [1, 1]} : vector<4x128xf32> to vector<4x16xf32>
    %c80 = arith.constant 80 : index
    %c0_8 = arith.constant 0 : index
    %12 = vector.load %arg1[%c80, %c0_8] : memref<96x128xf32, #tpu.memory_space<vmem>>, vector<16x128xf32>
    %13 = vector.extract_strided_slice %12 {offsets = [0, 0], sizes = [16, 8], strides = [1, 1]} : vector<16x128xf32> to vector<16x8xf32>
    %c0_9 = arith.constant 0 : index
    %c0_10 = arith.constant 0 : index
    %c0_11 = arith.constant 0 : index
    %14 = vector.load %arg0[%c0_9, %c0_10, %c0_11] : memref<8x2x1xf32, #tpu.memory_space<vmem>>, vector<8x2x1xf32>
    %15 = vector.shape_cast %0 : vector<1x128xf32> to vector<1x1x128xf32>
    %16 = vector.broadcast %14 : vector<8x2x1xf32> to vector<8x2x128xf32>
    %17 = vector.broadcast %15 : vector<1x1x128xf32> to vector<8x2x128xf32>
    %18 = arith.mulf %16, %17 : vector<8x2x128xf32>
    %19 = vector.shape_cast %1 : vector<1x128xf32> to vector<1x1x128xf32>
    %20 = vector.broadcast %19 : vector<1x1x128xf32> to vector<8x2x128xf32>
    %21 = arith.addf %18, %20 : vector<8x2x128xf32>
    %cst = arith.constant 0.000000e+00 : f32
    %22 = vector.broadcast %cst : f32 to vector<2x32xf32>
    %cst_12 = arith.constant 0.000000e+00 : f32
    %23 = vector.broadcast %cst_12 : f32 to vector<2x32xf32>
    %24 = vector.extract_strided_slice %21 {offsets = [0, 0, 0], sizes = [1, 2, 128], strides = [1, 1, 1]} : vector<8x2x128xf32> to vector<1x2x128xf32>
    %25 = vector.shape_cast %24 : vector<1x2x128xf32> to vector<2x128xf32>
    %cst_13 = arith.constant dense<0.000000e+00> : vector<2x128xf32>
    %26 = tpu.matmul %22, %8, %cst_13 {dimension_numbers = #tpu.dot_dimension_numbers<[1], [0], [0], [1], [0, 0, 1, 1], [], []>} : vector<2x32xf32>, vector<32x128xf32>, vector<2x128xf32> -> vector<2x128xf32>
    %27 = arith.addf %25, %26 : vector<2x128xf32>
    %28 = math.tanh %27 : vector<2x128xf32>
    %cst_14 = arith.constant 5.000000e-01 : f32
    %29 = vector.broadcast %cst_14 : f32 to vector<2x128xf32>
    %30 = arith.mulf %29, %28 : vector<2x128xf32>
    %cst_15 = arith.constant 5.000000e-01 : f32
    %31 = vector.broadcast %cst_15 : f32 to vector<2x128xf32>
    %32 = arith.addf %30, %31 : vector<2x128xf32>
    %33 = vector.extract_strided_slice %32 {offsets = [0, 0], sizes = [2, 32], strides = [1, 1]} : vector<2x128xf32> to vector<2x32xf32>
    %34 = vector.extract_strided_slice %32 {offsets = [0, 32], sizes = [2, 32], strides = [1, 1]} : vector<2x128xf32> to vector<2x32xf32>
    %35 = vector.extract_strided_slice %32 {offsets = [0, 64], sizes = [2, 32], strides = [1, 1]} : vector<2x128xf32> to vector<2x32xf32>
    %36 = vector.extract_strided_slice %28 {offsets = [0, 96], sizes = [2, 32], strides = [1, 1]} : vector<2x128xf32> to vector<2x32xf32>
    %37 = arith.mulf %34, %23 : vector<2x32xf32>
    %38 = arith.mulf %33, %36 : vector<2x32xf32>
    %39 = arith.addf %37, %38 : vector<2x32xf32>
    %40 = math.tanh %39 : vector<2x32xf32>
    %41 = arith.mulf %35, %40 : vector<2x32xf32>
    %42 = vector.extract_strided_slice %21 {offsets = [1, 0, 0], sizes = [1, 2, 128], strides = [1, 1, 1]} : vector<8x2x128xf32> to vector<1x2x128xf32>
    %43 = vector.shape_cast %42 : vector<1x2x128xf32> to vector<2x128xf32>
    %cst_16 = arith.constant dense<0.000000e+00> : vector<2x128xf32>
    %44 = tpu.matmul %41, %8, %cst_16 {dimension_numbers = #tpu.dot_dimension_numbers<[1], [0], [0], [1], [0, 0, 1, 1], [], []>} : vector<2x32xf32>, vector<32x128xf32>, vector<2x128xf32> -> vector<2x128xf32>
    %45 = arith.addf %43, %44 : vector<2x128xf32>
    %46 = math.tanh %45 : vector<2x128xf32>
    %cst_17 = arith.constant 5.000000e-01 : f32
    %47 = vector.broadcast %cst_17 : f32 to vector<2x128xf32>
    %48 = arith.mulf %47, %46 : vector<2x128xf32>
    %cst_18 = arith.constant 5.000000e-01 : f32
    %49 = vector.broadcast %cst_18 : f32 to vector<2x128xf32>
    %50 = arith.addf %48, %49 : vector<2x128xf32>
    %51 = vector.extract_strided_slice %50 {offsets = [0, 0], sizes = [2, 32], strides = [1, 1]} : vector<2x128xf32> to vector<2x32xf32>
    %52 = vector.extract_strided_slice %50 {offsets = [0, 32], sizes = [2, 32], strides = [1, 1]} : vector<2x128xf32> to vector<2x32xf32>
    %53 = vector.extract_strided_slice %50 {offsets = [0, 64], sizes = [2, 32], strides = [1, 1]} : vector<2x128xf32> to vector<2x32xf32>
    %54 = vector.extract_strided_slice %46 {offsets = [0, 96], sizes = [2, 32], strides = [1, 1]} : vector<2x128xf32> to vector<2x32xf32>
    %55 = arith.mulf %52, %39 : vector<2x32xf32>
    %56 = arith.mulf %51, %54 : vector<2x32xf32>
    %57 = arith.addf %55, %56 : vector<2x32xf32>
    %58 = math.tanh %57 : vector<2x32xf32>
    %59 = arith.mulf %53, %58 : vector<2x32xf32>
    %60 = vector.extract_strided_slice %21 {offsets = [2, 0, 0], sizes = [1, 2, 128], strides = [1, 1, 1]} : vector<8x2x128xf32> to vector<1x2x128xf32>
    %61 = vector.shape_cast %60 : vector<1x2x128xf32> to vector<2x128xf32>
    %cst_19 = arith.constant dense<0.000000e+00> : vector<2x128xf32>
    %62 = tpu.matmul %59, %8, %cst_19 {dimension_numbers = #tpu.dot_dimension_numbers<[1], [0], [0], [1], [0, 0, 1, 1], [], []>} : vector<2x32xf32>, vector<32x128xf32>, vector<2x128xf32> -> vector<2x128xf32>
    %63 = arith.addf %61, %62 : vector<2x128xf32>
    %64 = math.tanh %63 : vector<2x128xf32>
    %cst_20 = arith.constant 5.000000e-01 : f32
    %65 = vector.broadcast %cst_20 : f32 to vector<2x128xf32>
    %66 = arith.mulf %65, %64 : vector<2x128xf32>
    %cst_21 = arith.constant 5.000000e-01 : f32
    %67 = vector.broadcast %cst_21 : f32 to vector<2x128xf32>
    %68 = arith.addf %66, %67 : vector<2x128xf32>
    %69 = vector.extract_strided_slice %68 {offsets = [0, 0], sizes = [2, 32], strides = [1, 1]} : vector<2x128xf32> to vector<2x32xf32>
    %70 = vector.extract_strided_slice %68 {offsets = [0, 32], sizes = [2, 32], strides = [1, 1]} : vector<2x128xf32> to vector<2x32xf32>
    %71 = vector.extract_strided_slice %68 {offsets = [0, 64], sizes = [2, 32], strides = [1, 1]} : vector<2x128xf32> to vector<2x32xf32>
    %72 = vector.extract_strided_slice %64 {offsets = [0, 96], sizes = [2, 32], strides = [1, 1]} : vector<2x128xf32> to vector<2x32xf32>
    %73 = arith.mulf %70, %57 : vector<2x32xf32>
    %74 = arith.mulf %69, %72 : vector<2x32xf32>
    %75 = arith.addf %73, %74 : vector<2x32xf32>
    %76 = math.tanh %75 : vector<2x32xf32>
    %77 = arith.mulf %71, %76 : vector<2x32xf32>
    %78 = vector.extract_strided_slice %21 {offsets = [3, 0, 0], sizes = [1, 2, 128], strides = [1, 1, 1]} : vector<8x2x128xf32> to vector<1x2x128xf32>
    %79 = vector.shape_cast %78 : vector<1x2x128xf32> to vector<2x128xf32>
    %cst_22 = arith.constant dense<0.000000e+00> : vector<2x128xf32>
    %80 = tpu.matmul %77, %8, %cst_22 {dimension_numbers = #tpu.dot_dimension_numbers<[1], [0], [0], [1], [0, 0, 1, 1], [], []>} : vector<2x32xf32>, vector<32x128xf32>, vector<2x128xf32> -> vector<2x128xf32>
    %81 = arith.addf %79, %80 : vector<2x128xf32>
    %82 = math.tanh %81 : vector<2x128xf32>
    %cst_23 = arith.constant 5.000000e-01 : f32
    %83 = vector.broadcast %cst_23 : f32 to vector<2x128xf32>
    %84 = arith.mulf %83, %82 : vector<2x128xf32>
    %cst_24 = arith.constant 5.000000e-01 : f32
    %85 = vector.broadcast %cst_24 : f32 to vector<2x128xf32>
    %86 = arith.addf %84, %85 : vector<2x128xf32>
    %87 = vector.extract_strided_slice %86 {offsets = [0, 0], sizes = [2, 32], strides = [1, 1]} : vector<2x128xf32> to vector<2x32xf32>
    %88 = vector.extract_strided_slice %86 {offsets = [0, 32], sizes = [2, 32], strides = [1, 1]} : vector<2x128xf32> to vector<2x32xf32>
    %89 = vector.extract_strided_slice %86 {offsets = [0, 64], sizes = [2, 32], strides = [1, 1]} : vector<2x128xf32> to vector<2x32xf32>
    %90 = vector.extract_strided_slice %82 {offsets = [0, 96], sizes = [2, 32], strides = [1, 1]} : vector<2x128xf32> to vector<2x32xf32>
    %91 = arith.mulf %88, %75 : vector<2x32xf32>
    %92 = arith.mulf %87, %90 : vector<2x32xf32>
    %93 = arith.addf %91, %92 : vector<2x32xf32>
    %94 = math.tanh %93 : vector<2x32xf32>
    %95 = arith.mulf %89, %94 : vector<2x32xf32>
    %96 = vector.extract_strided_slice %21 {offsets = [4, 0, 0], sizes = [1, 2, 128], strides = [1, 1, 1]} : vector<8x2x128xf32> to vector<1x2x128xf32>
    %97 = vector.shape_cast %96 : vector<1x2x128xf32> to vector<2x128xf32>
    %cst_25 = arith.constant dense<0.000000e+00> : vector<2x128xf32>
    %98 = tpu.matmul %95, %8, %cst_25 {dimension_numbers = #tpu.dot_dimension_numbers<[1], [0], [0], [1], [0, 0, 1, 1], [], []>} : vector<2x32xf32>, vector<32x128xf32>, vector<2x128xf32> -> vector<2x128xf32>
    %99 = arith.addf %97, %98 : vector<2x128xf32>
    %100 = math.tanh %99 : vector<2x128xf32>
    %cst_26 = arith.constant 5.000000e-01 : f32
    %101 = vector.broadcast %cst_26 : f32 to vector<2x128xf32>
    %102 = arith.mulf %101, %100 : vector<2x128xf32>
    %cst_27 = arith.constant 5.000000e-01 : f32
    %103 = vector.broadcast %cst_27 : f32 to vector<2x128xf32>
    %104 = arith.addf %102, %103 : vector<2x128xf32>
    %105 = vector.extract_strided_slice %104 {offsets = [0, 0], sizes = [2, 32], strides = [1, 1]} : vector<2x128xf32> to vector<2x32xf32>
    %106 = vector.extract_strided_slice %104 {offsets = [0, 32], sizes = [2, 32], strides = [1, 1]} : vector<2x128xf32> to vector<2x32xf32>
    %107 = vector.extract_strided_slice %104 {offsets = [0, 64], sizes = [2, 32], strides = [1, 1]} : vector<2x128xf32> to vector<2x32xf32>
    %108 = vector.extract_strided_slice %100 {offsets = [0, 96], sizes = [2, 32], strides = [1, 1]} : vector<2x128xf32> to vector<2x32xf32>
    %109 = arith.mulf %106, %93 : vector<2x32xf32>
    %110 = arith.mulf %105, %108 : vector<2x32xf32>
    %111 = arith.addf %109, %110 : vector<2x32xf32>
    %112 = math.tanh %111 : vector<2x32xf32>
    %113 = arith.mulf %107, %112 : vector<2x32xf32>
    %114 = vector.extract_strided_slice %21 {offsets = [5, 0, 0], sizes = [1, 2, 128], strides = [1, 1, 1]} : vector<8x2x128xf32> to vector<1x2x128xf32>
    %115 = vector.shape_cast %114 : vector<1x2x128xf32> to vector<2x128xf32>
    %cst_28 = arith.constant dense<0.000000e+00> : vector<2x128xf32>
    %116 = tpu.matmul %113, %8, %cst_28 {dimension_numbers = #tpu.dot_dimension_numbers<[1], [0], [0], [1], [0, 0, 1, 1], [], []>} : vector<2x32xf32>, vector<32x128xf32>, vector<2x128xf32> -> vector<2x128xf32>
    %117 = arith.addf %115, %116 : vector<2x128xf32>
    %118 = math.tanh %117 : vector<2x128xf32>
    %cst_29 = arith.constant 5.000000e-01 : f32
    %119 = vector.broadcast %cst_29 : f32 to vector<2x128xf32>
    %120 = arith.mulf %119, %118 : vector<2x128xf32>
    %cst_30 = arith.constant 5.000000e-01 : f32
    %121 = vector.broadcast %cst_30 : f32 to vector<2x128xf32>
    %122 = arith.addf %120, %121 : vector<2x128xf32>
    %123 = vector.extract_strided_slice %122 {offsets = [0, 0], sizes = [2, 32], strides = [1, 1]} : vector<2x128xf32> to vector<2x32xf32>
    %124 = vector.extract_strided_slice %122 {offsets = [0, 32], sizes = [2, 32], strides = [1, 1]} : vector<2x128xf32> to vector<2x32xf32>
    %125 = vector.extract_strided_slice %122 {offsets = [0, 64], sizes = [2, 32], strides = [1, 1]} : vector<2x128xf32> to vector<2x32xf32>
    %126 = vector.extract_strided_slice %118 {offsets = [0, 96], sizes = [2, 32], strides = [1, 1]} : vector<2x128xf32> to vector<2x32xf32>
    %127 = arith.mulf %124, %111 : vector<2x32xf32>
    %128 = arith.mulf %123, %126 : vector<2x32xf32>
    %129 = arith.addf %127, %128 : vector<2x32xf32>
    %130 = math.tanh %129 : vector<2x32xf32>
    %131 = arith.mulf %125, %130 : vector<2x32xf32>
    %132 = vector.extract_strided_slice %21 {offsets = [6, 0, 0], sizes = [1, 2, 128], strides = [1, 1, 1]} : vector<8x2x128xf32> to vector<1x2x128xf32>
    %133 = vector.shape_cast %132 : vector<1x2x128xf32> to vector<2x128xf32>
    %cst_31 = arith.constant dense<0.000000e+00> : vector<2x128xf32>
    %134 = tpu.matmul %131, %8, %cst_31 {dimension_numbers = #tpu.dot_dimension_numbers<[1], [0], [0], [1], [0, 0, 1, 1], [], []>} : vector<2x32xf32>, vector<32x128xf32>, vector<2x128xf32> -> vector<2x128xf32>
    %135 = arith.addf %133, %134 : vector<2x128xf32>
    %136 = math.tanh %135 : vector<2x128xf32>
    %cst_32 = arith.constant 5.000000e-01 : f32
    %137 = vector.broadcast %cst_32 : f32 to vector<2x128xf32>
    %138 = arith.mulf %137, %136 : vector<2x128xf32>
    %cst_33 = arith.constant 5.000000e-01 : f32
    %139 = vector.broadcast %cst_33 : f32 to vector<2x128xf32>
    %140 = arith.addf %138, %139 : vector<2x128xf32>
    %141 = vector.extract_strided_slice %140 {offsets = [0, 0], sizes = [2, 32], strides = [1, 1]} : vector<2x128xf32> to vector<2x32xf32>
    %142 = vector.extract_strided_slice %140 {offsets = [0, 32], sizes = [2, 32], strides = [1, 1]} : vector<2x128xf32> to vector<2x32xf32>
    %143 = vector.extract_strided_slice %140 {offsets = [0, 64], sizes = [2, 32], strides = [1, 1]} : vector<2x128xf32> to vector<2x32xf32>
    %144 = vector.extract_strided_slice %136 {offsets = [0, 96], sizes = [2, 32], strides = [1, 1]} : vector<2x128xf32> to vector<2x32xf32>
    %145 = arith.mulf %142, %129 : vector<2x32xf32>
    %146 = arith.mulf %141, %144 : vector<2x32xf32>
    %147 = arith.addf %145, %146 : vector<2x32xf32>
    %148 = math.tanh %147 : vector<2x32xf32>
    %149 = arith.mulf %143, %148 : vector<2x32xf32>
    %150 = vector.extract_strided_slice %21 {offsets = [7, 0, 0], sizes = [1, 2, 128], strides = [1, 1, 1]} : vector<8x2x128xf32> to vector<1x2x128xf32>
    %151 = vector.shape_cast %150 : vector<1x2x128xf32> to vector<2x128xf32>
    %cst_34 = arith.constant dense<0.000000e+00> : vector<2x128xf32>
    %152 = tpu.matmul %149, %8, %cst_34 {dimension_numbers = #tpu.dot_dimension_numbers<[1], [0], [0], [1], [0, 0, 1, 1], [], []>} : vector<2x32xf32>, vector<32x128xf32>, vector<2x128xf32> -> vector<2x128xf32>
    %153 = arith.addf %151, %152 : vector<2x128xf32>
    %154 = math.tanh %153 : vector<2x128xf32>
    %cst_35 = arith.constant 5.000000e-01 : f32
    %155 = vector.broadcast %cst_35 : f32 to vector<2x128xf32>
    %156 = arith.mulf %155, %154 : vector<2x128xf32>
    %cst_36 = arith.constant 5.000000e-01 : f32
    %157 = vector.broadcast %cst_36 : f32 to vector<2x128xf32>
    %158 = arith.addf %156, %157 : vector<2x128xf32>
    %159 = vector.extract_strided_slice %158 {offsets = [0, 0], sizes = [2, 32], strides = [1, 1]} : vector<2x128xf32> to vector<2x32xf32>
    %160 = vector.extract_strided_slice %158 {offsets = [0, 32], sizes = [2, 32], strides = [1, 1]} : vector<2x128xf32> to vector<2x32xf32>
    %161 = vector.extract_strided_slice %158 {offsets = [0, 64], sizes = [2, 32], strides = [1, 1]} : vector<2x128xf32> to vector<2x32xf32>
    %162 = vector.extract_strided_slice %154 {offsets = [0, 96], sizes = [2, 32], strides = [1, 1]} : vector<2x128xf32> to vector<2x32xf32>
    %163 = arith.mulf %160, %147 : vector<2x32xf32>
    %164 = arith.mulf %159, %162 : vector<2x32xf32>
    %165 = arith.addf %163, %164 : vector<2x32xf32>
    %166 = math.tanh %165 : vector<2x32xf32>
    %167 = arith.mulf %161, %166 : vector<2x32xf32>
    %cst_37 = arith.constant dense<0.000000e+00> : vector<2x128xf32>
    %168 = tpu.matmul %167, %9, %cst_37 {dimension_numbers = #tpu.dot_dimension_numbers<[1], [0], [0], [1], [0, 0, 1, 1], [], []>} : vector<2x32xf32>, vector<32x128xf32>, vector<2x128xf32> -> vector<2x128xf32>
    %169 = vector.extract_strided_slice %168 {offsets = [0, 0], sizes = [2, 4], strides = [1, 1]} : vector<2x128xf32> to vector<2x4xf32>
    %170 = vector.broadcast %3 : vector<1x4xf32> to vector<2x4xf32>
    %171 = arith.addf %169, %170 : vector<2x4xf32>
    %c0_38 = arith.constant 0 : index
    %c0_39 = arith.constant 0 : index
    %c0_40 = arith.constant 0 : index
    %172 = vector.load %arg2[%c0_38, %c0_39, %c0_40] : memref<10x2x4xf32, #tpu.memory_space<vmem>>, vector<10x2x4xf32>
    %173 = vector.extract_strided_slice %171 {offsets = [0, 0], sizes = [2, 1], strides = [1, 1]} : vector<2x4xf32> to vector<2x1xf32>
    %174 = vector.extract_strided_slice %11 {offsets = [0, 0], sizes = [1, 16], strides = [1, 1]} : vector<4x16xf32> to vector<1x16xf32>
    %175 = vector.broadcast %173 : vector<2x1xf32> to vector<2x16xf32>
    %176 = vector.broadcast %174 : vector<1x16xf32> to vector<2x16xf32>
    %177 = arith.mulf %175, %176 : vector<2x16xf32>
    %178 = vector.extract_strided_slice %171 {offsets = [0, 1], sizes = [2, 1], strides = [1, 1]} : vector<2x4xf32> to vector<2x1xf32>
    %179 = vector.extract_strided_slice %11 {offsets = [1, 0], sizes = [1, 16], strides = [1, 1]} : vector<4x16xf32> to vector<1x16xf32>
    %180 = vector.broadcast %178 : vector<2x1xf32> to vector<2x16xf32>
    %181 = vector.broadcast %179 : vector<1x16xf32> to vector<2x16xf32>
    %182 = arith.mulf %180, %181 : vector<2x16xf32>
    %183 = vector.extract_strided_slice %171 {offsets = [0, 2], sizes = [2, 1], strides = [1, 1]} : vector<2x4xf32> to vector<2x1xf32>
    %184 = vector.extract_strided_slice %11 {offsets = [2, 0], sizes = [1, 16], strides = [1, 1]} : vector<4x16xf32> to vector<1x16xf32>
    %185 = vector.broadcast %183 : vector<2x1xf32> to vector<2x16xf32>
    %186 = vector.broadcast %184 : vector<1x16xf32> to vector<2x16xf32>
    %187 = arith.mulf %185, %186 : vector<2x16xf32>
    %188 = vector.extract_strided_slice %171 {offsets = [0, 3], sizes = [2, 1], strides = [1, 1]} : vector<2x4xf32> to vector<2x1xf32>
    %189 = vector.extract_strided_slice %11 {offsets = [3, 0], sizes = [1, 16], strides = [1, 1]} : vector<4x16xf32> to vector<1x16xf32>
    %190 = vector.broadcast %188 : vector<2x1xf32> to vector<2x16xf32>
    %191 = vector.broadcast %189 : vector<1x16xf32> to vector<2x16xf32>
    %192 = arith.mulf %190, %191 : vector<2x16xf32>
    %193 = arith.addf %177, %182 : vector<2x16xf32>
    %194 = arith.addf %187, %192 : vector<2x16xf32>
    %195 = arith.addf %193, %194 : vector<2x16xf32>
    %196 = vector.broadcast %5 : vector<1x16xf32> to vector<2x16xf32>
    %197 = arith.addf %195, %196 : vector<2x16xf32>
    %198 = math.tanh %197 : vector<2x16xf32>
    %199 = vector.extract_strided_slice %198 {offsets = [0, 0], sizes = [2, 1], strides = [1, 1]} : vector<2x16xf32> to vector<2x1xf32>
    %200 = vector.extract_strided_slice %13 {offsets = [0, 0], sizes = [1, 8], strides = [1, 1]} : vector<16x8xf32> to vector<1x8xf32>
    %201 = vector.broadcast %199 : vector<2x1xf32> to vector<2x8xf32>
    %202 = vector.broadcast %200 : vector<1x8xf32> to vector<2x8xf32>
    %203 = arith.mulf %201, %202 : vector<2x8xf32>
    %204 = vector.extract_strided_slice %198 {offsets = [0, 1], sizes = [2, 1], strides = [1, 1]} : vector<2x16xf32> to vector<2x1xf32>
    %205 = vector.extract_strided_slice %13 {offsets = [1, 0], sizes = [1, 8], strides = [1, 1]} : vector<16x8xf32> to vector<1x8xf32>
    %206 = vector.broadcast %204 : vector<2x1xf32> to vector<2x8xf32>
    %207 = vector.broadcast %205 : vector<1x8xf32> to vector<2x8xf32>
    %208 = arith.mulf %206, %207 : vector<2x8xf32>
    %209 = vector.extract_strided_slice %198 {offsets = [0, 2], sizes = [2, 1], strides = [1, 1]} : vector<2x16xf32> to vector<2x1xf32>
    %210 = vector.extract_strided_slice %13 {offsets = [2, 0], sizes = [1, 8], strides = [1, 1]} : vector<16x8xf32> to vector<1x8xf32>
    %211 = vector.broadcast %209 : vector<2x1xf32> to vector<2x8xf32>
    %212 = vector.broadcast %210 : vector<1x8xf32> to vector<2x8xf32>
    %213 = arith.mulf %211, %212 : vector<2x8xf32>
    %214 = vector.extract_strided_slice %198 {offsets = [0, 3], sizes = [2, 1], strides = [1, 1]} : vector<2x16xf32> to vector<2x1xf32>
    %215 = vector.extract_strided_slice %13 {offsets = [3, 0], sizes = [1, 8], strides = [1, 1]} : vector<16x8xf32> to vector<1x8xf32>
    %216 = vector.broadcast %214 : vector<2x1xf32> to vector<2x8xf32>
    %217 = vector.broadcast %215 : vector<1x8xf32> to vector<2x8xf32>
    %218 = arith.mulf %216, %217 : vector<2x8xf32>
    %219 = vector.extract_strided_slice %198 {offsets = [0, 4], sizes = [2, 1], strides = [1, 1]} : vector<2x16xf32> to vector<2x1xf32>
    %220 = vector.extract_strided_slice %13 {offsets = [4, 0], sizes = [1, 8], strides = [1, 1]} : vector<16x8xf32> to vector<1x8xf32>
    %221 = vector.broadcast %219 : vector<2x1xf32> to vector<2x8xf32>
    %222 = vector.broadcast %220 : vector<1x8xf32> to vector<2x8xf32>
    %223 = arith.mulf %221, %222 : vector<2x8xf32>
    %224 = vector.extract_strided_slice %198 {offsets = [0, 5], sizes = [2, 1], strides = [1, 1]} : vector<2x16xf32> to vector<2x1xf32>
    %225 = vector.extract_strided_slice %13 {offsets = [5, 0], sizes = [1, 8], strides = [1, 1]} : vector<16x8xf32> to vector<1x8xf32>
    %226 = vector.broadcast %224 : vector<2x1xf32> to vector<2x8xf32>
    %227 = vector.broadcast %225 : vector<1x8xf32> to vector<2x8xf32>
    %228 = arith.mulf %226, %227 : vector<2x8xf32>
    %229 = vector.extract_strided_slice %198 {offsets = [0, 6], sizes = [2, 1], strides = [1, 1]} : vector<2x16xf32> to vector<2x1xf32>
    %230 = vector.extract_strided_slice %13 {offsets = [6, 0], sizes = [1, 8], strides = [1, 1]} : vector<16x8xf32> to vector<1x8xf32>
    %231 = vector.broadcast %229 : vector<2x1xf32> to vector<2x8xf32>
    %232 = vector.broadcast %230 : vector<1x8xf32> to vector<2x8xf32>
    %233 = arith.mulf %231, %232 : vector<2x8xf32>
    %234 = vector.extract_strided_slice %198 {offsets = [0, 7], sizes = [2, 1], strides = [1, 1]} : vector<2x16xf32> to vector<2x1xf32>
    %235 = vector.extract_strided_slice %13 {offsets = [7, 0], sizes = [1, 8], strides = [1, 1]} : vector<16x8xf32> to vector<1x8xf32>
    %236 = vector.broadcast %234 : vector<2x1xf32> to vector<2x8xf32>
    %237 = vector.broadcast %235 : vector<1x8xf32> to vector<2x8xf32>
    %238 = arith.mulf %236, %237 : vector<2x8xf32>
    %239 = vector.extract_strided_slice %198 {offsets = [0, 8], sizes = [2, 1], strides = [1, 1]} : vector<2x16xf32> to vector<2x1xf32>
    %240 = vector.extract_strided_slice %13 {offsets = [8, 0], sizes = [1, 8], strides = [1, 1]} : vector<16x8xf32> to vector<1x8xf32>
    %241 = vector.broadcast %239 : vector<2x1xf32> to vector<2x8xf32>
    %242 = vector.broadcast %240 : vector<1x8xf32> to vector<2x8xf32>
    %243 = arith.mulf %241, %242 : vector<2x8xf32>
    %244 = vector.extract_strided_slice %198 {offsets = [0, 9], sizes = [2, 1], strides = [1, 1]} : vector<2x16xf32> to vector<2x1xf32>
    %245 = vector.extract_strided_slice %13 {offsets = [9, 0], sizes = [1, 8], strides = [1, 1]} : vector<16x8xf32> to vector<1x8xf32>
    %246 = vector.broadcast %244 : vector<2x1xf32> to vector<2x8xf32>
    %247 = vector.broadcast %245 : vector<1x8xf32> to vector<2x8xf32>
    %248 = arith.mulf %246, %247 : vector<2x8xf32>
    %249 = vector.extract_strided_slice %198 {offsets = [0, 10], sizes = [2, 1], strides = [1, 1]} : vector<2x16xf32> to vector<2x1xf32>
    %250 = vector.extract_strided_slice %13 {offsets = [10, 0], sizes = [1, 8], strides = [1, 1]} : vector<16x8xf32> to vector<1x8xf32>
    %251 = vector.broadcast %249 : vector<2x1xf32> to vector<2x8xf32>
    %252 = vector.broadcast %250 : vector<1x8xf32> to vector<2x8xf32>
    %253 = arith.mulf %251, %252 : vector<2x8xf32>
    %254 = vector.extract_strided_slice %198 {offsets = [0, 11], sizes = [2, 1], strides = [1, 1]} : vector<2x16xf32> to vector<2x1xf32>
    %255 = vector.extract_strided_slice %13 {offsets = [11, 0], sizes = [1, 8], strides = [1, 1]} : vector<16x8xf32> to vector<1x8xf32>
    %256 = vector.broadcast %254 : vector<2x1xf32> to vector<2x8xf32>
    %257 = vector.broadcast %255 : vector<1x8xf32> to vector<2x8xf32>
    %258 = arith.mulf %256, %257 : vector<2x8xf32>
    %259 = vector.extract_strided_slice %198 {offsets = [0, 12], sizes = [2, 1], strides = [1, 1]} : vector<2x16xf32> to vector<2x1xf32>
    %260 = vector.extract_strided_slice %13 {offsets = [12, 0], sizes = [1, 8], strides = [1, 1]} : vector<16x8xf32> to vector<1x8xf32>
    %261 = vector.broadcast %259 : vector<2x1xf32> to vector<2x8xf32>
    %262 = vector.broadcast %260 : vector<1x8xf32> to vector<2x8xf32>
    %263 = arith.mulf %261, %262 : vector<2x8xf32>
    %264 = vector.extract_strided_slice %198 {offsets = [0, 13], sizes = [2, 1], strides = [1, 1]} : vector<2x16xf32> to vector<2x1xf32>
    %265 = vector.extract_strided_slice %13 {offsets = [13, 0], sizes = [1, 8], strides = [1, 1]} : vector<16x8xf32> to vector<1x8xf32>
    %266 = vector.broadcast %264 : vector<2x1xf32> to vector<2x8xf32>
    %267 = vector.broadcast %265 : vector<1x8xf32> to vector<2x8xf32>
    %268 = arith.mulf %266, %267 : vector<2x8xf32>
    %269 = vector.extract_strided_slice %198 {offsets = [0, 14], sizes = [2, 1], strides = [1, 1]} : vector<2x16xf32> to vector<2x1xf32>
    %270 = vector.extract_strided_slice %13 {offsets = [14, 0], sizes = [1, 8], strides = [1, 1]} : vector<16x8xf32> to vector<1x8xf32>
    %271 = vector.broadcast %269 : vector<2x1xf32> to vector<2x8xf32>
    %272 = vector.broadcast %270 : vector<1x8xf32> to vector<2x8xf32>
    %273 = arith.mulf %271, %272 : vector<2x8xf32>
    %274 = vector.extract_strided_slice %198 {offsets = [0, 15], sizes = [2, 1], strides = [1, 1]} : vector<2x16xf32> to vector<2x1xf32>
    %275 = vector.extract_strided_slice %13 {offsets = [15, 0], sizes = [1, 8], strides = [1, 1]} : vector<16x8xf32> to vector<1x8xf32>
    %276 = vector.broadcast %274 : vector<2x1xf32> to vector<2x8xf32>
    %277 = vector.broadcast %275 : vector<1x8xf32> to vector<2x8xf32>
    %278 = arith.mulf %276, %277 : vector<2x8xf32>
    %279 = arith.addf %203, %208 : vector<2x8xf32>
    %280 = arith.addf %213, %218 : vector<2x8xf32>
    %281 = arith.addf %223, %228 : vector<2x8xf32>
    %282 = arith.addf %233, %238 : vector<2x8xf32>
    %283 = arith.addf %243, %248 : vector<2x8xf32>
    %284 = arith.addf %253, %258 : vector<2x8xf32>
    %285 = arith.addf %263, %268 : vector<2x8xf32>
    %286 = arith.addf %273, %278 : vector<2x8xf32>
    %287 = arith.addf %279, %280 : vector<2x8xf32>
    %288 = arith.addf %281, %282 : vector<2x8xf32>
    %289 = arith.addf %283, %284 : vector<2x8xf32>
    %290 = arith.addf %285, %286 : vector<2x8xf32>
    %291 = arith.addf %287, %288 : vector<2x8xf32>
    %292 = arith.addf %289, %290 : vector<2x8xf32>
    %293 = arith.addf %291, %292 : vector<2x8xf32>
    %294 = vector.broadcast %7 : vector<1x8xf32> to vector<2x8xf32>
    %295 = arith.addf %293, %294 : vector<2x8xf32>
    %296 = vector.extract_strided_slice %295 {offsets = [0, 0], sizes = [2, 4], strides = [1, 1]} : vector<2x8xf32> to vector<2x4xf32>
    %297 = arith.addf %171, %296 : vector<2x4xf32>
    %298 = vector.extract_strided_slice %295 {offsets = [0, 4], sizes = [2, 4], strides = [1, 1]} : vector<2x8xf32> to vector<2x4xf32>
    %299 = vector.extract_strided_slice %172 {offsets = [0, 0, 0], sizes = [1, 2, 4], strides = [1, 1, 1]} : vector<10x2x4xf32> to vector<1x2x4xf32>
    %300 = vector.shape_cast %299 : vector<1x2x4xf32> to vector<2x4xf32>
    %301 = arith.mulf %298, %300 : vector<2x4xf32>
    %302 = arith.addf %297, %301 : vector<2x4xf32>
    %303 = vector.extract_strided_slice %302 {offsets = [0, 0], sizes = [2, 1], strides = [1, 1]} : vector<2x4xf32> to vector<2x1xf32>
    %304 = vector.extract_strided_slice %11 {offsets = [0, 0], sizes = [1, 16], strides = [1, 1]} : vector<4x16xf32> to vector<1x16xf32>
    %305 = vector.broadcast %303 : vector<2x1xf32> to vector<2x16xf32>
    %306 = vector.broadcast %304 : vector<1x16xf32> to vector<2x16xf32>
    %307 = arith.mulf %305, %306 : vector<2x16xf32>
    %308 = vector.extract_strided_slice %302 {offsets = [0, 1], sizes = [2, 1], strides = [1, 1]} : vector<2x4xf32> to vector<2x1xf32>
    %309 = vector.extract_strided_slice %11 {offsets = [1, 0], sizes = [1, 16], strides = [1, 1]} : vector<4x16xf32> to vector<1x16xf32>
    %310 = vector.broadcast %308 : vector<2x1xf32> to vector<2x16xf32>
    %311 = vector.broadcast %309 : vector<1x16xf32> to vector<2x16xf32>
    %312 = arith.mulf %310, %311 : vector<2x16xf32>
    %313 = vector.extract_strided_slice %302 {offsets = [0, 2], sizes = [2, 1], strides = [1, 1]} : vector<2x4xf32> to vector<2x1xf32>
    %314 = vector.extract_strided_slice %11 {offsets = [2, 0], sizes = [1, 16], strides = [1, 1]} : vector<4x16xf32> to vector<1x16xf32>
    %315 = vector.broadcast %313 : vector<2x1xf32> to vector<2x16xf32>
    %316 = vector.broadcast %314 : vector<1x16xf32> to vector<2x16xf32>
    %317 = arith.mulf %315, %316 : vector<2x16xf32>
    %318 = vector.extract_strided_slice %302 {offsets = [0, 3], sizes = [2, 1], strides = [1, 1]} : vector<2x4xf32> to vector<2x1xf32>
    %319 = vector.extract_strided_slice %11 {offsets = [3, 0], sizes = [1, 16], strides = [1, 1]} : vector<4x16xf32> to vector<1x16xf32>
    %320 = vector.broadcast %318 : vector<2x1xf32> to vector<2x16xf32>
    %321 = vector.broadcast %319 : vector<1x16xf32> to vector<2x16xf32>
    %322 = arith.mulf %320, %321 : vector<2x16xf32>
    %323 = arith.addf %307, %312 : vector<2x16xf32>
    %324 = arith.addf %317, %322 : vector<2x16xf32>
    %325 = arith.addf %323, %324 : vector<2x16xf32>
    %326 = vector.broadcast %5 : vector<1x16xf32> to vector<2x16xf32>
    %327 = arith.addf %325, %326 : vector<2x16xf32>
    %328 = math.tanh %327 : vector<2x16xf32>
    %329 = vector.extract_strided_slice %328 {offsets = [0, 0], sizes = [2, 1], strides = [1, 1]} : vector<2x16xf32> to vector<2x1xf32>
    %330 = vector.extract_strided_slice %13 {offsets = [0, 0], sizes = [1, 8], strides = [1, 1]} : vector<16x8xf32> to vector<1x8xf32>
    %331 = vector.broadcast %329 : vector<2x1xf32> to vector<2x8xf32>
    %332 = vector.broadcast %330 : vector<1x8xf32> to vector<2x8xf32>
    %333 = arith.mulf %331, %332 : vector<2x8xf32>
    %334 = vector.extract_strided_slice %328 {offsets = [0, 1], sizes = [2, 1], strides = [1, 1]} : vector<2x16xf32> to vector<2x1xf32>
    %335 = vector.extract_strided_slice %13 {offsets = [1, 0], sizes = [1, 8], strides = [1, 1]} : vector<16x8xf32> to vector<1x8xf32>
    %336 = vector.broadcast %334 : vector<2x1xf32> to vector<2x8xf32>
    %337 = vector.broadcast %335 : vector<1x8xf32> to vector<2x8xf32>
    %338 = arith.mulf %336, %337 : vector<2x8xf32>
    %339 = vector.extract_strided_slice %328 {offsets = [0, 2], sizes = [2, 1], strides = [1, 1]} : vector<2x16xf32> to vector<2x1xf32>
    %340 = vector.extract_strided_slice %13 {offsets = [2, 0], sizes = [1, 8], strides = [1, 1]} : vector<16x8xf32> to vector<1x8xf32>
    %341 = vector.broadcast %339 : vector<2x1xf32> to vector<2x8xf32>
    %342 = vector.broadcast %340 : vector<1x8xf32> to vector<2x8xf32>
    %343 = arith.mulf %341, %342 : vector<2x8xf32>
    %344 = vector.extract_strided_slice %328 {offsets = [0, 3], sizes = [2, 1], strides = [1, 1]} : vector<2x16xf32> to vector<2x1xf32>
    %345 = vector.extract_strided_slice %13 {offsets = [3, 0], sizes = [1, 8], strides = [1, 1]} : vector<16x8xf32> to vector<1x8xf32>
    %346 = vector.broadcast %344 : vector<2x1xf32> to vector<2x8xf32>
    %347 = vector.broadcast %345 : vector<1x8xf32> to vector<2x8xf32>
    %348 = arith.mulf %346, %347 : vector<2x8xf32>
    %349 = vector.extract_strided_slice %328 {offsets = [0, 4], sizes = [2, 1], strides = [1, 1]} : vector<2x16xf32> to vector<2x1xf32>
    %350 = vector.extract_strided_slice %13 {offsets = [4, 0], sizes = [1, 8], strides = [1, 1]} : vector<16x8xf32> to vector<1x8xf32>
    %351 = vector.broadcast %349 : vector<2x1xf32> to vector<2x8xf32>
    %352 = vector.broadcast %350 : vector<1x8xf32> to vector<2x8xf32>
    %353 = arith.mulf %351, %352 : vector<2x8xf32>
    %354 = vector.extract_strided_slice %328 {offsets = [0, 5], sizes = [2, 1], strides = [1, 1]} : vector<2x16xf32> to vector<2x1xf32>
    %355 = vector.extract_strided_slice %13 {offsets = [5, 0], sizes = [1, 8], strides = [1, 1]} : vector<16x8xf32> to vector<1x8xf32>
    %356 = vector.broadcast %354 : vector<2x1xf32> to vector<2x8xf32>
    %357 = vector.broadcast %355 : vector<1x8xf32> to vector<2x8xf32>
    %358 = arith.mulf %356, %357 : vector<2x8xf32>
    %359 = vector.extract_strided_slice %328 {offsets = [0, 6], sizes = [2, 1], strides = [1, 1]} : vector<2x16xf32> to vector<2x1xf32>
    %360 = vector.extract_strided_slice %13 {offsets = [6, 0], sizes = [1, 8], strides = [1, 1]} : vector<16x8xf32> to vector<1x8xf32>
    %361 = vector.broadcast %359 : vector<2x1xf32> to vector<2x8xf32>
    %362 = vector.broadcast %360 : vector<1x8xf32> to vector<2x8xf32>
    %363 = arith.mulf %361, %362 : vector<2x8xf32>
    %364 = vector.extract_strided_slice %328 {offsets = [0, 7], sizes = [2, 1], strides = [1, 1]} : vector<2x16xf32> to vector<2x1xf32>
    %365 = vector.extract_strided_slice %13 {offsets = [7, 0], sizes = [1, 8], strides = [1, 1]} : vector<16x8xf32> to vector<1x8xf32>
    %366 = vector.broadcast %364 : vector<2x1xf32> to vector<2x8xf32>
    %367 = vector.broadcast %365 : vector<1x8xf32> to vector<2x8xf32>
    %368 = arith.mulf %366, %367 : vector<2x8xf32>
    %369 = vector.extract_strided_slice %328 {offsets = [0, 8], sizes = [2, 1], strides = [1, 1]} : vector<2x16xf32> to vector<2x1xf32>
    %370 = vector.extract_strided_slice %13 {offsets = [8, 0], sizes = [1, 8], strides = [1, 1]} : vector<16x8xf32> to vector<1x8xf32>
    %371 = vector.broadcast %369 : vector<2x1xf32> to vector<2x8xf32>
    %372 = vector.broadcast %370 : vector<1x8xf32> to vector<2x8xf32>
    %373 = arith.mulf %371, %372 : vector<2x8xf32>
    %374 = vector.extract_strided_slice %328 {offsets = [0, 9], sizes = [2, 1], strides = [1, 1]} : vector<2x16xf32> to vector<2x1xf32>
    %375 = vector.extract_strided_slice %13 {offsets = [9, 0], sizes = [1, 8], strides = [1, 1]} : vector<16x8xf32> to vector<1x8xf32>
    %376 = vector.broadcast %374 : vector<2x1xf32> to vector<2x8xf32>
    %377 = vector.broadcast %375 : vector<1x8xf32> to vector<2x8xf32>
    %378 = arith.mulf %376, %377 : vector<2x8xf32>
    %379 = vector.extract_strided_slice %328 {offsets = [0, 10], sizes = [2, 1], strides = [1, 1]} : vector<2x16xf32> to vector<2x1xf32>
    %380 = vector.extract_strided_slice %13 {offsets = [10, 0], sizes = [1, 8], strides = [1, 1]} : vector<16x8xf32> to vector<1x8xf32>
    %381 = vector.broadcast %379 : vector<2x1xf32> to vector<2x8xf32>
    %382 = vector.broadcast %380 : vector<1x8xf32> to vector<2x8xf32>
    %383 = arith.mulf %381, %382 : vector<2x8xf32>
    %384 = vector.extract_strided_slice %328 {offsets = [0, 11], sizes = [2, 1], strides = [1, 1]} : vector<2x16xf32> to vector<2x1xf32>
    %385 = vector.extract_strided_slice %13 {offsets = [11, 0], sizes = [1, 8], strides = [1, 1]} : vector<16x8xf32> to vector<1x8xf32>
    %386 = vector.broadcast %384 : vector<2x1xf32> to vector<2x8xf32>
    %387 = vector.broadcast %385 : vector<1x8xf32> to vector<2x8xf32>
    %388 = arith.mulf %386, %387 : vector<2x8xf32>
    %389 = vector.extract_strided_slice %328 {offsets = [0, 12], sizes = [2, 1], strides = [1, 1]} : vector<2x16xf32> to vector<2x1xf32>
    %390 = vector.extract_strided_slice %13 {offsets = [12, 0], sizes = [1, 8], strides = [1, 1]} : vector<16x8xf32> to vector<1x8xf32>
    %391 = vector.broadcast %389 : vector<2x1xf32> to vector<2x8xf32>
    %392 = vector.broadcast %390 : vector<1x8xf32> to vector<2x8xf32>
    %393 = arith.mulf %391, %392 : vector<2x8xf32>
    %394 = vector.extract_strided_slice %328 {offsets = [0, 13], sizes = [2, 1], strides = [1, 1]} : vector<2x16xf32> to vector<2x1xf32>
    %395 = vector.extract_strided_slice %13 {offsets = [13, 0], sizes = [1, 8], strides = [1, 1]} : vector<16x8xf32> to vector<1x8xf32>
    %396 = vector.broadcast %394 : vector<2x1xf32> to vector<2x8xf32>
    %397 = vector.broadcast %395 : vector<1x8xf32> to vector<2x8xf32>
    %398 = arith.mulf %396, %397 : vector<2x8xf32>
    %399 = vector.extract_strided_slice %328 {offsets = [0, 14], sizes = [2, 1], strides = [1, 1]} : vector<2x16xf32> to vector<2x1xf32>
    %400 = vector.extract_strided_slice %13 {offsets = [14, 0], sizes = [1, 8], strides = [1, 1]} : vector<16x8xf32> to vector<1x8xf32>
    %401 = vector.broadcast %399 : vector<2x1xf32> to vector<2x8xf32>
    %402 = vector.broadcast %400 : vector<1x8xf32> to vector<2x8xf32>
    %403 = arith.mulf %401, %402 : vector<2x8xf32>
    %404 = vector.extract_strided_slice %328 {offsets = [0, 15], sizes = [2, 1], strides = [1, 1]} : vector<2x16xf32> to vector<2x1xf32>
    %405 = vector.extract_strided_slice %13 {offsets = [15, 0], sizes = [1, 8], strides = [1, 1]} : vector<16x8xf32> to vector<1x8xf32>
    %406 = vector.broadcast %404 : vector<2x1xf32> to vector<2x8xf32>
    %407 = vector.broadcast %405 : vector<1x8xf32> to vector<2x8xf32>
    %408 = arith.mulf %406, %407 : vector<2x8xf32>
    %409 = arith.addf %333, %338 : vector<2x8xf32>
    %410 = arith.addf %343, %348 : vector<2x8xf32>
    %411 = arith.addf %353, %358 : vector<2x8xf32>
    %412 = arith.addf %363, %368 : vector<2x8xf32>
    %413 = arith.addf %373, %378 : vector<2x8xf32>
    %414 = arith.addf %383, %388 : vector<2x8xf32>
    %415 = arith.addf %393, %398 : vector<2x8xf32>
    %416 = arith.addf %403, %408 : vector<2x8xf32>
    %417 = arith.addf %409, %410 : vector<2x8xf32>
    %418 = arith.addf %411, %412 : vector<2x8xf32>
    %419 = arith.addf %413, %414 : vector<2x8xf32>
    %420 = arith.addf %415, %416 : vector<2x8xf32>
    %421 = arith.addf %417, %418 : vector<2x8xf32>
    %422 = arith.addf %419, %420 : vector<2x8xf32>
    %423 = arith.addf %421, %422 : vector<2x8xf32>
    %424 = vector.broadcast %7 : vector<1x8xf32> to vector<2x8xf32>
    %425 = arith.addf %423, %424 : vector<2x8xf32>
    %426 = vector.extract_strided_slice %425 {offsets = [0, 0], sizes = [2, 4], strides = [1, 1]} : vector<2x8xf32> to vector<2x4xf32>
    %427 = arith.addf %302, %426 : vector<2x4xf32>
    %428 = vector.extract_strided_slice %425 {offsets = [0, 4], sizes = [2, 4], strides = [1, 1]} : vector<2x8xf32> to vector<2x4xf32>
    %429 = vector.extract_strided_slice %172 {offsets = [1, 0, 0], sizes = [1, 2, 4], strides = [1, 1, 1]} : vector<10x2x4xf32> to vector<1x2x4xf32>
    %430 = vector.shape_cast %429 : vector<1x2x4xf32> to vector<2x4xf32>
    %431 = arith.mulf %428, %430 : vector<2x4xf32>
    %432 = arith.addf %427, %431 : vector<2x4xf32>
    %433 = vector.extract_strided_slice %432 {offsets = [0, 0], sizes = [2, 1], strides = [1, 1]} : vector<2x4xf32> to vector<2x1xf32>
    %434 = vector.extract_strided_slice %11 {offsets = [0, 0], sizes = [1, 16], strides = [1, 1]} : vector<4x16xf32> to vector<1x16xf32>
    %435 = vector.broadcast %433 : vector<2x1xf32> to vector<2x16xf32>
    %436 = vector.broadcast %434 : vector<1x16xf32> to vector<2x16xf32>
    %437 = arith.mulf %435, %436 : vector<2x16xf32>
    %438 = vector.extract_strided_slice %432 {offsets = [0, 1], sizes = [2, 1], strides = [1, 1]} : vector<2x4xf32> to vector<2x1xf32>
    %439 = vector.extract_strided_slice %11 {offsets = [1, 0], sizes = [1, 16], strides = [1, 1]} : vector<4x16xf32> to vector<1x16xf32>
    %440 = vector.broadcast %438 : vector<2x1xf32> to vector<2x16xf32>
    %441 = vector.broadcast %439 : vector<1x16xf32> to vector<2x16xf32>
    %442 = arith.mulf %440, %441 : vector<2x16xf32>
    %443 = vector.extract_strided_slice %432 {offsets = [0, 2], sizes = [2, 1], strides = [1, 1]} : vector<2x4xf32> to vector<2x1xf32>
    %444 = vector.extract_strided_slice %11 {offsets = [2, 0], sizes = [1, 16], strides = [1, 1]} : vector<4x16xf32> to vector<1x16xf32>
    %445 = vector.broadcast %443 : vector<2x1xf32> to vector<2x16xf32>
    %446 = vector.broadcast %444 : vector<1x16xf32> to vector<2x16xf32>
    %447 = arith.mulf %445, %446 : vector<2x16xf32>
    %448 = vector.extract_strided_slice %432 {offsets = [0, 3], sizes = [2, 1], strides = [1, 1]} : vector<2x4xf32> to vector<2x1xf32>
    %449 = vector.extract_strided_slice %11 {offsets = [3, 0], sizes = [1, 16], strides = [1, 1]} : vector<4x16xf32> to vector<1x16xf32>
    %450 = vector.broadcast %448 : vector<2x1xf32> to vector<2x16xf32>
    %451 = vector.broadcast %449 : vector<1x16xf32> to vector<2x16xf32>
    %452 = arith.mulf %450, %451 : vector<2x16xf32>
    %453 = arith.addf %437, %442 : vector<2x16xf32>
    %454 = arith.addf %447, %452 : vector<2x16xf32>
    %455 = arith.addf %453, %454 : vector<2x16xf32>
    %456 = vector.broadcast %5 : vector<1x16xf32> to vector<2x16xf32>
    %457 = arith.addf %455, %456 : vector<2x16xf32>
    %458 = math.tanh %457 : vector<2x16xf32>
    %459 = vector.extract_strided_slice %458 {offsets = [0, 0], sizes = [2, 1], strides = [1, 1]} : vector<2x16xf32> to vector<2x1xf32>
    %460 = vector.extract_strided_slice %13 {offsets = [0, 0], sizes = [1, 8], strides = [1, 1]} : vector<16x8xf32> to vector<1x8xf32>
    %461 = vector.broadcast %459 : vector<2x1xf32> to vector<2x8xf32>
    %462 = vector.broadcast %460 : vector<1x8xf32> to vector<2x8xf32>
    %463 = arith.mulf %461, %462 : vector<2x8xf32>
    %464 = vector.extract_strided_slice %458 {offsets = [0, 1], sizes = [2, 1], strides = [1, 1]} : vector<2x16xf32> to vector<2x1xf32>
    %465 = vector.extract_strided_slice %13 {offsets = [1, 0], sizes = [1, 8], strides = [1, 1]} : vector<16x8xf32> to vector<1x8xf32>
    %466 = vector.broadcast %464 : vector<2x1xf32> to vector<2x8xf32>
    %467 = vector.broadcast %465 : vector<1x8xf32> to vector<2x8xf32>
    %468 = arith.mulf %466, %467 : vector<2x8xf32>
    %469 = vector.extract_strided_slice %458 {offsets = [0, 2], sizes = [2, 1], strides = [1, 1]} : vector<2x16xf32> to vector<2x1xf32>
    %470 = vector.extract_strided_slice %13 {offsets = [2, 0], sizes = [1, 8], strides = [1, 1]} : vector<16x8xf32> to vector<1x8xf32>
    %471 = vector.broadcast %469 : vector<2x1xf32> to vector<2x8xf32>
    %472 = vector.broadcast %470 : vector<1x8xf32> to vector<2x8xf32>
    %473 = arith.mulf %471, %472 : vector<2x8xf32>
    %474 = vector.extract_strided_slice %458 {offsets = [0, 3], sizes = [2, 1], strides = [1, 1]} : vector<2x16xf32> to vector<2x1xf32>
    %475 = vector.extract_strided_slice %13 {offsets = [3, 0], sizes = [1, 8], strides = [1, 1]} : vector<16x8xf32> to vector<1x8xf32>
    %476 = vector.broadcast %474 : vector<2x1xf32> to vector<2x8xf32>
    %477 = vector.broadcast %475 : vector<1x8xf32> to vector<2x8xf32>
    %478 = arith.mulf %476, %477 : vector<2x8xf32>
    %479 = vector.extract_strided_slice %458 {offsets = [0, 4], sizes = [2, 1], strides = [1, 1]} : vector<2x16xf32> to vector<2x1xf32>
    %480 = vector.extract_strided_slice %13 {offsets = [4, 0], sizes = [1, 8], strides = [1, 1]} : vector<16x8xf32> to vector<1x8xf32>
    %481 = vector.broadcast %479 : vector<2x1xf32> to vector<2x8xf32>
    %482 = vector.broadcast %480 : vector<1x8xf32> to vector<2x8xf32>
    %483 = arith.mulf %481, %482 : vector<2x8xf32>
    %484 = vector.extract_strided_slice %458 {offsets = [0, 5], sizes = [2, 1], strides = [1, 1]} : vector<2x16xf32> to vector<2x1xf32>
    %485 = vector.extract_strided_slice %13 {offsets = [5, 0], sizes = [1, 8], strides = [1, 1]} : vector<16x8xf32> to vector<1x8xf32>
    %486 = vector.broadcast %484 : vector<2x1xf32> to vector<2x8xf32>
    %487 = vector.broadcast %485 : vector<1x8xf32> to vector<2x8xf32>
    %488 = arith.mulf %486, %487 : vector<2x8xf32>
    %489 = vector.extract_strided_slice %458 {offsets = [0, 6], sizes = [2, 1], strides = [1, 1]} : vector<2x16xf32> to vector<2x1xf32>
    %490 = vector.extract_strided_slice %13 {offsets = [6, 0], sizes = [1, 8], strides = [1, 1]} : vector<16x8xf32> to vector<1x8xf32>
    %491 = vector.broadcast %489 : vector<2x1xf32> to vector<2x8xf32>
    %492 = vector.broadcast %490 : vector<1x8xf32> to vector<2x8xf32>
    %493 = arith.mulf %491, %492 : vector<2x8xf32>
    %494 = vector.extract_strided_slice %458 {offsets = [0, 7], sizes = [2, 1], strides = [1, 1]} : vector<2x16xf32> to vector<2x1xf32>
    %495 = vector.extract_strided_slice %13 {offsets = [7, 0], sizes = [1, 8], strides = [1, 1]} : vector<16x8xf32> to vector<1x8xf32>
    %496 = vector.broadcast %494 : vector<2x1xf32> to vector<2x8xf32>
    %497 = vector.broadcast %495 : vector<1x8xf32> to vector<2x8xf32>
    %498 = arith.mulf %496, %497 : vector<2x8xf32>
    %499 = vector.extract_strided_slice %458 {offsets = [0, 8], sizes = [2, 1], strides = [1, 1]} : vector<2x16xf32> to vector<2x1xf32>
    %500 = vector.extract_strided_slice %13 {offsets = [8, 0], sizes = [1, 8], strides = [1, 1]} : vector<16x8xf32> to vector<1x8xf32>
    %501 = vector.broadcast %499 : vector<2x1xf32> to vector<2x8xf32>
    %502 = vector.broadcast %500 : vector<1x8xf32> to vector<2x8xf32>
    %503 = arith.mulf %501, %502 : vector<2x8xf32>
    %504 = vector.extract_strided_slice %458 {offsets = [0, 9], sizes = [2, 1], strides = [1, 1]} : vector<2x16xf32> to vector<2x1xf32>
    %505 = vector.extract_strided_slice %13 {offsets = [9, 0], sizes = [1, 8], strides = [1, 1]} : vector<16x8xf32> to vector<1x8xf32>
    %506 = vector.broadcast %504 : vector<2x1xf32> to vector<2x8xf32>
    %507 = vector.broadcast %505 : vector<1x8xf32> to vector<2x8xf32>
    %508 = arith.mulf %506, %507 : vector<2x8xf32>
    %509 = vector.extract_strided_slice %458 {offsets = [0, 10], sizes = [2, 1], strides = [1, 1]} : vector<2x16xf32> to vector<2x1xf32>
    %510 = vector.extract_strided_slice %13 {offsets = [10, 0], sizes = [1, 8], strides = [1, 1]} : vector<16x8xf32> to vector<1x8xf32>
    %511 = vector.broadcast %509 : vector<2x1xf32> to vector<2x8xf32>
    %512 = vector.broadcast %510 : vector<1x8xf32> to vector<2x8xf32>
    %513 = arith.mulf %511, %512 : vector<2x8xf32>
    %514 = vector.extract_strided_slice %458 {offsets = [0, 11], sizes = [2, 1], strides = [1, 1]} : vector<2x16xf32> to vector<2x1xf32>
    %515 = vector.extract_strided_slice %13 {offsets = [11, 0], sizes = [1, 8], strides = [1, 1]} : vector<16x8xf32> to vector<1x8xf32>
    %516 = vector.broadcast %514 : vector<2x1xf32> to vector<2x8xf32>
    %517 = vector.broadcast %515 : vector<1x8xf32> to vector<2x8xf32>
    %518 = arith.mulf %516, %517 : vector<2x8xf32>
    %519 = vector.extract_strided_slice %458 {offsets = [0, 12], sizes = [2, 1], strides = [1, 1]} : vector<2x16xf32> to vector<2x1xf32>
    %520 = vector.extract_strided_slice %13 {offsets = [12, 0], sizes = [1, 8], strides = [1, 1]} : vector<16x8xf32> to vector<1x8xf32>
    %521 = vector.broadcast %519 : vector<2x1xf32> to vector<2x8xf32>
    %522 = vector.broadcast %520 : vector<1x8xf32> to vector<2x8xf32>
    %523 = arith.mulf %521, %522 : vector<2x8xf32>
    %524 = vector.extract_strided_slice %458 {offsets = [0, 13], sizes = [2, 1], strides = [1, 1]} : vector<2x16xf32> to vector<2x1xf32>
    %525 = vector.extract_strided_slice %13 {offsets = [13, 0], sizes = [1, 8], strides = [1, 1]} : vector<16x8xf32> to vector<1x8xf32>
    %526 = vector.broadcast %524 : vector<2x1xf32> to vector<2x8xf32>
    %527 = vector.broadcast %525 : vector<1x8xf32> to vector<2x8xf32>
    %528 = arith.mulf %526, %527 : vector<2x8xf32>
    %529 = vector.extract_strided_slice %458 {offsets = [0, 14], sizes = [2, 1], strides = [1, 1]} : vector<2x16xf32> to vector<2x1xf32>
    %530 = vector.extract_strided_slice %13 {offsets = [14, 0], sizes = [1, 8], strides = [1, 1]} : vector<16x8xf32> to vector<1x8xf32>
    %531 = vector.broadcast %529 : vector<2x1xf32> to vector<2x8xf32>
    %532 = vector.broadcast %530 : vector<1x8xf32> to vector<2x8xf32>
    %533 = arith.mulf %531, %532 : vector<2x8xf32>
    %534 = vector.extract_strided_slice %458 {offsets = [0, 15], sizes = [2, 1], strides = [1, 1]} : vector<2x16xf32> to vector<2x1xf32>
    %535 = vector.extract_strided_slice %13 {offsets = [15, 0], sizes = [1, 8], strides = [1, 1]} : vector<16x8xf32> to vector<1x8xf32>
    %536 = vector.broadcast %534 : vector<2x1xf32> to vector<2x8xf32>
    %537 = vector.broadcast %535 : vector<1x8xf32> to vector<2x8xf32>
    %538 = arith.mulf %536, %537 : vector<2x8xf32>
    %539 = arith.addf %463, %468 : vector<2x8xf32>
    %540 = arith.addf %473, %478 : vector<2x8xf32>
    %541 = arith.addf %483, %488 : vector<2x8xf32>
    %542 = arith.addf %493, %498 : vector<2x8xf32>
    %543 = arith.addf %503, %508 : vector<2x8xf32>
    %544 = arith.addf %513, %518 : vector<2x8xf32>
    %545 = arith.addf %523, %528 : vector<2x8xf32>
    %546 = arith.addf %533, %538 : vector<2x8xf32>
    %547 = arith.addf %539, %540 : vector<2x8xf32>
    %548 = arith.addf %541, %542 : vector<2x8xf32>
    %549 = arith.addf %543, %544 : vector<2x8xf32>
    %550 = arith.addf %545, %546 : vector<2x8xf32>
    %551 = arith.addf %547, %548 : vector<2x8xf32>
    %552 = arith.addf %549, %550 : vector<2x8xf32>
    %553 = arith.addf %551, %552 : vector<2x8xf32>
    %554 = vector.broadcast %7 : vector<1x8xf32> to vector<2x8xf32>
    %555 = arith.addf %553, %554 : vector<2x8xf32>
    %556 = vector.extract_strided_slice %555 {offsets = [0, 0], sizes = [2, 4], strides = [1, 1]} : vector<2x8xf32> to vector<2x4xf32>
    %557 = arith.addf %432, %556 : vector<2x4xf32>
    %558 = vector.extract_strided_slice %555 {offsets = [0, 4], sizes = [2, 4], strides = [1, 1]} : vector<2x8xf32> to vector<2x4xf32>
    %559 = vector.extract_strided_slice %172 {offsets = [2, 0, 0], sizes = [1, 2, 4], strides = [1, 1, 1]} : vector<10x2x4xf32> to vector<1x2x4xf32>
    %560 = vector.shape_cast %559 : vector<1x2x4xf32> to vector<2x4xf32>
    %561 = arith.mulf %558, %560 : vector<2x4xf32>
    %562 = arith.addf %557, %561 : vector<2x4xf32>
    %563 = vector.extract_strided_slice %562 {offsets = [0, 0], sizes = [2, 1], strides = [1, 1]} : vector<2x4xf32> to vector<2x1xf32>
    %564 = vector.extract_strided_slice %11 {offsets = [0, 0], sizes = [1, 16], strides = [1, 1]} : vector<4x16xf32> to vector<1x16xf32>
    %565 = vector.broadcast %563 : vector<2x1xf32> to vector<2x16xf32>
    %566 = vector.broadcast %564 : vector<1x16xf32> to vector<2x16xf32>
    %567 = arith.mulf %565, %566 : vector<2x16xf32>
    %568 = vector.extract_strided_slice %562 {offsets = [0, 1], sizes = [2, 1], strides = [1, 1]} : vector<2x4xf32> to vector<2x1xf32>
    %569 = vector.extract_strided_slice %11 {offsets = [1, 0], sizes = [1, 16], strides = [1, 1]} : vector<4x16xf32> to vector<1x16xf32>
    %570 = vector.broadcast %568 : vector<2x1xf32> to vector<2x16xf32>
    %571 = vector.broadcast %569 : vector<1x16xf32> to vector<2x16xf32>
    %572 = arith.mulf %570, %571 : vector<2x16xf32>
    %573 = vector.extract_strided_slice %562 {offsets = [0, 2], sizes = [2, 1], strides = [1, 1]} : vector<2x4xf32> to vector<2x1xf32>
    %574 = vector.extract_strided_slice %11 {offsets = [2, 0], sizes = [1, 16], strides = [1, 1]} : vector<4x16xf32> to vector<1x16xf32>
    %575 = vector.broadcast %573 : vector<2x1xf32> to vector<2x16xf32>
    %576 = vector.broadcast %574 : vector<1x16xf32> to vector<2x16xf32>
    %577 = arith.mulf %575, %576 : vector<2x16xf32>
    %578 = vector.extract_strided_slice %562 {offsets = [0, 3], sizes = [2, 1], strides = [1, 1]} : vector<2x4xf32> to vector<2x1xf32>
    %579 = vector.extract_strided_slice %11 {offsets = [3, 0], sizes = [1, 16], strides = [1, 1]} : vector<4x16xf32> to vector<1x16xf32>
    %580 = vector.broadcast %578 : vector<2x1xf32> to vector<2x16xf32>
    %581 = vector.broadcast %579 : vector<1x16xf32> to vector<2x16xf32>
    %582 = arith.mulf %580, %581 : vector<2x16xf32>
    %583 = arith.addf %567, %572 : vector<2x16xf32>
    %584 = arith.addf %577, %582 : vector<2x16xf32>
    %585 = arith.addf %583, %584 : vector<2x16xf32>
    %586 = vector.broadcast %5 : vector<1x16xf32> to vector<2x16xf32>
    %587 = arith.addf %585, %586 : vector<2x16xf32>
    %588 = math.tanh %587 : vector<2x16xf32>
    %589 = vector.extract_strided_slice %588 {offsets = [0, 0], sizes = [2, 1], strides = [1, 1]} : vector<2x16xf32> to vector<2x1xf32>
    %590 = vector.extract_strided_slice %13 {offsets = [0, 0], sizes = [1, 8], strides = [1, 1]} : vector<16x8xf32> to vector<1x8xf32>
    %591 = vector.broadcast %589 : vector<2x1xf32> to vector<2x8xf32>
    %592 = vector.broadcast %590 : vector<1x8xf32> to vector<2x8xf32>
    %593 = arith.mulf %591, %592 : vector<2x8xf32>
    %594 = vector.extract_strided_slice %588 {offsets = [0, 1], sizes = [2, 1], strides = [1, 1]} : vector<2x16xf32> to vector<2x1xf32>
    %595 = vector.extract_strided_slice %13 {offsets = [1, 0], sizes = [1, 8], strides = [1, 1]} : vector<16x8xf32> to vector<1x8xf32>
    %596 = vector.broadcast %594 : vector<2x1xf32> to vector<2x8xf32>
    %597 = vector.broadcast %595 : vector<1x8xf32> to vector<2x8xf32>
    %598 = arith.mulf %596, %597 : vector<2x8xf32>
    %599 = vector.extract_strided_slice %588 {offsets = [0, 2], sizes = [2, 1], strides = [1, 1]} : vector<2x16xf32> to vector<2x1xf32>
    %600 = vector.extract_strided_slice %13 {offsets = [2, 0], sizes = [1, 8], strides = [1, 1]} : vector<16x8xf32> to vector<1x8xf32>
    %601 = vector.broadcast %599 : vector<2x1xf32> to vector<2x8xf32>
    %602 = vector.broadcast %600 : vector<1x8xf32> to vector<2x8xf32>
    %603 = arith.mulf %601, %602 : vector<2x8xf32>
    %604 = vector.extract_strided_slice %588 {offsets = [0, 3], sizes = [2, 1], strides = [1, 1]} : vector<2x16xf32> to vector<2x1xf32>
    %605 = vector.extract_strided_slice %13 {offsets = [3, 0], sizes = [1, 8], strides = [1, 1]} : vector<16x8xf32> to vector<1x8xf32>
    %606 = vector.broadcast %604 : vector<2x1xf32> to vector<2x8xf32>
    %607 = vector.broadcast %605 : vector<1x8xf32> to vector<2x8xf32>
    %608 = arith.mulf %606, %607 : vector<2x8xf32>
    %609 = vector.extract_strided_slice %588 {offsets = [0, 4], sizes = [2, 1], strides = [1, 1]} : vector<2x16xf32> to vector<2x1xf32>
    %610 = vector.extract_strided_slice %13 {offsets = [4, 0], sizes = [1, 8], strides = [1, 1]} : vector<16x8xf32> to vector<1x8xf32>
    %611 = vector.broadcast %609 : vector<2x1xf32> to vector<2x8xf32>
    %612 = vector.broadcast %610 : vector<1x8xf32> to vector<2x8xf32>
    %613 = arith.mulf %611, %612 : vector<2x8xf32>
    %614 = vector.extract_strided_slice %588 {offsets = [0, 5], sizes = [2, 1], strides = [1, 1]} : vector<2x16xf32> to vector<2x1xf32>
    %615 = vector.extract_strided_slice %13 {offsets = [5, 0], sizes = [1, 8], strides = [1, 1]} : vector<16x8xf32> to vector<1x8xf32>
    %616 = vector.broadcast %614 : vector<2x1xf32> to vector<2x8xf32>
    %617 = vector.broadcast %615 : vector<1x8xf32> to vector<2x8xf32>
    %618 = arith.mulf %616, %617 : vector<2x8xf32>
    %619 = vector.extract_strided_slice %588 {offsets = [0, 6], sizes = [2, 1], strides = [1, 1]} : vector<2x16xf32> to vector<2x1xf32>
    %620 = vector.extract_strided_slice %13 {offsets = [6, 0], sizes = [1, 8], strides = [1, 1]} : vector<16x8xf32> to vector<1x8xf32>
    %621 = vector.broadcast %619 : vector<2x1xf32> to vector<2x8xf32>
    %622 = vector.broadcast %620 : vector<1x8xf32> to vector<2x8xf32>
    %623 = arith.mulf %621, %622 : vector<2x8xf32>
    %624 = vector.extract_strided_slice %588 {offsets = [0, 7], sizes = [2, 1], strides = [1, 1]} : vector<2x16xf32> to vector<2x1xf32>
    %625 = vector.extract_strided_slice %13 {offsets = [7, 0], sizes = [1, 8], strides = [1, 1]} : vector<16x8xf32> to vector<1x8xf32>
    %626 = vector.broadcast %624 : vector<2x1xf32> to vector<2x8xf32>
    %627 = vector.broadcast %625 : vector<1x8xf32> to vector<2x8xf32>
    %628 = arith.mulf %626, %627 : vector<2x8xf32>
    %629 = vector.extract_strided_slice %588 {offsets = [0, 8], sizes = [2, 1], strides = [1, 1]} : vector<2x16xf32> to vector<2x1xf32>
    %630 = vector.extract_strided_slice %13 {offsets = [8, 0], sizes = [1, 8], strides = [1, 1]} : vector<16x8xf32> to vector<1x8xf32>
    %631 = vector.broadcast %629 : vector<2x1xf32> to vector<2x8xf32>
    %632 = vector.broadcast %630 : vector<1x8xf32> to vector<2x8xf32>
    %633 = arith.mulf %631, %632 : vector<2x8xf32>
    %634 = vector.extract_strided_slice %588 {offsets = [0, 9], sizes = [2, 1], strides = [1, 1]} : vector<2x16xf32> to vector<2x1xf32>
    %635 = vector.extract_strided_slice %13 {offsets = [9, 0], sizes = [1, 8], strides = [1, 1]} : vector<16x8xf32> to vector<1x8xf32>
    %636 = vector.broadcast %634 : vector<2x1xf32> to vector<2x8xf32>
    %637 = vector.broadcast %635 : vector<1x8xf32> to vector<2x8xf32>
    %638 = arith.mulf %636, %637 : vector<2x8xf32>
    %639 = vector.extract_strided_slice %588 {offsets = [0, 10], sizes = [2, 1], strides = [1, 1]} : vector<2x16xf32> to vector<2x1xf32>
    %640 = vector.extract_strided_slice %13 {offsets = [10, 0], sizes = [1, 8], strides = [1, 1]} : vector<16x8xf32> to vector<1x8xf32>
    %641 = vector.broadcast %639 : vector<2x1xf32> to vector<2x8xf32>
    %642 = vector.broadcast %640 : vector<1x8xf32> to vector<2x8xf32>
    %643 = arith.mulf %641, %642 : vector<2x8xf32>
    %644 = vector.extract_strided_slice %588 {offsets = [0, 11], sizes = [2, 1], strides = [1, 1]} : vector<2x16xf32> to vector<2x1xf32>
    %645 = vector.extract_strided_slice %13 {offsets = [11, 0], sizes = [1, 8], strides = [1, 1]} : vector<16x8xf32> to vector<1x8xf32>
    %646 = vector.broadcast %644 : vector<2x1xf32> to vector<2x8xf32>
    %647 = vector.broadcast %645 : vector<1x8xf32> to vector<2x8xf32>
    %648 = arith.mulf %646, %647 : vector<2x8xf32>
    %649 = vector.extract_strided_slice %588 {offsets = [0, 12], sizes = [2, 1], strides = [1, 1]} : vector<2x16xf32> to vector<2x1xf32>
    %650 = vector.extract_strided_slice %13 {offsets = [12, 0], sizes = [1, 8], strides = [1, 1]} : vector<16x8xf32> to vector<1x8xf32>
    %651 = vector.broadcast %649 : vector<2x1xf32> to vector<2x8xf32>
    %652 = vector.broadcast %650 : vector<1x8xf32> to vector<2x8xf32>
    %653 = arith.mulf %651, %652 : vector<2x8xf32>
    %654 = vector.extract_strided_slice %588 {offsets = [0, 13], sizes = [2, 1], strides = [1, 1]} : vector<2x16xf32> to vector<2x1xf32>
    %655 = vector.extract_strided_slice %13 {offsets = [13, 0], sizes = [1, 8], strides = [1, 1]} : vector<16x8xf32> to vector<1x8xf32>
    %656 = vector.broadcast %654 : vector<2x1xf32> to vector<2x8xf32>
    %657 = vector.broadcast %655 : vector<1x8xf32> to vector<2x8xf32>
    %658 = arith.mulf %656, %657 : vector<2x8xf32>
    %659 = vector.extract_strided_slice %588 {offsets = [0, 14], sizes = [2, 1], strides = [1, 1]} : vector<2x16xf32> to vector<2x1xf32>
    %660 = vector.extract_strided_slice %13 {offsets = [14, 0], sizes = [1, 8], strides = [1, 1]} : vector<16x8xf32> to vector<1x8xf32>
    %661 = vector.broadcast %659 : vector<2x1xf32> to vector<2x8xf32>
    %662 = vector.broadcast %660 : vector<1x8xf32> to vector<2x8xf32>
    %663 = arith.mulf %661, %662 : vector<2x8xf32>
    %664 = vector.extract_strided_slice %588 {offsets = [0, 15], sizes = [2, 1], strides = [1, 1]} : vector<2x16xf32> to vector<2x1xf32>
    %665 = vector.extract_strided_slice %13 {offsets = [15, 0], sizes = [1, 8], strides = [1, 1]} : vector<16x8xf32> to vector<1x8xf32>
    %666 = vector.broadcast %664 : vector<2x1xf32> to vector<2x8xf32>
    %667 = vector.broadcast %665 : vector<1x8xf32> to vector<2x8xf32>
    %668 = arith.mulf %666, %667 : vector<2x8xf32>
    %669 = arith.addf %593, %598 : vector<2x8xf32>
    %670 = arith.addf %603, %608 : vector<2x8xf32>
    %671 = arith.addf %613, %618 : vector<2x8xf32>
    %672 = arith.addf %623, %628 : vector<2x8xf32>
    %673 = arith.addf %633, %638 : vector<2x8xf32>
    %674 = arith.addf %643, %648 : vector<2x8xf32>
    %675 = arith.addf %653, %658 : vector<2x8xf32>
    %676 = arith.addf %663, %668 : vector<2x8xf32>
    %677 = arith.addf %669, %670 : vector<2x8xf32>
    %678 = arith.addf %671, %672 : vector<2x8xf32>
    %679 = arith.addf %673, %674 : vector<2x8xf32>
    %680 = arith.addf %675, %676 : vector<2x8xf32>
    %681 = arith.addf %677, %678 : vector<2x8xf32>
    %682 = arith.addf %679, %680 : vector<2x8xf32>
    %683 = arith.addf %681, %682 : vector<2x8xf32>
    %684 = vector.broadcast %7 : vector<1x8xf32> to vector<2x8xf32>
    %685 = arith.addf %683, %684 : vector<2x8xf32>
    %686 = vector.extract_strided_slice %685 {offsets = [0, 0], sizes = [2, 4], strides = [1, 1]} : vector<2x8xf32> to vector<2x4xf32>
    %687 = arith.addf %562, %686 : vector<2x4xf32>
    %688 = vector.extract_strided_slice %685 {offsets = [0, 4], sizes = [2, 4], strides = [1, 1]} : vector<2x8xf32> to vector<2x4xf32>
    %689 = vector.extract_strided_slice %172 {offsets = [3, 0, 0], sizes = [1, 2, 4], strides = [1, 1, 1]} : vector<10x2x4xf32> to vector<1x2x4xf32>
    %690 = vector.shape_cast %689 : vector<1x2x4xf32> to vector<2x4xf32>
    %691 = arith.mulf %688, %690 : vector<2x4xf32>
    %692 = arith.addf %687, %691 : vector<2x4xf32>
    %693 = vector.extract_strided_slice %692 {offsets = [0, 0], sizes = [2, 1], strides = [1, 1]} : vector<2x4xf32> to vector<2x1xf32>
    %694 = vector.extract_strided_slice %11 {offsets = [0, 0], sizes = [1, 16], strides = [1, 1]} : vector<4x16xf32> to vector<1x16xf32>
    %695 = vector.broadcast %693 : vector<2x1xf32> to vector<2x16xf32>
    %696 = vector.broadcast %694 : vector<1x16xf32> to vector<2x16xf32>
    %697 = arith.mulf %695, %696 : vector<2x16xf32>
    %698 = vector.extract_strided_slice %692 {offsets = [0, 1], sizes = [2, 1], strides = [1, 1]} : vector<2x4xf32> to vector<2x1xf32>
    %699 = vector.extract_strided_slice %11 {offsets = [1, 0], sizes = [1, 16], strides = [1, 1]} : vector<4x16xf32> to vector<1x16xf32>
    %700 = vector.broadcast %698 : vector<2x1xf32> to vector<2x16xf32>
    %701 = vector.broadcast %699 : vector<1x16xf32> to vector<2x16xf32>
    %702 = arith.mulf %700, %701 : vector<2x16xf32>
    %703 = vector.extract_strided_slice %692 {offsets = [0, 2], sizes = [2, 1], strides = [1, 1]} : vector<2x4xf32> to vector<2x1xf32>
    %704 = vector.extract_strided_slice %11 {offsets = [2, 0], sizes = [1, 16], strides = [1, 1]} : vector<4x16xf32> to vector<1x16xf32>
    %705 = vector.broadcast %703 : vector<2x1xf32> to vector<2x16xf32>
    %706 = vector.broadcast %704 : vector<1x16xf32> to vector<2x16xf32>
    %707 = arith.mulf %705, %706 : vector<2x16xf32>
    %708 = vector.extract_strided_slice %692 {offsets = [0, 3], sizes = [2, 1], strides = [1, 1]} : vector<2x4xf32> to vector<2x1xf32>
    %709 = vector.extract_strided_slice %11 {offsets = [3, 0], sizes = [1, 16], strides = [1, 1]} : vector<4x16xf32> to vector<1x16xf32>
    %710 = vector.broadcast %708 : vector<2x1xf32> to vector<2x16xf32>
    %711 = vector.broadcast %709 : vector<1x16xf32> to vector<2x16xf32>
    %712 = arith.mulf %710, %711 : vector<2x16xf32>
    %713 = arith.addf %697, %702 : vector<2x16xf32>
    %714 = arith.addf %707, %712 : vector<2x16xf32>
    %715 = arith.addf %713, %714 : vector<2x16xf32>
    %716 = vector.broadcast %5 : vector<1x16xf32> to vector<2x16xf32>
    %717 = arith.addf %715, %716 : vector<2x16xf32>
    %718 = math.tanh %717 : vector<2x16xf32>
    %719 = vector.extract_strided_slice %718 {offsets = [0, 0], sizes = [2, 1], strides = [1, 1]} : vector<2x16xf32> to vector<2x1xf32>
    %720 = vector.extract_strided_slice %13 {offsets = [0, 0], sizes = [1, 8], strides = [1, 1]} : vector<16x8xf32> to vector<1x8xf32>
    %721 = vector.broadcast %719 : vector<2x1xf32> to vector<2x8xf32>
    %722 = vector.broadcast %720 : vector<1x8xf32> to vector<2x8xf32>
    %723 = arith.mulf %721, %722 : vector<2x8xf32>
    %724 = vector.extract_strided_slice %718 {offsets = [0, 1], sizes = [2, 1], strides = [1, 1]} : vector<2x16xf32> to vector<2x1xf32>
    %725 = vector.extract_strided_slice %13 {offsets = [1, 0], sizes = [1, 8], strides = [1, 1]} : vector<16x8xf32> to vector<1x8xf32>
    %726 = vector.broadcast %724 : vector<2x1xf32> to vector<2x8xf32>
    %727 = vector.broadcast %725 : vector<1x8xf32> to vector<2x8xf32>
    %728 = arith.mulf %726, %727 : vector<2x8xf32>
    %729 = vector.extract_strided_slice %718 {offsets = [0, 2], sizes = [2, 1], strides = [1, 1]} : vector<2x16xf32> to vector<2x1xf32>
    %730 = vector.extract_strided_slice %13 {offsets = [2, 0], sizes = [1, 8], strides = [1, 1]} : vector<16x8xf32> to vector<1x8xf32>
    %731 = vector.broadcast %729 : vector<2x1xf32> to vector<2x8xf32>
    %732 = vector.broadcast %730 : vector<1x8xf32> to vector<2x8xf32>
    %733 = arith.mulf %731, %732 : vector<2x8xf32>
    %734 = vector.extract_strided_slice %718 {offsets = [0, 3], sizes = [2, 1], strides = [1, 1]} : vector<2x16xf32> to vector<2x1xf32>
    %735 = vector.extract_strided_slice %13 {offsets = [3, 0], sizes = [1, 8], strides = [1, 1]} : vector<16x8xf32> to vector<1x8xf32>
    %736 = vector.broadcast %734 : vector<2x1xf32> to vector<2x8xf32>
    %737 = vector.broadcast %735 : vector<1x8xf32> to vector<2x8xf32>
    %738 = arith.mulf %736, %737 : vector<2x8xf32>
    %739 = vector.extract_strided_slice %718 {offsets = [0, 4], sizes = [2, 1], strides = [1, 1]} : vector<2x16xf32> to vector<2x1xf32>
    %740 = vector.extract_strided_slice %13 {offsets = [4, 0], sizes = [1, 8], strides = [1, 1]} : vector<16x8xf32> to vector<1x8xf32>
    %741 = vector.broadcast %739 : vector<2x1xf32> to vector<2x8xf32>
    %742 = vector.broadcast %740 : vector<1x8xf32> to vector<2x8xf32>
    %743 = arith.mulf %741, %742 : vector<2x8xf32>
    %744 = vector.extract_strided_slice %718 {offsets = [0, 5], sizes = [2, 1], strides = [1, 1]} : vector<2x16xf32> to vector<2x1xf32>
    %745 = vector.extract_strided_slice %13 {offsets = [5, 0], sizes = [1, 8], strides = [1, 1]} : vector<16x8xf32> to vector<1x8xf32>
    %746 = vector.broadcast %744 : vector<2x1xf32> to vector<2x8xf32>
    %747 = vector.broadcast %745 : vector<1x8xf32> to vector<2x8xf32>
    %748 = arith.mulf %746, %747 : vector<2x8xf32>
    %749 = vector.extract_strided_slice %718 {offsets = [0, 6], sizes = [2, 1], strides = [1, 1]} : vector<2x16xf32> to vector<2x1xf32>
    %750 = vector.extract_strided_slice %13 {offsets = [6, 0], sizes = [1, 8], strides = [1, 1]} : vector<16x8xf32> to vector<1x8xf32>
    %751 = vector.broadcast %749 : vector<2x1xf32> to vector<2x8xf32>
    %752 = vector.broadcast %750 : vector<1x8xf32> to vector<2x8xf32>
    %753 = arith.mulf %751, %752 : vector<2x8xf32>
    %754 = vector.extract_strided_slice %718 {offsets = [0, 7], sizes = [2, 1], strides = [1, 1]} : vector<2x16xf32> to vector<2x1xf32>
    %755 = vector.extract_strided_slice %13 {offsets = [7, 0], sizes = [1, 8], strides = [1, 1]} : vector<16x8xf32> to vector<1x8xf32>
    %756 = vector.broadcast %754 : vector<2x1xf32> to vector<2x8xf32>
    %757 = vector.broadcast %755 : vector<1x8xf32> to vector<2x8xf32>
    %758 = arith.mulf %756, %757 : vector<2x8xf32>
    %759 = vector.extract_strided_slice %718 {offsets = [0, 8], sizes = [2, 1], strides = [1, 1]} : vector<2x16xf32> to vector<2x1xf32>
    %760 = vector.extract_strided_slice %13 {offsets = [8, 0], sizes = [1, 8], strides = [1, 1]} : vector<16x8xf32> to vector<1x8xf32>
    %761 = vector.broadcast %759 : vector<2x1xf32> to vector<2x8xf32>
    %762 = vector.broadcast %760 : vector<1x8xf32> to vector<2x8xf32>
    %763 = arith.mulf %761, %762 : vector<2x8xf32>
    %764 = vector.extract_strided_slice %718 {offsets = [0, 9], sizes = [2, 1], strides = [1, 1]} : vector<2x16xf32> to vector<2x1xf32>
    %765 = vector.extract_strided_slice %13 {offsets = [9, 0], sizes = [1, 8], strides = [1, 1]} : vector<16x8xf32> to vector<1x8xf32>
    %766 = vector.broadcast %764 : vector<2x1xf32> to vector<2x8xf32>
    %767 = vector.broadcast %765 : vector<1x8xf32> to vector<2x8xf32>
    %768 = arith.mulf %766, %767 : vector<2x8xf32>
    %769 = vector.extract_strided_slice %718 {offsets = [0, 10], sizes = [2, 1], strides = [1, 1]} : vector<2x16xf32> to vector<2x1xf32>
    %770 = vector.extract_strided_slice %13 {offsets = [10, 0], sizes = [1, 8], strides = [1, 1]} : vector<16x8xf32> to vector<1x8xf32>
    %771 = vector.broadcast %769 : vector<2x1xf32> to vector<2x8xf32>
    %772 = vector.broadcast %770 : vector<1x8xf32> to vector<2x8xf32>
    %773 = arith.mulf %771, %772 : vector<2x8xf32>
    %774 = vector.extract_strided_slice %718 {offsets = [0, 11], sizes = [2, 1], strides = [1, 1]} : vector<2x16xf32> to vector<2x1xf32>
    %775 = vector.extract_strided_slice %13 {offsets = [11, 0], sizes = [1, 8], strides = [1, 1]} : vector<16x8xf32> to vector<1x8xf32>
    %776 = vector.broadcast %774 : vector<2x1xf32> to vector<2x8xf32>
    %777 = vector.broadcast %775 : vector<1x8xf32> to vector<2x8xf32>
    %778 = arith.mulf %776, %777 : vector<2x8xf32>
    %779 = vector.extract_strided_slice %718 {offsets = [0, 12], sizes = [2, 1], strides = [1, 1]} : vector<2x16xf32> to vector<2x1xf32>
    %780 = vector.extract_strided_slice %13 {offsets = [12, 0], sizes = [1, 8], strides = [1, 1]} : vector<16x8xf32> to vector<1x8xf32>
    %781 = vector.broadcast %779 : vector<2x1xf32> to vector<2x8xf32>
    %782 = vector.broadcast %780 : vector<1x8xf32> to vector<2x8xf32>
    %783 = arith.mulf %781, %782 : vector<2x8xf32>
    %784 = vector.extract_strided_slice %718 {offsets = [0, 13], sizes = [2, 1], strides = [1, 1]} : vector<2x16xf32> to vector<2x1xf32>
    %785 = vector.extract_strided_slice %13 {offsets = [13, 0], sizes = [1, 8], strides = [1, 1]} : vector<16x8xf32> to vector<1x8xf32>
    %786 = vector.broadcast %784 : vector<2x1xf32> to vector<2x8xf32>
    %787 = vector.broadcast %785 : vector<1x8xf32> to vector<2x8xf32>
    %788 = arith.mulf %786, %787 : vector<2x8xf32>
    %789 = vector.extract_strided_slice %718 {offsets = [0, 14], sizes = [2, 1], strides = [1, 1]} : vector<2x16xf32> to vector<2x1xf32>
    %790 = vector.extract_strided_slice %13 {offsets = [14, 0], sizes = [1, 8], strides = [1, 1]} : vector<16x8xf32> to vector<1x8xf32>
    %791 = vector.broadcast %789 : vector<2x1xf32> to vector<2x8xf32>
    %792 = vector.broadcast %790 : vector<1x8xf32> to vector<2x8xf32>
    %793 = arith.mulf %791, %792 : vector<2x8xf32>
    %794 = vector.extract_strided_slice %718 {offsets = [0, 15], sizes = [2, 1], strides = [1, 1]} : vector<2x16xf32> to vector<2x1xf32>
    %795 = vector.extract_strided_slice %13 {offsets = [15, 0], sizes = [1, 8], strides = [1, 1]} : vector<16x8xf32> to vector<1x8xf32>
    %796 = vector.broadcast %794 : vector<2x1xf32> to vector<2x8xf32>
    %797 = vector.broadcast %795 : vector<1x8xf32> to vector<2x8xf32>
    %798 = arith.mulf %796, %797 : vector<2x8xf32>
    %799 = arith.addf %723, %728 : vector<2x8xf32>
    %800 = arith.addf %733, %738 : vector<2x8xf32>
    %801 = arith.addf %743, %748 : vector<2x8xf32>
    %802 = arith.addf %753, %758 : vector<2x8xf32>
    %803 = arith.addf %763, %768 : vector<2x8xf32>
    %804 = arith.addf %773, %778 : vector<2x8xf32>
    %805 = arith.addf %783, %788 : vector<2x8xf32>
    %806 = arith.addf %793, %798 : vector<2x8xf32>
    %807 = arith.addf %799, %800 : vector<2x8xf32>
    %808 = arith.addf %801, %802 : vector<2x8xf32>
    %809 = arith.addf %803, %804 : vector<2x8xf32>
    %810 = arith.addf %805, %806 : vector<2x8xf32>
    %811 = arith.addf %807, %808 : vector<2x8xf32>
    %812 = arith.addf %809, %810 : vector<2x8xf32>
    %813 = arith.addf %811, %812 : vector<2x8xf32>
    %814 = vector.broadcast %7 : vector<1x8xf32> to vector<2x8xf32>
    %815 = arith.addf %813, %814 : vector<2x8xf32>
    %816 = vector.extract_strided_slice %815 {offsets = [0, 0], sizes = [2, 4], strides = [1, 1]} : vector<2x8xf32> to vector<2x4xf32>
    %817 = arith.addf %692, %816 : vector<2x4xf32>
    %818 = vector.extract_strided_slice %815 {offsets = [0, 4], sizes = [2, 4], strides = [1, 1]} : vector<2x8xf32> to vector<2x4xf32>
    %819 = vector.extract_strided_slice %172 {offsets = [4, 0, 0], sizes = [1, 2, 4], strides = [1, 1, 1]} : vector<10x2x4xf32> to vector<1x2x4xf32>
    %820 = vector.shape_cast %819 : vector<1x2x4xf32> to vector<2x4xf32>
    %821 = arith.mulf %818, %820 : vector<2x4xf32>
    %822 = arith.addf %817, %821 : vector<2x4xf32>
    %823 = vector.extract_strided_slice %822 {offsets = [0, 0], sizes = [2, 1], strides = [1, 1]} : vector<2x4xf32> to vector<2x1xf32>
    %824 = vector.extract_strided_slice %11 {offsets = [0, 0], sizes = [1, 16], strides = [1, 1]} : vector<4x16xf32> to vector<1x16xf32>
    %825 = vector.broadcast %823 : vector<2x1xf32> to vector<2x16xf32>
    %826 = vector.broadcast %824 : vector<1x16xf32> to vector<2x16xf32>
    %827 = arith.mulf %825, %826 : vector<2x16xf32>
    %828 = vector.extract_strided_slice %822 {offsets = [0, 1], sizes = [2, 1], strides = [1, 1]} : vector<2x4xf32> to vector<2x1xf32>
    %829 = vector.extract_strided_slice %11 {offsets = [1, 0], sizes = [1, 16], strides = [1, 1]} : vector<4x16xf32> to vector<1x16xf32>
    %830 = vector.broadcast %828 : vector<2x1xf32> to vector<2x16xf32>
    %831 = vector.broadcast %829 : vector<1x16xf32> to vector<2x16xf32>
    %832 = arith.mulf %830, %831 : vector<2x16xf32>
    %833 = vector.extract_strided_slice %822 {offsets = [0, 2], sizes = [2, 1], strides = [1, 1]} : vector<2x4xf32> to vector<2x1xf32>
    %834 = vector.extract_strided_slice %11 {offsets = [2, 0], sizes = [1, 16], strides = [1, 1]} : vector<4x16xf32> to vector<1x16xf32>
    %835 = vector.broadcast %833 : vector<2x1xf32> to vector<2x16xf32>
    %836 = vector.broadcast %834 : vector<1x16xf32> to vector<2x16xf32>
    %837 = arith.mulf %835, %836 : vector<2x16xf32>
    %838 = vector.extract_strided_slice %822 {offsets = [0, 3], sizes = [2, 1], strides = [1, 1]} : vector<2x4xf32> to vector<2x1xf32>
    %839 = vector.extract_strided_slice %11 {offsets = [3, 0], sizes = [1, 16], strides = [1, 1]} : vector<4x16xf32> to vector<1x16xf32>
    %840 = vector.broadcast %838 : vector<2x1xf32> to vector<2x16xf32>
    %841 = vector.broadcast %839 : vector<1x16xf32> to vector<2x16xf32>
    %842 = arith.mulf %840, %841 : vector<2x16xf32>
    %843 = arith.addf %827, %832 : vector<2x16xf32>
    %844 = arith.addf %837, %842 : vector<2x16xf32>
    %845 = arith.addf %843, %844 : vector<2x16xf32>
    %846 = vector.broadcast %5 : vector<1x16xf32> to vector<2x16xf32>
    %847 = arith.addf %845, %846 : vector<2x16xf32>
    %848 = math.tanh %847 : vector<2x16xf32>
    %849 = vector.extract_strided_slice %848 {offsets = [0, 0], sizes = [2, 1], strides = [1, 1]} : vector<2x16xf32> to vector<2x1xf32>
    %850 = vector.extract_strided_slice %13 {offsets = [0, 0], sizes = [1, 8], strides = [1, 1]} : vector<16x8xf32> to vector<1x8xf32>
    %851 = vector.broadcast %849 : vector<2x1xf32> to vector<2x8xf32>
    %852 = vector.broadcast %850 : vector<1x8xf32> to vector<2x8xf32>
    %853 = arith.mulf %851, %852 : vector<2x8xf32>
    %854 = vector.extract_strided_slice %848 {offsets = [0, 1], sizes = [2, 1], strides = [1, 1]} : vector<2x16xf32> to vector<2x1xf32>
    %855 = vector.extract_strided_slice %13 {offsets = [1, 0], sizes = [1, 8], strides = [1, 1]} : vector<16x8xf32> to vector<1x8xf32>
    %856 = vector.broadcast %854 : vector<2x1xf32> to vector<2x8xf32>
    %857 = vector.broadcast %855 : vector<1x8xf32> to vector<2x8xf32>
    %858 = arith.mulf %856, %857 : vector<2x8xf32>
    %859 = vector.extract_strided_slice %848 {offsets = [0, 2], sizes = [2, 1], strides = [1, 1]} : vector<2x16xf32> to vector<2x1xf32>
    %860 = vector.extract_strided_slice %13 {offsets = [2, 0], sizes = [1, 8], strides = [1, 1]} : vector<16x8xf32> to vector<1x8xf32>
    %861 = vector.broadcast %859 : vector<2x1xf32> to vector<2x8xf32>
    %862 = vector.broadcast %860 : vector<1x8xf32> to vector<2x8xf32>
    %863 = arith.mulf %861, %862 : vector<2x8xf32>
    %864 = vector.extract_strided_slice %848 {offsets = [0, 3], sizes = [2, 1], strides = [1, 1]} : vector<2x16xf32> to vector<2x1xf32>
    %865 = vector.extract_strided_slice %13 {offsets = [3, 0], sizes = [1, 8], strides = [1, 1]} : vector<16x8xf32> to vector<1x8xf32>
    %866 = vector.broadcast %864 : vector<2x1xf32> to vector<2x8xf32>
    %867 = vector.broadcast %865 : vector<1x8xf32> to vector<2x8xf32>
    %868 = arith.mulf %866, %867 : vector<2x8xf32>
    %869 = vector.extract_strided_slice %848 {offsets = [0, 4], sizes = [2, 1], strides = [1, 1]} : vector<2x16xf32> to vector<2x1xf32>
    %870 = vector.extract_strided_slice %13 {offsets = [4, 0], sizes = [1, 8], strides = [1, 1]} : vector<16x8xf32> to vector<1x8xf32>
    %871 = vector.broadcast %869 : vector<2x1xf32> to vector<2x8xf32>
    %872 = vector.broadcast %870 : vector<1x8xf32> to vector<2x8xf32>
    %873 = arith.mulf %871, %872 : vector<2x8xf32>
    %874 = vector.extract_strided_slice %848 {offsets = [0, 5], sizes = [2, 1], strides = [1, 1]} : vector<2x16xf32> to vector<2x1xf32>
    %875 = vector.extract_strided_slice %13 {offsets = [5, 0], sizes = [1, 8], strides = [1, 1]} : vector<16x8xf32> to vector<1x8xf32>
    %876 = vector.broadcast %874 : vector<2x1xf32> to vector<2x8xf32>
    %877 = vector.broadcast %875 : vector<1x8xf32> to vector<2x8xf32>
    %878 = arith.mulf %876, %877 : vector<2x8xf32>
    %879 = vector.extract_strided_slice %848 {offsets = [0, 6], sizes = [2, 1], strides = [1, 1]} : vector<2x16xf32> to vector<2x1xf32>
    %880 = vector.extract_strided_slice %13 {offsets = [6, 0], sizes = [1, 8], strides = [1, 1]} : vector<16x8xf32> to vector<1x8xf32>
    %881 = vector.broadcast %879 : vector<2x1xf32> to vector<2x8xf32>
    %882 = vector.broadcast %880 : vector<1x8xf32> to vector<2x8xf32>
    %883 = arith.mulf %881, %882 : vector<2x8xf32>
    %884 = vector.extract_strided_slice %848 {offsets = [0, 7], sizes = [2, 1], strides = [1, 1]} : vector<2x16xf32> to vector<2x1xf32>
    %885 = vector.extract_strided_slice %13 {offsets = [7, 0], sizes = [1, 8], strides = [1, 1]} : vector<16x8xf32> to vector<1x8xf32>
    %886 = vector.broadcast %884 : vector<2x1xf32> to vector<2x8xf32>
    %887 = vector.broadcast %885 : vector<1x8xf32> to vector<2x8xf32>
    %888 = arith.mulf %886, %887 : vector<2x8xf32>
    %889 = vector.extract_strided_slice %848 {offsets = [0, 8], sizes = [2, 1], strides = [1, 1]} : vector<2x16xf32> to vector<2x1xf32>
    %890 = vector.extract_strided_slice %13 {offsets = [8, 0], sizes = [1, 8], strides = [1, 1]} : vector<16x8xf32> to vector<1x8xf32>
    %891 = vector.broadcast %889 : vector<2x1xf32> to vector<2x8xf32>
    %892 = vector.broadcast %890 : vector<1x8xf32> to vector<2x8xf32>
    %893 = arith.mulf %891, %892 : vector<2x8xf32>
    %894 = vector.extract_strided_slice %848 {offsets = [0, 9], sizes = [2, 1], strides = [1, 1]} : vector<2x16xf32> to vector<2x1xf32>
    %895 = vector.extract_strided_slice %13 {offsets = [9, 0], sizes = [1, 8], strides = [1, 1]} : vector<16x8xf32> to vector<1x8xf32>
    %896 = vector.broadcast %894 : vector<2x1xf32> to vector<2x8xf32>
    %897 = vector.broadcast %895 : vector<1x8xf32> to vector<2x8xf32>
    %898 = arith.mulf %896, %897 : vector<2x8xf32>
    %899 = vector.extract_strided_slice %848 {offsets = [0, 10], sizes = [2, 1], strides = [1, 1]} : vector<2x16xf32> to vector<2x1xf32>
    %900 = vector.extract_strided_slice %13 {offsets = [10, 0], sizes = [1, 8], strides = [1, 1]} : vector<16x8xf32> to vector<1x8xf32>
    %901 = vector.broadcast %899 : vector<2x1xf32> to vector<2x8xf32>
    %902 = vector.broadcast %900 : vector<1x8xf32> to vector<2x8xf32>
    %903 = arith.mulf %901, %902 : vector<2x8xf32>
    %904 = vector.extract_strided_slice %848 {offsets = [0, 11], sizes = [2, 1], strides = [1, 1]} : vector<2x16xf32> to vector<2x1xf32>
    %905 = vector.extract_strided_slice %13 {offsets = [11, 0], sizes = [1, 8], strides = [1, 1]} : vector<16x8xf32> to vector<1x8xf32>
    %906 = vector.broadcast %904 : vector<2x1xf32> to vector<2x8xf32>
    %907 = vector.broadcast %905 : vector<1x8xf32> to vector<2x8xf32>
    %908 = arith.mulf %906, %907 : vector<2x8xf32>
    %909 = vector.extract_strided_slice %848 {offsets = [0, 12], sizes = [2, 1], strides = [1, 1]} : vector<2x16xf32> to vector<2x1xf32>
    %910 = vector.extract_strided_slice %13 {offsets = [12, 0], sizes = [1, 8], strides = [1, 1]} : vector<16x8xf32> to vector<1x8xf32>
    %911 = vector.broadcast %909 : vector<2x1xf32> to vector<2x8xf32>
    %912 = vector.broadcast %910 : vector<1x8xf32> to vector<2x8xf32>
    %913 = arith.mulf %911, %912 : vector<2x8xf32>
    %914 = vector.extract_strided_slice %848 {offsets = [0, 13], sizes = [2, 1], strides = [1, 1]} : vector<2x16xf32> to vector<2x1xf32>
    %915 = vector.extract_strided_slice %13 {offsets = [13, 0], sizes = [1, 8], strides = [1, 1]} : vector<16x8xf32> to vector<1x8xf32>
    %916 = vector.broadcast %914 : vector<2x1xf32> to vector<2x8xf32>
    %917 = vector.broadcast %915 : vector<1x8xf32> to vector<2x8xf32>
    %918 = arith.mulf %916, %917 : vector<2x8xf32>
    %919 = vector.extract_strided_slice %848 {offsets = [0, 14], sizes = [2, 1], strides = [1, 1]} : vector<2x16xf32> to vector<2x1xf32>
    %920 = vector.extract_strided_slice %13 {offsets = [14, 0], sizes = [1, 8], strides = [1, 1]} : vector<16x8xf32> to vector<1x8xf32>
    %921 = vector.broadcast %919 : vector<2x1xf32> to vector<2x8xf32>
    %922 = vector.broadcast %920 : vector<1x8xf32> to vector<2x8xf32>
    %923 = arith.mulf %921, %922 : vector<2x8xf32>
    %924 = vector.extract_strided_slice %848 {offsets = [0, 15], sizes = [2, 1], strides = [1, 1]} : vector<2x16xf32> to vector<2x1xf32>
    %925 = vector.extract_strided_slice %13 {offsets = [15, 0], sizes = [1, 8], strides = [1, 1]} : vector<16x8xf32> to vector<1x8xf32>
    %926 = vector.broadcast %924 : vector<2x1xf32> to vector<2x8xf32>
    %927 = vector.broadcast %925 : vector<1x8xf32> to vector<2x8xf32>
    %928 = arith.mulf %926, %927 : vector<2x8xf32>
    %929 = arith.addf %853, %858 : vector<2x8xf32>
    %930 = arith.addf %863, %868 : vector<2x8xf32>
    %931 = arith.addf %873, %878 : vector<2x8xf32>
    %932 = arith.addf %883, %888 : vector<2x8xf32>
    %933 = arith.addf %893, %898 : vector<2x8xf32>
    %934 = arith.addf %903, %908 : vector<2x8xf32>
    %935 = arith.addf %913, %918 : vector<2x8xf32>
    %936 = arith.addf %923, %928 : vector<2x8xf32>
    %937 = arith.addf %929, %930 : vector<2x8xf32>
    %938 = arith.addf %931, %932 : vector<2x8xf32>
    %939 = arith.addf %933, %934 : vector<2x8xf32>
    %940 = arith.addf %935, %936 : vector<2x8xf32>
    %941 = arith.addf %937, %938 : vector<2x8xf32>
    %942 = arith.addf %939, %940 : vector<2x8xf32>
    %943 = arith.addf %941, %942 : vector<2x8xf32>
    %944 = vector.broadcast %7 : vector<1x8xf32> to vector<2x8xf32>
    %945 = arith.addf %943, %944 : vector<2x8xf32>
    %946 = vector.extract_strided_slice %945 {offsets = [0, 0], sizes = [2, 4], strides = [1, 1]} : vector<2x8xf32> to vector<2x4xf32>
    %947 = arith.addf %822, %946 : vector<2x4xf32>
    %948 = vector.extract_strided_slice %945 {offsets = [0, 4], sizes = [2, 4], strides = [1, 1]} : vector<2x8xf32> to vector<2x4xf32>
    %949 = vector.extract_strided_slice %172 {offsets = [5, 0, 0], sizes = [1, 2, 4], strides = [1, 1, 1]} : vector<10x2x4xf32> to vector<1x2x4xf32>
    %950 = vector.shape_cast %949 : vector<1x2x4xf32> to vector<2x4xf32>
    %951 = arith.mulf %948, %950 : vector<2x4xf32>
    %952 = arith.addf %947, %951 : vector<2x4xf32>
    %953 = vector.extract_strided_slice %952 {offsets = [0, 0], sizes = [2, 1], strides = [1, 1]} : vector<2x4xf32> to vector<2x1xf32>
    %954 = vector.extract_strided_slice %11 {offsets = [0, 0], sizes = [1, 16], strides = [1, 1]} : vector<4x16xf32> to vector<1x16xf32>
    %955 = vector.broadcast %953 : vector<2x1xf32> to vector<2x16xf32>
    %956 = vector.broadcast %954 : vector<1x16xf32> to vector<2x16xf32>
    %957 = arith.mulf %955, %956 : vector<2x16xf32>
    %958 = vector.extract_strided_slice %952 {offsets = [0, 1], sizes = [2, 1], strides = [1, 1]} : vector<2x4xf32> to vector<2x1xf32>
    %959 = vector.extract_strided_slice %11 {offsets = [1, 0], sizes = [1, 16], strides = [1, 1]} : vector<4x16xf32> to vector<1x16xf32>
    %960 = vector.broadcast %958 : vector<2x1xf32> to vector<2x16xf32>
    %961 = vector.broadcast %959 : vector<1x16xf32> to vector<2x16xf32>
    %962 = arith.mulf %960, %961 : vector<2x16xf32>
    %963 = vector.extract_strided_slice %952 {offsets = [0, 2], sizes = [2, 1], strides = [1, 1]} : vector<2x4xf32> to vector<2x1xf32>
    %964 = vector.extract_strided_slice %11 {offsets = [2, 0], sizes = [1, 16], strides = [1, 1]} : vector<4x16xf32> to vector<1x16xf32>
    %965 = vector.broadcast %963 : vector<2x1xf32> to vector<2x16xf32>
    %966 = vector.broadcast %964 : vector<1x16xf32> to vector<2x16xf32>
    %967 = arith.mulf %965, %966 : vector<2x16xf32>
    %968 = vector.extract_strided_slice %952 {offsets = [0, 3], sizes = [2, 1], strides = [1, 1]} : vector<2x4xf32> to vector<2x1xf32>
    %969 = vector.extract_strided_slice %11 {offsets = [3, 0], sizes = [1, 16], strides = [1, 1]} : vector<4x16xf32> to vector<1x16xf32>
    %970 = vector.broadcast %968 : vector<2x1xf32> to vector<2x16xf32>
    %971 = vector.broadcast %969 : vector<1x16xf32> to vector<2x16xf32>
    %972 = arith.mulf %970, %971 : vector<2x16xf32>
    %973 = arith.addf %957, %962 : vector<2x16xf32>
    %974 = arith.addf %967, %972 : vector<2x16xf32>
    %975 = arith.addf %973, %974 : vector<2x16xf32>
    %976 = vector.broadcast %5 : vector<1x16xf32> to vector<2x16xf32>
    %977 = arith.addf %975, %976 : vector<2x16xf32>
    %978 = math.tanh %977 : vector<2x16xf32>
    %979 = vector.extract_strided_slice %978 {offsets = [0, 0], sizes = [2, 1], strides = [1, 1]} : vector<2x16xf32> to vector<2x1xf32>
    %980 = vector.extract_strided_slice %13 {offsets = [0, 0], sizes = [1, 8], strides = [1, 1]} : vector<16x8xf32> to vector<1x8xf32>
    %981 = vector.broadcast %979 : vector<2x1xf32> to vector<2x8xf32>
    %982 = vector.broadcast %980 : vector<1x8xf32> to vector<2x8xf32>
    %983 = arith.mulf %981, %982 : vector<2x8xf32>
    %984 = vector.extract_strided_slice %978 {offsets = [0, 1], sizes = [2, 1], strides = [1, 1]} : vector<2x16xf32> to vector<2x1xf32>
    %985 = vector.extract_strided_slice %13 {offsets = [1, 0], sizes = [1, 8], strides = [1, 1]} : vector<16x8xf32> to vector<1x8xf32>
    %986 = vector.broadcast %984 : vector<2x1xf32> to vector<2x8xf32>
    %987 = vector.broadcast %985 : vector<1x8xf32> to vector<2x8xf32>
    %988 = arith.mulf %986, %987 : vector<2x8xf32>
    %989 = vector.extract_strided_slice %978 {offsets = [0, 2], sizes = [2, 1], strides = [1, 1]} : vector<2x16xf32> to vector<2x1xf32>
    %990 = vector.extract_strided_slice %13 {offsets = [2, 0], sizes = [1, 8], strides = [1, 1]} : vector<16x8xf32> to vector<1x8xf32>
    %991 = vector.broadcast %989 : vector<2x1xf32> to vector<2x8xf32>
    %992 = vector.broadcast %990 : vector<1x8xf32> to vector<2x8xf32>
    %993 = arith.mulf %991, %992 : vector<2x8xf32>
    %994 = vector.extract_strided_slice %978 {offsets = [0, 3], sizes = [2, 1], strides = [1, 1]} : vector<2x16xf32> to vector<2x1xf32>
    %995 = vector.extract_strided_slice %13 {offsets = [3, 0], sizes = [1, 8], strides = [1, 1]} : vector<16x8xf32> to vector<1x8xf32>
    %996 = vector.broadcast %994 : vector<2x1xf32> to vector<2x8xf32>
    %997 = vector.broadcast %995 : vector<1x8xf32> to vector<2x8xf32>
    %998 = arith.mulf %996, %997 : vector<2x8xf32>
    %999 = vector.extract_strided_slice %978 {offsets = [0, 4], sizes = [2, 1], strides = [1, 1]} : vector<2x16xf32> to vector<2x1xf32>
    %1000 = vector.extract_strided_slice %13 {offsets = [4, 0], sizes = [1, 8], strides = [1, 1]} : vector<16x8xf32> to vector<1x8xf32>
    %1001 = vector.broadcast %999 : vector<2x1xf32> to vector<2x8xf32>
    %1002 = vector.broadcast %1000 : vector<1x8xf32> to vector<2x8xf32>
    %1003 = arith.mulf %1001, %1002 : vector<2x8xf32>
    %1004 = vector.extract_strided_slice %978 {offsets = [0, 5], sizes = [2, 1], strides = [1, 1]} : vector<2x16xf32> to vector<2x1xf32>
    %1005 = vector.extract_strided_slice %13 {offsets = [5, 0], sizes = [1, 8], strides = [1, 1]} : vector<16x8xf32> to vector<1x8xf32>
    %1006 = vector.broadcast %1004 : vector<2x1xf32> to vector<2x8xf32>
    %1007 = vector.broadcast %1005 : vector<1x8xf32> to vector<2x8xf32>
    %1008 = arith.mulf %1006, %1007 : vector<2x8xf32>
    %1009 = vector.extract_strided_slice %978 {offsets = [0, 6], sizes = [2, 1], strides = [1, 1]} : vector<2x16xf32> to vector<2x1xf32>
    %1010 = vector.extract_strided_slice %13 {offsets = [6, 0], sizes = [1, 8], strides = [1, 1]} : vector<16x8xf32> to vector<1x8xf32>
    %1011 = vector.broadcast %1009 : vector<2x1xf32> to vector<2x8xf32>
    %1012 = vector.broadcast %1010 : vector<1x8xf32> to vector<2x8xf32>
    %1013 = arith.mulf %1011, %1012 : vector<2x8xf32>
    %1014 = vector.extract_strided_slice %978 {offsets = [0, 7], sizes = [2, 1], strides = [1, 1]} : vector<2x16xf32> to vector<2x1xf32>
    %1015 = vector.extract_strided_slice %13 {offsets = [7, 0], sizes = [1, 8], strides = [1, 1]} : vector<16x8xf32> to vector<1x8xf32>
    %1016 = vector.broadcast %1014 : vector<2x1xf32> to vector<2x8xf32>
    %1017 = vector.broadcast %1015 : vector<1x8xf32> to vector<2x8xf32>
    %1018 = arith.mulf %1016, %1017 : vector<2x8xf32>
    %1019 = vector.extract_strided_slice %978 {offsets = [0, 8], sizes = [2, 1], strides = [1, 1]} : vector<2x16xf32> to vector<2x1xf32>
    %1020 = vector.extract_strided_slice %13 {offsets = [8, 0], sizes = [1, 8], strides = [1, 1]} : vector<16x8xf32> to vector<1x8xf32>
    %1021 = vector.broadcast %1019 : vector<2x1xf32> to vector<2x8xf32>
    %1022 = vector.broadcast %1020 : vector<1x8xf32> to vector<2x8xf32>
    %1023 = arith.mulf %1021, %1022 : vector<2x8xf32>
    %1024 = vector.extract_strided_slice %978 {offsets = [0, 9], sizes = [2, 1], strides = [1, 1]} : vector<2x16xf32> to vector<2x1xf32>
    %1025 = vector.extract_strided_slice %13 {offsets = [9, 0], sizes = [1, 8], strides = [1, 1]} : vector<16x8xf32> to vector<1x8xf32>
    %1026 = vector.broadcast %1024 : vector<2x1xf32> to vector<2x8xf32>
    %1027 = vector.broadcast %1025 : vector<1x8xf32> to vector<2x8xf32>
    %1028 = arith.mulf %1026, %1027 : vector<2x8xf32>
    %1029 = vector.extract_strided_slice %978 {offsets = [0, 10], sizes = [2, 1], strides = [1, 1]} : vector<2x16xf32> to vector<2x1xf32>
    %1030 = vector.extract_strided_slice %13 {offsets = [10, 0], sizes = [1, 8], strides = [1, 1]} : vector<16x8xf32> to vector<1x8xf32>
    %1031 = vector.broadcast %1029 : vector<2x1xf32> to vector<2x8xf32>
    %1032 = vector.broadcast %1030 : vector<1x8xf32> to vector<2x8xf32>
    %1033 = arith.mulf %1031, %1032 : vector<2x8xf32>
    %1034 = vector.extract_strided_slice %978 {offsets = [0, 11], sizes = [2, 1], strides = [1, 1]} : vector<2x16xf32> to vector<2x1xf32>
    %1035 = vector.extract_strided_slice %13 {offsets = [11, 0], sizes = [1, 8], strides = [1, 1]} : vector<16x8xf32> to vector<1x8xf32>
    %1036 = vector.broadcast %1034 : vector<2x1xf32> to vector<2x8xf32>
    %1037 = vector.broadcast %1035 : vector<1x8xf32> to vector<2x8xf32>
    %1038 = arith.mulf %1036, %1037 : vector<2x8xf32>
    %1039 = vector.extract_strided_slice %978 {offsets = [0, 12], sizes = [2, 1], strides = [1, 1]} : vector<2x16xf32> to vector<2x1xf32>
    %1040 = vector.extract_strided_slice %13 {offsets = [12, 0], sizes = [1, 8], strides = [1, 1]} : vector<16x8xf32> to vector<1x8xf32>
    %1041 = vector.broadcast %1039 : vector<2x1xf32> to vector<2x8xf32>
    %1042 = vector.broadcast %1040 : vector<1x8xf32> to vector<2x8xf32>
    %1043 = arith.mulf %1041, %1042 : vector<2x8xf32>
    %1044 = vector.extract_strided_slice %978 {offsets = [0, 13], sizes = [2, 1], strides = [1, 1]} : vector<2x16xf32> to vector<2x1xf32>
    %1045 = vector.extract_strided_slice %13 {offsets = [13, 0], sizes = [1, 8], strides = [1, 1]} : vector<16x8xf32> to vector<1x8xf32>
    %1046 = vector.broadcast %1044 : vector<2x1xf32> to vector<2x8xf32>
    %1047 = vector.broadcast %1045 : vector<1x8xf32> to vector<2x8xf32>
    %1048 = arith.mulf %1046, %1047 : vector<2x8xf32>
    %1049 = vector.extract_strided_slice %978 {offsets = [0, 14], sizes = [2, 1], strides = [1, 1]} : vector<2x16xf32> to vector<2x1xf32>
    %1050 = vector.extract_strided_slice %13 {offsets = [14, 0], sizes = [1, 8], strides = [1, 1]} : vector<16x8xf32> to vector<1x8xf32>
    %1051 = vector.broadcast %1049 : vector<2x1xf32> to vector<2x8xf32>
    %1052 = vector.broadcast %1050 : vector<1x8xf32> to vector<2x8xf32>
    %1053 = arith.mulf %1051, %1052 : vector<2x8xf32>
    %1054 = vector.extract_strided_slice %978 {offsets = [0, 15], sizes = [2, 1], strides = [1, 1]} : vector<2x16xf32> to vector<2x1xf32>
    %1055 = vector.extract_strided_slice %13 {offsets = [15, 0], sizes = [1, 8], strides = [1, 1]} : vector<16x8xf32> to vector<1x8xf32>
    %1056 = vector.broadcast %1054 : vector<2x1xf32> to vector<2x8xf32>
    %1057 = vector.broadcast %1055 : vector<1x8xf32> to vector<2x8xf32>
    %1058 = arith.mulf %1056, %1057 : vector<2x8xf32>
    %1059 = arith.addf %983, %988 : vector<2x8xf32>
    %1060 = arith.addf %993, %998 : vector<2x8xf32>
    %1061 = arith.addf %1003, %1008 : vector<2x8xf32>
    %1062 = arith.addf %1013, %1018 : vector<2x8xf32>
    %1063 = arith.addf %1023, %1028 : vector<2x8xf32>
    %1064 = arith.addf %1033, %1038 : vector<2x8xf32>
    %1065 = arith.addf %1043, %1048 : vector<2x8xf32>
    %1066 = arith.addf %1053, %1058 : vector<2x8xf32>
    %1067 = arith.addf %1059, %1060 : vector<2x8xf32>
    %1068 = arith.addf %1061, %1062 : vector<2x8xf32>
    %1069 = arith.addf %1063, %1064 : vector<2x8xf32>
    %1070 = arith.addf %1065, %1066 : vector<2x8xf32>
    %1071 = arith.addf %1067, %1068 : vector<2x8xf32>
    %1072 = arith.addf %1069, %1070 : vector<2x8xf32>
    %1073 = arith.addf %1071, %1072 : vector<2x8xf32>
    %1074 = vector.broadcast %7 : vector<1x8xf32> to vector<2x8xf32>
    %1075 = arith.addf %1073, %1074 : vector<2x8xf32>
    %1076 = vector.extract_strided_slice %1075 {offsets = [0, 0], sizes = [2, 4], strides = [1, 1]} : vector<2x8xf32> to vector<2x4xf32>
    %1077 = arith.addf %952, %1076 : vector<2x4xf32>
    %1078 = vector.extract_strided_slice %1075 {offsets = [0, 4], sizes = [2, 4], strides = [1, 1]} : vector<2x8xf32> to vector<2x4xf32>
    %1079 = vector.extract_strided_slice %172 {offsets = [6, 0, 0], sizes = [1, 2, 4], strides = [1, 1, 1]} : vector<10x2x4xf32> to vector<1x2x4xf32>
    %1080 = vector.shape_cast %1079 : vector<1x2x4xf32> to vector<2x4xf32>
    %1081 = arith.mulf %1078, %1080 : vector<2x4xf32>
    %1082 = arith.addf %1077, %1081 : vector<2x4xf32>
    %1083 = vector.extract_strided_slice %1082 {offsets = [0, 0], sizes = [2, 1], strides = [1, 1]} : vector<2x4xf32> to vector<2x1xf32>
    %1084 = vector.extract_strided_slice %11 {offsets = [0, 0], sizes = [1, 16], strides = [1, 1]} : vector<4x16xf32> to vector<1x16xf32>
    %1085 = vector.broadcast %1083 : vector<2x1xf32> to vector<2x16xf32>
    %1086 = vector.broadcast %1084 : vector<1x16xf32> to vector<2x16xf32>
    %1087 = arith.mulf %1085, %1086 : vector<2x16xf32>
    %1088 = vector.extract_strided_slice %1082 {offsets = [0, 1], sizes = [2, 1], strides = [1, 1]} : vector<2x4xf32> to vector<2x1xf32>
    %1089 = vector.extract_strided_slice %11 {offsets = [1, 0], sizes = [1, 16], strides = [1, 1]} : vector<4x16xf32> to vector<1x16xf32>
    %1090 = vector.broadcast %1088 : vector<2x1xf32> to vector<2x16xf32>
    %1091 = vector.broadcast %1089 : vector<1x16xf32> to vector<2x16xf32>
    %1092 = arith.mulf %1090, %1091 : vector<2x16xf32>
    %1093 = vector.extract_strided_slice %1082 {offsets = [0, 2], sizes = [2, 1], strides = [1, 1]} : vector<2x4xf32> to vector<2x1xf32>
    %1094 = vector.extract_strided_slice %11 {offsets = [2, 0], sizes = [1, 16], strides = [1, 1]} : vector<4x16xf32> to vector<1x16xf32>
    %1095 = vector.broadcast %1093 : vector<2x1xf32> to vector<2x16xf32>
    %1096 = vector.broadcast %1094 : vector<1x16xf32> to vector<2x16xf32>
    %1097 = arith.mulf %1095, %1096 : vector<2x16xf32>
    %1098 = vector.extract_strided_slice %1082 {offsets = [0, 3], sizes = [2, 1], strides = [1, 1]} : vector<2x4xf32> to vector<2x1xf32>
    %1099 = vector.extract_strided_slice %11 {offsets = [3, 0], sizes = [1, 16], strides = [1, 1]} : vector<4x16xf32> to vector<1x16xf32>
    %1100 = vector.broadcast %1098 : vector<2x1xf32> to vector<2x16xf32>
    %1101 = vector.broadcast %1099 : vector<1x16xf32> to vector<2x16xf32>
    %1102 = arith.mulf %1100, %1101 : vector<2x16xf32>
    %1103 = arith.addf %1087, %1092 : vector<2x16xf32>
    %1104 = arith.addf %1097, %1102 : vector<2x16xf32>
    %1105 = arith.addf %1103, %1104 : vector<2x16xf32>
    %1106 = vector.broadcast %5 : vector<1x16xf32> to vector<2x16xf32>
    %1107 = arith.addf %1105, %1106 : vector<2x16xf32>
    %1108 = math.tanh %1107 : vector<2x16xf32>
    %1109 = vector.extract_strided_slice %1108 {offsets = [0, 0], sizes = [2, 1], strides = [1, 1]} : vector<2x16xf32> to vector<2x1xf32>
    %1110 = vector.extract_strided_slice %13 {offsets = [0, 0], sizes = [1, 8], strides = [1, 1]} : vector<16x8xf32> to vector<1x8xf32>
    %1111 = vector.broadcast %1109 : vector<2x1xf32> to vector<2x8xf32>
    %1112 = vector.broadcast %1110 : vector<1x8xf32> to vector<2x8xf32>
    %1113 = arith.mulf %1111, %1112 : vector<2x8xf32>
    %1114 = vector.extract_strided_slice %1108 {offsets = [0, 1], sizes = [2, 1], strides = [1, 1]} : vector<2x16xf32> to vector<2x1xf32>
    %1115 = vector.extract_strided_slice %13 {offsets = [1, 0], sizes = [1, 8], strides = [1, 1]} : vector<16x8xf32> to vector<1x8xf32>
    %1116 = vector.broadcast %1114 : vector<2x1xf32> to vector<2x8xf32>
    %1117 = vector.broadcast %1115 : vector<1x8xf32> to vector<2x8xf32>
    %1118 = arith.mulf %1116, %1117 : vector<2x8xf32>
    %1119 = vector.extract_strided_slice %1108 {offsets = [0, 2], sizes = [2, 1], strides = [1, 1]} : vector<2x16xf32> to vector<2x1xf32>
    %1120 = vector.extract_strided_slice %13 {offsets = [2, 0], sizes = [1, 8], strides = [1, 1]} : vector<16x8xf32> to vector<1x8xf32>
    %1121 = vector.broadcast %1119 : vector<2x1xf32> to vector<2x8xf32>
    %1122 = vector.broadcast %1120 : vector<1x8xf32> to vector<2x8xf32>
    %1123 = arith.mulf %1121, %1122 : vector<2x8xf32>
    %1124 = vector.extract_strided_slice %1108 {offsets = [0, 3], sizes = [2, 1], strides = [1, 1]} : vector<2x16xf32> to vector<2x1xf32>
    %1125 = vector.extract_strided_slice %13 {offsets = [3, 0], sizes = [1, 8], strides = [1, 1]} : vector<16x8xf32> to vector<1x8xf32>
    %1126 = vector.broadcast %1124 : vector<2x1xf32> to vector<2x8xf32>
    %1127 = vector.broadcast %1125 : vector<1x8xf32> to vector<2x8xf32>
    %1128 = arith.mulf %1126, %1127 : vector<2x8xf32>
    %1129 = vector.extract_strided_slice %1108 {offsets = [0, 4], sizes = [2, 1], strides = [1, 1]} : vector<2x16xf32> to vector<2x1xf32>
    %1130 = vector.extract_strided_slice %13 {offsets = [4, 0], sizes = [1, 8], strides = [1, 1]} : vector<16x8xf32> to vector<1x8xf32>
    %1131 = vector.broadcast %1129 : vector<2x1xf32> to vector<2x8xf32>
    %1132 = vector.broadcast %1130 : vector<1x8xf32> to vector<2x8xf32>
    %1133 = arith.mulf %1131, %1132 : vector<2x8xf32>
    %1134 = vector.extract_strided_slice %1108 {offsets = [0, 5], sizes = [2, 1], strides = [1, 1]} : vector<2x16xf32> to vector<2x1xf32>
    %1135 = vector.extract_strided_slice %13 {offsets = [5, 0], sizes = [1, 8], strides = [1, 1]} : vector<16x8xf32> to vector<1x8xf32>
    %1136 = vector.broadcast %1134 : vector<2x1xf32> to vector<2x8xf32>
    %1137 = vector.broadcast %1135 : vector<1x8xf32> to vector<2x8xf32>
    %1138 = arith.mulf %1136, %1137 : vector<2x8xf32>
    %1139 = vector.extract_strided_slice %1108 {offsets = [0, 6], sizes = [2, 1], strides = [1, 1]} : vector<2x16xf32> to vector<2x1xf32>
    %1140 = vector.extract_strided_slice %13 {offsets = [6, 0], sizes = [1, 8], strides = [1, 1]} : vector<16x8xf32> to vector<1x8xf32>
    %1141 = vector.broadcast %1139 : vector<2x1xf32> to vector<2x8xf32>
    %1142 = vector.broadcast %1140 : vector<1x8xf32> to vector<2x8xf32>
    %1143 = arith.mulf %1141, %1142 : vector<2x8xf32>
    %1144 = vector.extract_strided_slice %1108 {offsets = [0, 7], sizes = [2, 1], strides = [1, 1]} : vector<2x16xf32> to vector<2x1xf32>
    %1145 = vector.extract_strided_slice %13 {offsets = [7, 0], sizes = [1, 8], strides = [1, 1]} : vector<16x8xf32> to vector<1x8xf32>
    %1146 = vector.broadcast %1144 : vector<2x1xf32> to vector<2x8xf32>
    %1147 = vector.broadcast %1145 : vector<1x8xf32> to vector<2x8xf32>
    %1148 = arith.mulf %1146, %1147 : vector<2x8xf32>
    %1149 = vector.extract_strided_slice %1108 {offsets = [0, 8], sizes = [2, 1], strides = [1, 1]} : vector<2x16xf32> to vector<2x1xf32>
    %1150 = vector.extract_strided_slice %13 {offsets = [8, 0], sizes = [1, 8], strides = [1, 1]} : vector<16x8xf32> to vector<1x8xf32>
    %1151 = vector.broadcast %1149 : vector<2x1xf32> to vector<2x8xf32>
    %1152 = vector.broadcast %1150 : vector<1x8xf32> to vector<2x8xf32>
    %1153 = arith.mulf %1151, %1152 : vector<2x8xf32>
    %1154 = vector.extract_strided_slice %1108 {offsets = [0, 9], sizes = [2, 1], strides = [1, 1]} : vector<2x16xf32> to vector<2x1xf32>
    %1155 = vector.extract_strided_slice %13 {offsets = [9, 0], sizes = [1, 8], strides = [1, 1]} : vector<16x8xf32> to vector<1x8xf32>
    %1156 = vector.broadcast %1154 : vector<2x1xf32> to vector<2x8xf32>
    %1157 = vector.broadcast %1155 : vector<1x8xf32> to vector<2x8xf32>
    %1158 = arith.mulf %1156, %1157 : vector<2x8xf32>
    %1159 = vector.extract_strided_slice %1108 {offsets = [0, 10], sizes = [2, 1], strides = [1, 1]} : vector<2x16xf32> to vector<2x1xf32>
    %1160 = vector.extract_strided_slice %13 {offsets = [10, 0], sizes = [1, 8], strides = [1, 1]} : vector<16x8xf32> to vector<1x8xf32>
    %1161 = vector.broadcast %1159 : vector<2x1xf32> to vector<2x8xf32>
    %1162 = vector.broadcast %1160 : vector<1x8xf32> to vector<2x8xf32>
    %1163 = arith.mulf %1161, %1162 : vector<2x8xf32>
    %1164 = vector.extract_strided_slice %1108 {offsets = [0, 11], sizes = [2, 1], strides = [1, 1]} : vector<2x16xf32> to vector<2x1xf32>
    %1165 = vector.extract_strided_slice %13 {offsets = [11, 0], sizes = [1, 8], strides = [1, 1]} : vector<16x8xf32> to vector<1x8xf32>
    %1166 = vector.broadcast %1164 : vector<2x1xf32> to vector<2x8xf32>
    %1167 = vector.broadcast %1165 : vector<1x8xf32> to vector<2x8xf32>
    %1168 = arith.mulf %1166, %1167 : vector<2x8xf32>
    %1169 = vector.extract_strided_slice %1108 {offsets = [0, 12], sizes = [2, 1], strides = [1, 1]} : vector<2x16xf32> to vector<2x1xf32>
    %1170 = vector.extract_strided_slice %13 {offsets = [12, 0], sizes = [1, 8], strides = [1, 1]} : vector<16x8xf32> to vector<1x8xf32>
    %1171 = vector.broadcast %1169 : vector<2x1xf32> to vector<2x8xf32>
    %1172 = vector.broadcast %1170 : vector<1x8xf32> to vector<2x8xf32>
    %1173 = arith.mulf %1171, %1172 : vector<2x8xf32>
    %1174 = vector.extract_strided_slice %1108 {offsets = [0, 13], sizes = [2, 1], strides = [1, 1]} : vector<2x16xf32> to vector<2x1xf32>
    %1175 = vector.extract_strided_slice %13 {offsets = [13, 0], sizes = [1, 8], strides = [1, 1]} : vector<16x8xf32> to vector<1x8xf32>
    %1176 = vector.broadcast %1174 : vector<2x1xf32> to vector<2x8xf32>
    %1177 = vector.broadcast %1175 : vector<1x8xf32> to vector<2x8xf32>
    %1178 = arith.mulf %1176, %1177 : vector<2x8xf32>
    %1179 = vector.extract_strided_slice %1108 {offsets = [0, 14], sizes = [2, 1], strides = [1, 1]} : vector<2x16xf32> to vector<2x1xf32>
    %1180 = vector.extract_strided_slice %13 {offsets = [14, 0], sizes = [1, 8], strides = [1, 1]} : vector<16x8xf32> to vector<1x8xf32>
    %1181 = vector.broadcast %1179 : vector<2x1xf32> to vector<2x8xf32>
    %1182 = vector.broadcast %1180 : vector<1x8xf32> to vector<2x8xf32>
    %1183 = arith.mulf %1181, %1182 : vector<2x8xf32>
    %1184 = vector.extract_strided_slice %1108 {offsets = [0, 15], sizes = [2, 1], strides = [1, 1]} : vector<2x16xf32> to vector<2x1xf32>
    %1185 = vector.extract_strided_slice %13 {offsets = [15, 0], sizes = [1, 8], strides = [1, 1]} : vector<16x8xf32> to vector<1x8xf32>
    %1186 = vector.broadcast %1184 : vector<2x1xf32> to vector<2x8xf32>
    %1187 = vector.broadcast %1185 : vector<1x8xf32> to vector<2x8xf32>
    %1188 = arith.mulf %1186, %1187 : vector<2x8xf32>
    %1189 = arith.addf %1113, %1118 : vector<2x8xf32>
    %1190 = arith.addf %1123, %1128 : vector<2x8xf32>
    %1191 = arith.addf %1133, %1138 : vector<2x8xf32>
    %1192 = arith.addf %1143, %1148 : vector<2x8xf32>
    %1193 = arith.addf %1153, %1158 : vector<2x8xf32>
    %1194 = arith.addf %1163, %1168 : vector<2x8xf32>
    %1195 = arith.addf %1173, %1178 : vector<2x8xf32>
    %1196 = arith.addf %1183, %1188 : vector<2x8xf32>
    %1197 = arith.addf %1189, %1190 : vector<2x8xf32>
    %1198 = arith.addf %1191, %1192 : vector<2x8xf32>
    %1199 = arith.addf %1193, %1194 : vector<2x8xf32>
    %1200 = arith.addf %1195, %1196 : vector<2x8xf32>
    %1201 = arith.addf %1197, %1198 : vector<2x8xf32>
    %1202 = arith.addf %1199, %1200 : vector<2x8xf32>
    %1203 = arith.addf %1201, %1202 : vector<2x8xf32>
    %1204 = vector.broadcast %7 : vector<1x8xf32> to vector<2x8xf32>
    %1205 = arith.addf %1203, %1204 : vector<2x8xf32>
    %1206 = vector.extract_strided_slice %1205 {offsets = [0, 0], sizes = [2, 4], strides = [1, 1]} : vector<2x8xf32> to vector<2x4xf32>
    %1207 = arith.addf %1082, %1206 : vector<2x4xf32>
    %1208 = vector.extract_strided_slice %1205 {offsets = [0, 4], sizes = [2, 4], strides = [1, 1]} : vector<2x8xf32> to vector<2x4xf32>
    %1209 = vector.extract_strided_slice %172 {offsets = [7, 0, 0], sizes = [1, 2, 4], strides = [1, 1, 1]} : vector<10x2x4xf32> to vector<1x2x4xf32>
    %1210 = vector.shape_cast %1209 : vector<1x2x4xf32> to vector<2x4xf32>
    %1211 = arith.mulf %1208, %1210 : vector<2x4xf32>
    %1212 = arith.addf %1207, %1211 : vector<2x4xf32>
    %1213 = vector.extract_strided_slice %1212 {offsets = [0, 0], sizes = [2, 1], strides = [1, 1]} : vector<2x4xf32> to vector<2x1xf32>
    %1214 = vector.extract_strided_slice %11 {offsets = [0, 0], sizes = [1, 16], strides = [1, 1]} : vector<4x16xf32> to vector<1x16xf32>
    %1215 = vector.broadcast %1213 : vector<2x1xf32> to vector<2x16xf32>
    %1216 = vector.broadcast %1214 : vector<1x16xf32> to vector<2x16xf32>
    %1217 = arith.mulf %1215, %1216 : vector<2x16xf32>
    %1218 = vector.extract_strided_slice %1212 {offsets = [0, 1], sizes = [2, 1], strides = [1, 1]} : vector<2x4xf32> to vector<2x1xf32>
    %1219 = vector.extract_strided_slice %11 {offsets = [1, 0], sizes = [1, 16], strides = [1, 1]} : vector<4x16xf32> to vector<1x16xf32>
    %1220 = vector.broadcast %1218 : vector<2x1xf32> to vector<2x16xf32>
    %1221 = vector.broadcast %1219 : vector<1x16xf32> to vector<2x16xf32>
    %1222 = arith.mulf %1220, %1221 : vector<2x16xf32>
    %1223 = vector.extract_strided_slice %1212 {offsets = [0, 2], sizes = [2, 1], strides = [1, 1]} : vector<2x4xf32> to vector<2x1xf32>
    %1224 = vector.extract_strided_slice %11 {offsets = [2, 0], sizes = [1, 16], strides = [1, 1]} : vector<4x16xf32> to vector<1x16xf32>
    %1225 = vector.broadcast %1223 : vector<2x1xf32> to vector<2x16xf32>
    %1226 = vector.broadcast %1224 : vector<1x16xf32> to vector<2x16xf32>
    %1227 = arith.mulf %1225, %1226 : vector<2x16xf32>
    %1228 = vector.extract_strided_slice %1212 {offsets = [0, 3], sizes = [2, 1], strides = [1, 1]} : vector<2x4xf32> to vector<2x1xf32>
    %1229 = vector.extract_strided_slice %11 {offsets = [3, 0], sizes = [1, 16], strides = [1, 1]} : vector<4x16xf32> to vector<1x16xf32>
    %1230 = vector.broadcast %1228 : vector<2x1xf32> to vector<2x16xf32>
    %1231 = vector.broadcast %1229 : vector<1x16xf32> to vector<2x16xf32>
    %1232 = arith.mulf %1230, %1231 : vector<2x16xf32>
    %1233 = arith.addf %1217, %1222 : vector<2x16xf32>
    %1234 = arith.addf %1227, %1232 : vector<2x16xf32>
    %1235 = arith.addf %1233, %1234 : vector<2x16xf32>
    %1236 = vector.broadcast %5 : vector<1x16xf32> to vector<2x16xf32>
    %1237 = arith.addf %1235, %1236 : vector<2x16xf32>
    %1238 = math.tanh %1237 : vector<2x16xf32>
    %1239 = vector.extract_strided_slice %1238 {offsets = [0, 0], sizes = [2, 1], strides = [1, 1]} : vector<2x16xf32> to vector<2x1xf32>
    %1240 = vector.extract_strided_slice %13 {offsets = [0, 0], sizes = [1, 8], strides = [1, 1]} : vector<16x8xf32> to vector<1x8xf32>
    %1241 = vector.broadcast %1239 : vector<2x1xf32> to vector<2x8xf32>
    %1242 = vector.broadcast %1240 : vector<1x8xf32> to vector<2x8xf32>
    %1243 = arith.mulf %1241, %1242 : vector<2x8xf32>
    %1244 = vector.extract_strided_slice %1238 {offsets = [0, 1], sizes = [2, 1], strides = [1, 1]} : vector<2x16xf32> to vector<2x1xf32>
    %1245 = vector.extract_strided_slice %13 {offsets = [1, 0], sizes = [1, 8], strides = [1, 1]} : vector<16x8xf32> to vector<1x8xf32>
    %1246 = vector.broadcast %1244 : vector<2x1xf32> to vector<2x8xf32>
    %1247 = vector.broadcast %1245 : vector<1x8xf32> to vector<2x8xf32>
    %1248 = arith.mulf %1246, %1247 : vector<2x8xf32>
    %1249 = vector.extract_strided_slice %1238 {offsets = [0, 2], sizes = [2, 1], strides = [1, 1]} : vector<2x16xf32> to vector<2x1xf32>
    %1250 = vector.extract_strided_slice %13 {offsets = [2, 0], sizes = [1, 8], strides = [1, 1]} : vector<16x8xf32> to vector<1x8xf32>
    %1251 = vector.broadcast %1249 : vector<2x1xf32> to vector<2x8xf32>
    %1252 = vector.broadcast %1250 : vector<1x8xf32> to vector<2x8xf32>
    %1253 = arith.mulf %1251, %1252 : vector<2x8xf32>
    %1254 = vector.extract_strided_slice %1238 {offsets = [0, 3], sizes = [2, 1], strides = [1, 1]} : vector<2x16xf32> to vector<2x1xf32>
    %1255 = vector.extract_strided_slice %13 {offsets = [3, 0], sizes = [1, 8], strides = [1, 1]} : vector<16x8xf32> to vector<1x8xf32>
    %1256 = vector.broadcast %1254 : vector<2x1xf32> to vector<2x8xf32>
    %1257 = vector.broadcast %1255 : vector<1x8xf32> to vector<2x8xf32>
    %1258 = arith.mulf %1256, %1257 : vector<2x8xf32>
    %1259 = vector.extract_strided_slice %1238 {offsets = [0, 4], sizes = [2, 1], strides = [1, 1]} : vector<2x16xf32> to vector<2x1xf32>
    %1260 = vector.extract_strided_slice %13 {offsets = [4, 0], sizes = [1, 8], strides = [1, 1]} : vector<16x8xf32> to vector<1x8xf32>
    %1261 = vector.broadcast %1259 : vector<2x1xf32> to vector<2x8xf32>
    %1262 = vector.broadcast %1260 : vector<1x8xf32> to vector<2x8xf32>
    %1263 = arith.mulf %1261, %1262 : vector<2x8xf32>
    %1264 = vector.extract_strided_slice %1238 {offsets = [0, 5], sizes = [2, 1], strides = [1, 1]} : vector<2x16xf32> to vector<2x1xf32>
    %1265 = vector.extract_strided_slice %13 {offsets = [5, 0], sizes = [1, 8], strides = [1, 1]} : vector<16x8xf32> to vector<1x8xf32>
    %1266 = vector.broadcast %1264 : vector<2x1xf32> to vector<2x8xf32>
    %1267 = vector.broadcast %1265 : vector<1x8xf32> to vector<2x8xf32>
    %1268 = arith.mulf %1266, %1267 : vector<2x8xf32>
    %1269 = vector.extract_strided_slice %1238 {offsets = [0, 6], sizes = [2, 1], strides = [1, 1]} : vector<2x16xf32> to vector<2x1xf32>
    %1270 = vector.extract_strided_slice %13 {offsets = [6, 0], sizes = [1, 8], strides = [1, 1]} : vector<16x8xf32> to vector<1x8xf32>
    %1271 = vector.broadcast %1269 : vector<2x1xf32> to vector<2x8xf32>
    %1272 = vector.broadcast %1270 : vector<1x8xf32> to vector<2x8xf32>
    %1273 = arith.mulf %1271, %1272 : vector<2x8xf32>
    %1274 = vector.extract_strided_slice %1238 {offsets = [0, 7], sizes = [2, 1], strides = [1, 1]} : vector<2x16xf32> to vector<2x1xf32>
    %1275 = vector.extract_strided_slice %13 {offsets = [7, 0], sizes = [1, 8], strides = [1, 1]} : vector<16x8xf32> to vector<1x8xf32>
    %1276 = vector.broadcast %1274 : vector<2x1xf32> to vector<2x8xf32>
    %1277 = vector.broadcast %1275 : vector<1x8xf32> to vector<2x8xf32>
    %1278 = arith.mulf %1276, %1277 : vector<2x8xf32>
    %1279 = vector.extract_strided_slice %1238 {offsets = [0, 8], sizes = [2, 1], strides = [1, 1]} : vector<2x16xf32> to vector<2x1xf32>
    %1280 = vector.extract_strided_slice %13 {offsets = [8, 0], sizes = [1, 8], strides = [1, 1]} : vector<16x8xf32> to vector<1x8xf32>
    %1281 = vector.broadcast %1279 : vector<2x1xf32> to vector<2x8xf32>
    %1282 = vector.broadcast %1280 : vector<1x8xf32> to vector<2x8xf32>
    %1283 = arith.mulf %1281, %1282 : vector<2x8xf32>
    %1284 = vector.extract_strided_slice %1238 {offsets = [0, 9], sizes = [2, 1], strides = [1, 1]} : vector<2x16xf32> to vector<2x1xf32>
    %1285 = vector.extract_strided_slice %13 {offsets = [9, 0], sizes = [1, 8], strides = [1, 1]} : vector<16x8xf32> to vector<1x8xf32>
    %1286 = vector.broadcast %1284 : vector<2x1xf32> to vector<2x8xf32>
    %1287 = vector.broadcast %1285 : vector<1x8xf32> to vector<2x8xf32>
    %1288 = arith.mulf %1286, %1287 : vector<2x8xf32>
    %1289 = vector.extract_strided_slice %1238 {offsets = [0, 10], sizes = [2, 1], strides = [1, 1]} : vector<2x16xf32> to vector<2x1xf32>
    %1290 = vector.extract_strided_slice %13 {offsets = [10, 0], sizes = [1, 8], strides = [1, 1]} : vector<16x8xf32> to vector<1x8xf32>
    %1291 = vector.broadcast %1289 : vector<2x1xf32> to vector<2x8xf32>
    %1292 = vector.broadcast %1290 : vector<1x8xf32> to vector<2x8xf32>
    %1293 = arith.mulf %1291, %1292 : vector<2x8xf32>
    %1294 = vector.extract_strided_slice %1238 {offsets = [0, 11], sizes = [2, 1], strides = [1, 1]} : vector<2x16xf32> to vector<2x1xf32>
    %1295 = vector.extract_strided_slice %13 {offsets = [11, 0], sizes = [1, 8], strides = [1, 1]} : vector<16x8xf32> to vector<1x8xf32>
    %1296 = vector.broadcast %1294 : vector<2x1xf32> to vector<2x8xf32>
    %1297 = vector.broadcast %1295 : vector<1x8xf32> to vector<2x8xf32>
    %1298 = arith.mulf %1296, %1297 : vector<2x8xf32>
    %1299 = vector.extract_strided_slice %1238 {offsets = [0, 12], sizes = [2, 1], strides = [1, 1]} : vector<2x16xf32> to vector<2x1xf32>
    %1300 = vector.extract_strided_slice %13 {offsets = [12, 0], sizes = [1, 8], strides = [1, 1]} : vector<16x8xf32> to vector<1x8xf32>
    %1301 = vector.broadcast %1299 : vector<2x1xf32> to vector<2x8xf32>
    %1302 = vector.broadcast %1300 : vector<1x8xf32> to vector<2x8xf32>
    %1303 = arith.mulf %1301, %1302 : vector<2x8xf32>
    %1304 = vector.extract_strided_slice %1238 {offsets = [0, 13], sizes = [2, 1], strides = [1, 1]} : vector<2x16xf32> to vector<2x1xf32>
    %1305 = vector.extract_strided_slice %13 {offsets = [13, 0], sizes = [1, 8], strides = [1, 1]} : vector<16x8xf32> to vector<1x8xf32>
    %1306 = vector.broadcast %1304 : vector<2x1xf32> to vector<2x8xf32>
    %1307 = vector.broadcast %1305 : vector<1x8xf32> to vector<2x8xf32>
    %1308 = arith.mulf %1306, %1307 : vector<2x8xf32>
    %1309 = vector.extract_strided_slice %1238 {offsets = [0, 14], sizes = [2, 1], strides = [1, 1]} : vector<2x16xf32> to vector<2x1xf32>
    %1310 = vector.extract_strided_slice %13 {offsets = [14, 0], sizes = [1, 8], strides = [1, 1]} : vector<16x8xf32> to vector<1x8xf32>
    %1311 = vector.broadcast %1309 : vector<2x1xf32> to vector<2x8xf32>
    %1312 = vector.broadcast %1310 : vector<1x8xf32> to vector<2x8xf32>
    %1313 = arith.mulf %1311, %1312 : vector<2x8xf32>
    %1314 = vector.extract_strided_slice %1238 {offsets = [0, 15], sizes = [2, 1], strides = [1, 1]} : vector<2x16xf32> to vector<2x1xf32>
    %1315 = vector.extract_strided_slice %13 {offsets = [15, 0], sizes = [1, 8], strides = [1, 1]} : vector<16x8xf32> to vector<1x8xf32>
    %1316 = vector.broadcast %1314 : vector<2x1xf32> to vector<2x8xf32>
    %1317 = vector.broadcast %1315 : vector<1x8xf32> to vector<2x8xf32>
    %1318 = arith.mulf %1316, %1317 : vector<2x8xf32>
    %1319 = arith.addf %1243, %1248 : vector<2x8xf32>
    %1320 = arith.addf %1253, %1258 : vector<2x8xf32>
    %1321 = arith.addf %1263, %1268 : vector<2x8xf32>
    %1322 = arith.addf %1273, %1278 : vector<2x8xf32>
    %1323 = arith.addf %1283, %1288 : vector<2x8xf32>
    %1324 = arith.addf %1293, %1298 : vector<2x8xf32>
    %1325 = arith.addf %1303, %1308 : vector<2x8xf32>
    %1326 = arith.addf %1313, %1318 : vector<2x8xf32>
    %1327 = arith.addf %1319, %1320 : vector<2x8xf32>
    %1328 = arith.addf %1321, %1322 : vector<2x8xf32>
    %1329 = arith.addf %1323, %1324 : vector<2x8xf32>
    %1330 = arith.addf %1325, %1326 : vector<2x8xf32>
    %1331 = arith.addf %1327, %1328 : vector<2x8xf32>
    %1332 = arith.addf %1329, %1330 : vector<2x8xf32>
    %1333 = arith.addf %1331, %1332 : vector<2x8xf32>
    %1334 = vector.broadcast %7 : vector<1x8xf32> to vector<2x8xf32>
    %1335 = arith.addf %1333, %1334 : vector<2x8xf32>
    %1336 = vector.extract_strided_slice %1335 {offsets = [0, 0], sizes = [2, 4], strides = [1, 1]} : vector<2x8xf32> to vector<2x4xf32>
    %1337 = arith.addf %1212, %1336 : vector<2x4xf32>
    %1338 = vector.extract_strided_slice %1335 {offsets = [0, 4], sizes = [2, 4], strides = [1, 1]} : vector<2x8xf32> to vector<2x4xf32>
    %1339 = vector.extract_strided_slice %172 {offsets = [8, 0, 0], sizes = [1, 2, 4], strides = [1, 1, 1]} : vector<10x2x4xf32> to vector<1x2x4xf32>
    %1340 = vector.shape_cast %1339 : vector<1x2x4xf32> to vector<2x4xf32>
    %1341 = arith.mulf %1338, %1340 : vector<2x4xf32>
    %1342 = arith.addf %1337, %1341 : vector<2x4xf32>
    %1343 = vector.extract_strided_slice %1342 {offsets = [0, 0], sizes = [2, 1], strides = [1, 1]} : vector<2x4xf32> to vector<2x1xf32>
    %1344 = vector.extract_strided_slice %11 {offsets = [0, 0], sizes = [1, 16], strides = [1, 1]} : vector<4x16xf32> to vector<1x16xf32>
    %1345 = vector.broadcast %1343 : vector<2x1xf32> to vector<2x16xf32>
    %1346 = vector.broadcast %1344 : vector<1x16xf32> to vector<2x16xf32>
    %1347 = arith.mulf %1345, %1346 : vector<2x16xf32>
    %1348 = vector.extract_strided_slice %1342 {offsets = [0, 1], sizes = [2, 1], strides = [1, 1]} : vector<2x4xf32> to vector<2x1xf32>
    %1349 = vector.extract_strided_slice %11 {offsets = [1, 0], sizes = [1, 16], strides = [1, 1]} : vector<4x16xf32> to vector<1x16xf32>
    %1350 = vector.broadcast %1348 : vector<2x1xf32> to vector<2x16xf32>
    %1351 = vector.broadcast %1349 : vector<1x16xf32> to vector<2x16xf32>
    %1352 = arith.mulf %1350, %1351 : vector<2x16xf32>
    %1353 = vector.extract_strided_slice %1342 {offsets = [0, 2], sizes = [2, 1], strides = [1, 1]} : vector<2x4xf32> to vector<2x1xf32>
    %1354 = vector.extract_strided_slice %11 {offsets = [2, 0], sizes = [1, 16], strides = [1, 1]} : vector<4x16xf32> to vector<1x16xf32>
    %1355 = vector.broadcast %1353 : vector<2x1xf32> to vector<2x16xf32>
    %1356 = vector.broadcast %1354 : vector<1x16xf32> to vector<2x16xf32>
    %1357 = arith.mulf %1355, %1356 : vector<2x16xf32>
    %1358 = vector.extract_strided_slice %1342 {offsets = [0, 3], sizes = [2, 1], strides = [1, 1]} : vector<2x4xf32> to vector<2x1xf32>
    %1359 = vector.extract_strided_slice %11 {offsets = [3, 0], sizes = [1, 16], strides = [1, 1]} : vector<4x16xf32> to vector<1x16xf32>
    %1360 = vector.broadcast %1358 : vector<2x1xf32> to vector<2x16xf32>
    %1361 = vector.broadcast %1359 : vector<1x16xf32> to vector<2x16xf32>
    %1362 = arith.mulf %1360, %1361 : vector<2x16xf32>
    %1363 = arith.addf %1347, %1352 : vector<2x16xf32>
    %1364 = arith.addf %1357, %1362 : vector<2x16xf32>
    %1365 = arith.addf %1363, %1364 : vector<2x16xf32>
    %1366 = vector.broadcast %5 : vector<1x16xf32> to vector<2x16xf32>
    %1367 = arith.addf %1365, %1366 : vector<2x16xf32>
    %1368 = math.tanh %1367 : vector<2x16xf32>
    %1369 = vector.extract_strided_slice %1368 {offsets = [0, 0], sizes = [2, 1], strides = [1, 1]} : vector<2x16xf32> to vector<2x1xf32>
    %1370 = vector.extract_strided_slice %13 {offsets = [0, 0], sizes = [1, 8], strides = [1, 1]} : vector<16x8xf32> to vector<1x8xf32>
    %1371 = vector.broadcast %1369 : vector<2x1xf32> to vector<2x8xf32>
    %1372 = vector.broadcast %1370 : vector<1x8xf32> to vector<2x8xf32>
    %1373 = arith.mulf %1371, %1372 : vector<2x8xf32>
    %1374 = vector.extract_strided_slice %1368 {offsets = [0, 1], sizes = [2, 1], strides = [1, 1]} : vector<2x16xf32> to vector<2x1xf32>
    %1375 = vector.extract_strided_slice %13 {offsets = [1, 0], sizes = [1, 8], strides = [1, 1]} : vector<16x8xf32> to vector<1x8xf32>
    %1376 = vector.broadcast %1374 : vector<2x1xf32> to vector<2x8xf32>
    %1377 = vector.broadcast %1375 : vector<1x8xf32> to vector<2x8xf32>
    %1378 = arith.mulf %1376, %1377 : vector<2x8xf32>
    %1379 = vector.extract_strided_slice %1368 {offsets = [0, 2], sizes = [2, 1], strides = [1, 1]} : vector<2x16xf32> to vector<2x1xf32>
    %1380 = vector.extract_strided_slice %13 {offsets = [2, 0], sizes = [1, 8], strides = [1, 1]} : vector<16x8xf32> to vector<1x8xf32>
    %1381 = vector.broadcast %1379 : vector<2x1xf32> to vector<2x8xf32>
    %1382 = vector.broadcast %1380 : vector<1x8xf32> to vector<2x8xf32>
    %1383 = arith.mulf %1381, %1382 : vector<2x8xf32>
    %1384 = vector.extract_strided_slice %1368 {offsets = [0, 3], sizes = [2, 1], strides = [1, 1]} : vector<2x16xf32> to vector<2x1xf32>
    %1385 = vector.extract_strided_slice %13 {offsets = [3, 0], sizes = [1, 8], strides = [1, 1]} : vector<16x8xf32> to vector<1x8xf32>
    %1386 = vector.broadcast %1384 : vector<2x1xf32> to vector<2x8xf32>
    %1387 = vector.broadcast %1385 : vector<1x8xf32> to vector<2x8xf32>
    %1388 = arith.mulf %1386, %1387 : vector<2x8xf32>
    %1389 = vector.extract_strided_slice %1368 {offsets = [0, 4], sizes = [2, 1], strides = [1, 1]} : vector<2x16xf32> to vector<2x1xf32>
    %1390 = vector.extract_strided_slice %13 {offsets = [4, 0], sizes = [1, 8], strides = [1, 1]} : vector<16x8xf32> to vector<1x8xf32>
    %1391 = vector.broadcast %1389 : vector<2x1xf32> to vector<2x8xf32>
    %1392 = vector.broadcast %1390 : vector<1x8xf32> to vector<2x8xf32>
    %1393 = arith.mulf %1391, %1392 : vector<2x8xf32>
    %1394 = vector.extract_strided_slice %1368 {offsets = [0, 5], sizes = [2, 1], strides = [1, 1]} : vector<2x16xf32> to vector<2x1xf32>
    %1395 = vector.extract_strided_slice %13 {offsets = [5, 0], sizes = [1, 8], strides = [1, 1]} : vector<16x8xf32> to vector<1x8xf32>
    %1396 = vector.broadcast %1394 : vector<2x1xf32> to vector<2x8xf32>
    %1397 = vector.broadcast %1395 : vector<1x8xf32> to vector<2x8xf32>
    %1398 = arith.mulf %1396, %1397 : vector<2x8xf32>
    %1399 = vector.extract_strided_slice %1368 {offsets = [0, 6], sizes = [2, 1], strides = [1, 1]} : vector<2x16xf32> to vector<2x1xf32>
    %1400 = vector.extract_strided_slice %13 {offsets = [6, 0], sizes = [1, 8], strides = [1, 1]} : vector<16x8xf32> to vector<1x8xf32>
    %1401 = vector.broadcast %1399 : vector<2x1xf32> to vector<2x8xf32>
    %1402 = vector.broadcast %1400 : vector<1x8xf32> to vector<2x8xf32>
    %1403 = arith.mulf %1401, %1402 : vector<2x8xf32>
    %1404 = vector.extract_strided_slice %1368 {offsets = [0, 7], sizes = [2, 1], strides = [1, 1]} : vector<2x16xf32> to vector<2x1xf32>
    %1405 = vector.extract_strided_slice %13 {offsets = [7, 0], sizes = [1, 8], strides = [1, 1]} : vector<16x8xf32> to vector<1x8xf32>
    %1406 = vector.broadcast %1404 : vector<2x1xf32> to vector<2x8xf32>
    %1407 = vector.broadcast %1405 : vector<1x8xf32> to vector<2x8xf32>
    %1408 = arith.mulf %1406, %1407 : vector<2x8xf32>
    %1409 = vector.extract_strided_slice %1368 {offsets = [0, 8], sizes = [2, 1], strides = [1, 1]} : vector<2x16xf32> to vector<2x1xf32>
    %1410 = vector.extract_strided_slice %13 {offsets = [8, 0], sizes = [1, 8], strides = [1, 1]} : vector<16x8xf32> to vector<1x8xf32>
    %1411 = vector.broadcast %1409 : vector<2x1xf32> to vector<2x8xf32>
    %1412 = vector.broadcast %1410 : vector<1x8xf32> to vector<2x8xf32>
    %1413 = arith.mulf %1411, %1412 : vector<2x8xf32>
    %1414 = vector.extract_strided_slice %1368 {offsets = [0, 9], sizes = [2, 1], strides = [1, 1]} : vector<2x16xf32> to vector<2x1xf32>
    %1415 = vector.extract_strided_slice %13 {offsets = [9, 0], sizes = [1, 8], strides = [1, 1]} : vector<16x8xf32> to vector<1x8xf32>
    %1416 = vector.broadcast %1414 : vector<2x1xf32> to vector<2x8xf32>
    %1417 = vector.broadcast %1415 : vector<1x8xf32> to vector<2x8xf32>
    %1418 = arith.mulf %1416, %1417 : vector<2x8xf32>
    %1419 = vector.extract_strided_slice %1368 {offsets = [0, 10], sizes = [2, 1], strides = [1, 1]} : vector<2x16xf32> to vector<2x1xf32>
    %1420 = vector.extract_strided_slice %13 {offsets = [10, 0], sizes = [1, 8], strides = [1, 1]} : vector<16x8xf32> to vector<1x8xf32>
    %1421 = vector.broadcast %1419 : vector<2x1xf32> to vector<2x8xf32>
    %1422 = vector.broadcast %1420 : vector<1x8xf32> to vector<2x8xf32>
    %1423 = arith.mulf %1421, %1422 : vector<2x8xf32>
    %1424 = vector.extract_strided_slice %1368 {offsets = [0, 11], sizes = [2, 1], strides = [1, 1]} : vector<2x16xf32> to vector<2x1xf32>
    %1425 = vector.extract_strided_slice %13 {offsets = [11, 0], sizes = [1, 8], strides = [1, 1]} : vector<16x8xf32> to vector<1x8xf32>
    %1426 = vector.broadcast %1424 : vector<2x1xf32> to vector<2x8xf32>
    %1427 = vector.broadcast %1425 : vector<1x8xf32> to vector<2x8xf32>
    %1428 = arith.mulf %1426, %1427 : vector<2x8xf32>
    %1429 = vector.extract_strided_slice %1368 {offsets = [0, 12], sizes = [2, 1], strides = [1, 1]} : vector<2x16xf32> to vector<2x1xf32>
    %1430 = vector.extract_strided_slice %13 {offsets = [12, 0], sizes = [1, 8], strides = [1, 1]} : vector<16x8xf32> to vector<1x8xf32>
    %1431 = vector.broadcast %1429 : vector<2x1xf32> to vector<2x8xf32>
    %1432 = vector.broadcast %1430 : vector<1x8xf32> to vector<2x8xf32>
    %1433 = arith.mulf %1431, %1432 : vector<2x8xf32>
    %1434 = vector.extract_strided_slice %1368 {offsets = [0, 13], sizes = [2, 1], strides = [1, 1]} : vector<2x16xf32> to vector<2x1xf32>
    %1435 = vector.extract_strided_slice %13 {offsets = [13, 0], sizes = [1, 8], strides = [1, 1]} : vector<16x8xf32> to vector<1x8xf32>
    %1436 = vector.broadcast %1434 : vector<2x1xf32> to vector<2x8xf32>
    %1437 = vector.broadcast %1435 : vector<1x8xf32> to vector<2x8xf32>
    %1438 = arith.mulf %1436, %1437 : vector<2x8xf32>
    %1439 = vector.extract_strided_slice %1368 {offsets = [0, 14], sizes = [2, 1], strides = [1, 1]} : vector<2x16xf32> to vector<2x1xf32>
    %1440 = vector.extract_strided_slice %13 {offsets = [14, 0], sizes = [1, 8], strides = [1, 1]} : vector<16x8xf32> to vector<1x8xf32>
    %1441 = vector.broadcast %1439 : vector<2x1xf32> to vector<2x8xf32>
    %1442 = vector.broadcast %1440 : vector<1x8xf32> to vector<2x8xf32>
    %1443 = arith.mulf %1441, %1442 : vector<2x8xf32>
    %1444 = vector.extract_strided_slice %1368 {offsets = [0, 15], sizes = [2, 1], strides = [1, 1]} : vector<2x16xf32> to vector<2x1xf32>
    %1445 = vector.extract_strided_slice %13 {offsets = [15, 0], sizes = [1, 8], strides = [1, 1]} : vector<16x8xf32> to vector<1x8xf32>
    %1446 = vector.broadcast %1444 : vector<2x1xf32> to vector<2x8xf32>
    %1447 = vector.broadcast %1445 : vector<1x8xf32> to vector<2x8xf32>
    %1448 = arith.mulf %1446, %1447 : vector<2x8xf32>
    %1449 = arith.addf %1373, %1378 : vector<2x8xf32>
    %1450 = arith.addf %1383, %1388 : vector<2x8xf32>
    %1451 = arith.addf %1393, %1398 : vector<2x8xf32>
    %1452 = arith.addf %1403, %1408 : vector<2x8xf32>
    %1453 = arith.addf %1413, %1418 : vector<2x8xf32>
    %1454 = arith.addf %1423, %1428 : vector<2x8xf32>
    %1455 = arith.addf %1433, %1438 : vector<2x8xf32>
    %1456 = arith.addf %1443, %1448 : vector<2x8xf32>
    %1457 = arith.addf %1449, %1450 : vector<2x8xf32>
    %1458 = arith.addf %1451, %1452 : vector<2x8xf32>
    %1459 = arith.addf %1453, %1454 : vector<2x8xf32>
    %1460 = arith.addf %1455, %1456 : vector<2x8xf32>
    %1461 = arith.addf %1457, %1458 : vector<2x8xf32>
    %1462 = arith.addf %1459, %1460 : vector<2x8xf32>
    %1463 = arith.addf %1461, %1462 : vector<2x8xf32>
    %1464 = vector.broadcast %7 : vector<1x8xf32> to vector<2x8xf32>
    %1465 = arith.addf %1463, %1464 : vector<2x8xf32>
    %1466 = vector.extract_strided_slice %1465 {offsets = [0, 0], sizes = [2, 4], strides = [1, 1]} : vector<2x8xf32> to vector<2x4xf32>
    %1467 = arith.addf %1342, %1466 : vector<2x4xf32>
    %1468 = vector.extract_strided_slice %1465 {offsets = [0, 4], sizes = [2, 4], strides = [1, 1]} : vector<2x8xf32> to vector<2x4xf32>
    %1469 = vector.extract_strided_slice %172 {offsets = [9, 0, 0], sizes = [1, 2, 4], strides = [1, 1, 1]} : vector<10x2x4xf32> to vector<1x2x4xf32>
    %1470 = vector.shape_cast %1469 : vector<1x2x4xf32> to vector<2x4xf32>
    %1471 = arith.mulf %1468, %1470 : vector<2x4xf32>
    %1472 = arith.addf %1467, %1471 : vector<2x4xf32>
    %c0_41 = arith.constant 0 : index
    %c0_42 = arith.constant 0 : index
    %1473 = vector.load %arg3[%c0_41, %c0_42] : memref<2x4xf32, #tpu.memory_space<vmem>>, vector<2x4xf32>
    tpu.vector_store %arg3[%c0_41, %c0_42], %1472 {strides = array<i32>} : memref<2x4xf32, #tpu.memory_space<vmem>>, vector<2x4xf32>,
    return
  }
}

</mosaic_0001>

<llo_original>
// kernel: tpu_custom_call.1
$region0: #{tpu_custom_call.1}
  #allocation0 [shape = 'u32[]', space=smem, size = 0x4, offset = 0x4, fixed_abs, tag = 'smem constant byte address 0x4 - core index']
  #allocation1 [shape = 'u32[72,128]{1,0:T(1,128)}', space=vmem, size = 0x9000, scoped, tag = 'internal scratch']
  %s0 = inlined_call_operand.vmem [shape: f32[8,2,1], index: 0, kind: input, shape index: {}]
  %s1 = inlined_call_operand.hbm [shape: f32[96,128], index: 1, kind: input, shape index: {}]
  %s2 = inlined_call_operand.vmem [shape: f32[10,2,4], index: 2, kind: input, shape index: {}]
  %s3 = inlined_call_operand.hbm [shape: f32[2,4], index: 3, kind: output, shape index: {}]
  %s4 = sld [smem:[#allocation0]]
  $region26: #{tpu_custom_call.1} parent=0
    _
  %s6 = ssub.s32 1, %s4
  %s7 = scalar_select 0, %s6, %s4
  $region1: #{tpu_custom_call.1} parent=0
    #allocation2 [shape = 'u8[49152]{0}', space=vmem, size = 0xc000, scoped, tag = 'input window, operand 1, single buffered']
    #allocation3 [shape = 's32[1]{0}', space=sflag, size = 0x4, scoped, tag = 'scoped memory for tpu_custom_call.1']
    #allocation4 [shape = 's32[1]{0}', space=sflag, size = 0x4, scoped, tag = 'scoped memory for tpu_custom_call.1']
    #allocation5 [shape = 'u8[1024]{0}', space=vmem, size = 0x400, scoped, tag = 'output window, operand 0, single buffered']
    %8 = vsyncpa [#allocation3], 0
    %9 = vsyncpa [#allocation4], 0
    // Predicated region
    $region2: #{tpu_custom_call.1} parent=1 // pred_check
      _
    $region3: #{tpu_custom_call.1} parent=1 // pred_check_branch
      %11 = sbr.rel (0) target = $region5
    $region4: #{tpu_custom_call.1} parent=1 // pred_region
      _
    $region5: #{tpu_custom_call.1} parent=1 // pred_fallthru
      _
    // Predicated region
    $region6: #{tpu_custom_call.1} parent=1 // pred_check
      _
    $region7: #{tpu_custom_call.1} parent=1 // pred_check_branch
      %13 = sbr.rel (0) target = $region9
    $region8: #{tpu_custom_call.1} parent=1 // pred_region
      %15 = vsyncadd [#allocation3], 0
      %s16 = sshll.u32 %s1, 4
      %s17 = int_to_ptr.hbm [resolvable:$true] %s16
      %s18 = sshll.u32 [#allocation2], 4
      %s19 = int_to_ptr.vmem [resolvable:$true] %s18
      %24 = dma.hbm_to_vmem [thread:$0]  %s17, 1536, %s19, [#allocation3], 128, 128, 8
    $region9: #{tpu_custom_call.1} parent=1 // pred_fallthru
      _
    // Predicated region
    $region10: #{tpu_custom_call.1} parent=1 // pred_check
      _
    $region11: #{tpu_custom_call.1} parent=1 // pred_check_branch
      %26 = sbr.rel (0) target = $region13
    $region12: #{tpu_custom_call.1} parent=1 // pred_region
      _
    $region13: #{tpu_custom_call.1} parent=1 // pred_fallthru
      _
    // Predicated region
    $region14: #{tpu_custom_call.1} parent=1 // pred_check
      _
    $region15: #{tpu_custom_call.1} parent=1 // pred_check_branch
      %28 = sbr.rel (0) target = $region17
    $region16: #{tpu_custom_call.1} parent=1 // pred_region
      %30 = dma.done [#allocation3], 1536
    $region17: #{tpu_custom_call.1} parent=1 // pred_fallthru
      _
    %v31 = vld [vmem:[#allocation2] sm:$0x1]
    %v32 = vld [vmem:[#allocation2 + $0x1] sm:$0x1]
    %v33 = vld [vmem:[#allocation2 + $0x2] sm:$0x1]
    %v34 = vld [vmem:[#allocation2 + $0x3] sm:$0x1]
    %v35 = vld [vmem:[#allocation2 + $0x4] sm:$0x1]
    %v36 = vld [vmem:[#allocation2 + $0x8] sm:$0xff]
    %v37 = vld [vmem:[#allocation2 + $0x10] sm:$0xff]
    %v38 = vld [vmem:[#allocation2 + $0x18] sm:$0xff]
    %v39 = vld [vmem:[#allocation2 + $0x20] sm:$0xff]
    %v40 = vld [vmem:[#allocation2 + $0x28] sm:$0xff]
    %v41 = vld [vmem:[#allocation2 + $0x30] sm:$0xff]
    %v42 = vld [vmem:[#allocation2 + $0x38] sm:$0xff]
    %v43 = vld [vmem:[#allocation2 + $0x40] sm:$0xff]
    %v44 = vld [vmem:[#allocation2 + $0x48] sm:$0xf]
    %v45 = vld [vmem:[#allocation2 + $0x50] sm:$0xff]
    %v46 = vld [vmem:[#allocation2 + $0x58] sm:$0xff]
    %v47 = vld [vmem:[%s0] sm:$0x3]
    %v48 = vld [vmem:[%s0 + $0x2] sm:$0x3]
    %v49 = vld [vmem:[%s0 + $0x4] sm:$0x3]
    %v50 = vld [vmem:[%s0 + $0x6] sm:$0x3]
    %v51 = vld [vmem:[%s0 + $0x8] sm:$0x3]
    %v52 = vld [vmem:[%s0 + $0xa] sm:$0x3]
    %v53 = vld [vmem:[%s0 + $0xc] sm:$0x3]
    %v54 = vld [vmem:[%s0 + $0xe] sm:$0x3]
    %56 = vset.pattern.permute.xlu0 0
    %57 = vperm.xlu0 %56, %v47
    %v58 = vpop.permute.xlu0 %57
    %61 = vset.pattern.permute.xlu0 0
    %62 = vperm.xlu0 %61, %v48
    %v63 = vpop.permute.xlu0 %62
    %66 = vset.pattern.permute.xlu0 0
    %67 = vperm.xlu0 %66, %v49
    %v68 = vpop.permute.xlu0 %67
    %71 = vset.pattern.permute.xlu0 0
    %72 = vperm.xlu0 %71, %v50
    %v73 = vpop.permute.xlu0 %72
    %76 = vset.pattern.permute.xlu0 0
    %77 = vperm.xlu0 %76, %v51
    %v78 = vpop.permute.xlu0 %77
    %81 = vset.pattern.permute.xlu0 0
    %82 = vperm.xlu0 %81, %v52
    %v83 = vpop.permute.xlu0 %82
    %86 = vset.pattern.permute.xlu0 0
    %87 = vperm.xlu0 %86, %v53
    %v88 = vpop.permute.xlu0 %87
    %91 = vset.pattern.permute.xlu0 0
    %92 = vperm.xlu0 %91, %v54
    %v93 = vpop.permute.xlu0 %92
    %v95 = vperm.slane %v31, 0
    %v96 = vmul.f32 %v58, %v95
    %v97 = vmul.f32 %v63, %v95
    %v98 = vmul.f32 %v68, %v95
    %v99 = vmul.f32 %v73, %v95
    %v100 = vmul.f32 %v78, %v95
    %v101 = vmul.f32 %v83, %v95
    %v102 = vmul.f32 %v88, %v95
    %v103 = vmul.f32 %v93, %v95
    %v104 = vperm.slane %v32, 0
    %v105 = vadd.f32 %v96, %v104
    %v106 = vadd.f32 %v97, %v104
    %v107 = vadd.f32 %v98, %v104
    %v108 = vadd.f32 %v99, %v104
    %v109 = vadd.f32 %v100, %v104
    %v110 = vadd.f32 %v101, %v104
    %v111 = vadd.f32 %v102, %v104
    %v112 = vadd.f32 %v103, %v104
    %vm113 = vcmask 261120
    %v115 = vsel %vm113, 0.0, 0
    %117 = vmatpush.msra.mxu0 0.0
    %118 = vmatpush.msra.mxu0 0.0
    %119 = vmatpush.msra.mxu0 0.0
    %120 = vmatpush.msra.mxu0 0.0
    %121 = vmatpush.msra.mxu0 0.0
    %122 = vmatpush.msra.mxu0 0.0
    %123 = vmatpush.msra.mxu0 0.0
    %124 = vmatpush.msra.mxu0 0.0
    %125 = vmatpush.msra.mxu0 0.0
    %126 = vmatpush.msra.mxu0 0.0
    %127 = vmatpush.msra.mxu0 0.0
    %128 = vmatpush.msra.mxu0 0.0
    %129 = vmatpush.msra.mxu0 %v39
    %130 = vmatpush.msra.mxu0 %v38
    %131 = vmatpush.msra.mxu0 %v37
    %132 = vmatpush.msra.mxu0 %v36
    %133 = vmatmul.f32.gmra.mxu0 %v115
    %v134 = vpop.f32.mrf.mxu0
    %v135 = vadd.f32 0.0, %v134
    %136 = vdwg.mxu0
    %v137 = vadd.f32 %v105, %v135
    %v138 = vtanh.pop %v137
    %v139 = vmul.f32 %v138, 0.5
    %v140 = vadd.f32 %v139, 0.5
    %v141 = vmul.f32 %v140, 0.0
    %143 = vrot.lane.b32.xlu0 %v138, 32
    %v144 = vpop.permute.xlu0 %143
    %v146 = vmul.f32 %v140, %v144
    %148 = vrot.lane.b32.xlu0 %v146, 32
    %v149 = vpop.permute.xlu0 %148
    %v151 = vadd.f32 %v141, %v149
    %v152 = vtanh.pop %v151
    %154 = vrot.lane.b32.xlu0 %v152, 32
    %v155 = vpop.permute.xlu0 %154
    %v157 = vmul.f32 %v140, %v155
    %159 = vrot.lane.b32.xlu0 %v157, 64
    %v160 = vpop.permute.xlu0 %159
    %v161 = vsel %vm113, %v160, 0
    %163 = vmatpush.msra.mxu0 0.0
    %164 = vmatpush.msra.mxu0 0.0
    %165 = vmatpush.msra.mxu0 0.0
    %166 = vmatpush.msra.mxu0 0.0
    %167 = vmatpush.msra.mxu0 0.0
    %168 = vmatpush.msra.mxu0 0.0
    %169 = vmatpush.msra.mxu0 0.0
    %170 = vmatpush.msra.mxu0 0.0
    %171 = vmatpush.msra.mxu0 0.0
    %172 = vmatpush.msra.mxu0 0.0
    %173 = vmatpush.msra.mxu0 0.0
    %174 = vmatpush.msra.mxu0 0.0
    %175 = vmatpush.msra.mxu0 %v39
    %176 = vmatpush.msra.mxu0 %v38
    %177 = vmatpush.msra.mxu0 %v37
    %178 = vmatpush.msra.mxu0 %v36
    %179 = vmatmul.f32.gmra.mxu0 %v161
    %v180 = vpop.f32.mrf.mxu0
    %v181 = vadd.f32 0.0, %v180
    %182 = vdwg.mxu0
    %v183 = vadd.f32 %v106, %v181
    %v184 = vtanh.pop %v183
    %v185 = vmul.f32 %v184, 0.5
    %v186 = vadd.f32 %v185, 0.5
    %v187 = vmul.f32 %v186, %v151
    %189 = vrot.lane.b32.xlu0 %v184, 32
    %v190 = vpop.permute.xlu0 %189
    %v192 = vmul.f32 %v186, %v190
    %194 = vrot.lane.b32.xlu0 %v192, 32
    %v195 = vpop.permute.xlu0 %194
    %v197 = vadd.f32 %v187, %v195
    %v198 = vtanh.pop %v197
    %200 = vrot.lane.b32.xlu0 %v198, 32
    %v201 = vpop.permute.xlu0 %200
    %v203 = vmul.f32 %v186, %v201
    %205 = vrot.lane.b32.xlu0 %v203, 64
    %v206 = vpop.permute.xlu0 %205
    %v207 = vsel %vm113, %v206, 0
    %209 = vmatpush.msra.mxu0 0.0
    %210 = vmatpush.msra.mxu0 0.0
    %211 = vmatpush.msra.mxu0 0.0
    %212 = vmatpush.msra.mxu0 0.0
    %213 = vmatpush.msra.mxu0 0.0
    %214 = vmatpush.msra.mxu0 0.0
    %215 = vmatpush.msra.mxu0 0.0
    %216 = vmatpush.msra.mxu0 0.0
    %217 = vmatpush.msra.mxu0 0.0
    %218 = vmatpush.msra.mxu0 0.0
    %219 = vmatpush.msra.mxu0 0.0
    %220 = vmatpush.msra.mxu0 0.0
    %221 = vmatpush.msra.mxu0 %v39
    %222 = vmatpush.msra.mxu0 %v38
    %223 = vmatpush.msra.mxu0 %v37
    %224 = vmatpush.msra.mxu0 %v36
    %225 = vmatmul.f32.gmra.mxu0 %v207
    %v226 = vpop.f32.mrf.mxu0
    %v227 = vadd.f32 0.0, %v226
    %228 = vdwg.mxu0
    %v229 = vadd.f32 %v107, %v227
    %v230 = vtanh.pop %v229
    %v231 = vmul.f32 %v230, 0.5
    %v232 = vadd.f32 %v231, 0.5
    %v233 = vmul.f32 %v232, %v197
    %235 = vrot.lane.b32.xlu0 %v230, 32
    %v236 = vpop.permute.xlu0 %235
    %v238 = vmul.f32 %v232, %v236
    %240 = vrot.lane.b32.xlu0 %v238, 32
    %v241 = vpop.permute.xlu0 %240
    %v243 = vadd.f32 %v233, %v241
    %v244 = vtanh.pop %v243
    %246 = vrot.lane.b32.xlu0 %v244, 32
    %v247 = vpop.permute.xlu0 %246
    %v249 = vmul.f32 %v232, %v247
    %251 = vrot.lane.b32.xlu0 %v249, 64
    %v252 = vpop.permute.xlu0 %251
    %v253 = vsel %vm113, %v252, 0
    %255 = vmatpush.msra.mxu0 0.0
    %256 = vmatpush.msra.mxu0 0.0
    %257 = vmatpush.msra.mxu0 0.0
    %258 = vmatpush.msra.mxu0 0.0
    %259 = vmatpush.msra.mxu0 0.0
    %260 = vmatpush.msra.mxu0 0.0
    %261 = vmatpush.msra.mxu0 0.0
    %262 = vmatpush.msra.mxu0 0.0
    %263 = vmatpush.msra.mxu0 0.0
    %264 = vmatpush.msra.mxu0 0.0
    %265 = vmatpush.msra.mxu0 0.0
    %266 = vmatpush.msra.mxu0 0.0
    %267 = vmatpush.msra.mxu0 %v39
    %268 = vmatpush.msra.mxu0 %v38
    %269 = vmatpush.msra.mxu0 %v37
    %270 = vmatpush.msra.mxu0 %v36
    %271 = vmatmul.f32.gmra.mxu0 %v253
    %v272 = vpop.f32.mrf.mxu0
    %v273 = vadd.f32 0.0, %v272
    %274 = vdwg.mxu0
    %v275 = vadd.f32 %v108, %v273
    %v276 = vtanh.pop %v275
    %v277 = vmul.f32 %v276, 0.5
    %v278 = vadd.f32 %v277, 0.5
    %v279 = vmul.f32 %v278, %v243
    %281 = vrot.lane.b32.xlu0 %v276, 32
    %v282 = vpop.permute.xlu0 %281
    %v284 = vmul.f32 %v278, %v282
    %286 = vrot.lane.b32.xlu0 %v284, 32
    %v287 = vpop.permute.xlu0 %286
    %v289 = vadd.f32 %v279, %v287
    %v290 = vtanh.pop %v289
    %292 = vrot.lane.b32.xlu0 %v290, 32
    %v293 = vpop.permute.xlu0 %292
    %v295 = vmul.f32 %v278, %v293
    %297 = vrot.lane.b32.xlu0 %v295, 64
    %v298 = vpop.permute.xlu0 %297
    %v299 = vsel %vm113, %v298, 0
    %301 = vmatpush.msra.mxu0 0.0
    %302 = vmatpush.msra.mxu0 0.0
    %303 = vmatpush.msra.mxu0 0.0
    %304 = vmatpush.msra.mxu0 0.0
    %305 = vmatpush.msra.mxu0 0.0
    %306 = vmatpush.msra.mxu0 0.0
    %307 = vmatpush.msra.mxu0 0.0
    %308 = vmatpush.msra.mxu0 0.0
    %309 = vmatpush.msra.mxu0 0.0
    %310 = vmatpush.msra.mxu0 0.0
    %311 = vmatpush.msra.mxu0 0.0
    %312 = vmatpush.msra.mxu0 0.0
    %313 = vmatpush.msra.mxu0 %v39
    %314 = vmatpush.msra.mxu0 %v38
    %315 = vmatpush.msra.mxu0 %v37
    %316 = vmatpush.msra.mxu0 %v36
    %317 = vmatmul.f32.gmra.mxu0 %v299
    %v318 = vpop.f32.mrf.mxu0
    %v319 = vadd.f32 0.0, %v318
    %320 = vdwg.mxu0
    %v321 = vadd.f32 %v109, %v319
    %v322 = vtanh.pop %v321
    %v323 = vmul.f32 %v322, 0.5
    %v324 = vadd.f32 %v323, 0.5
    %v325 = vmul.f32 %v324, %v289
    %327 = vrot.lane.b32.xlu0 %v322, 32
    %v328 = vpop.permute.xlu0 %327
    %v330 = vmul.f32 %v324, %v328
    %332 = vrot.lane.b32.xlu0 %v330, 32
    %v333 = vpop.permute.xlu0 %332
    %v335 = vadd.f32 %v325, %v333
    %v336 = vtanh.pop %v335
    %338 = vrot.lane.b32.xlu0 %v336, 32
    %v339 = vpop.permute.xlu0 %338
    %v341 = vmul.f32 %v324, %v339
    %343 = vrot.lane.b32.xlu0 %v341, 64
    %v344 = vpop.permute.xlu0 %343
    %v345 = vsel %vm113, %v344, 0
    %347 = vmatpush.msra.mxu0 0.0
    %348 = vmatpush.msra.mxu0 0.0
    %349 = vmatpush.msra.mxu0 0.0
    %350 = vmatpush.msra.mxu0 0.0
    %351 = vmatpush.msra.mxu0 0.0
    %352 = vmatpush.msra.mxu0 0.0
    %353 = vmatpush.msra.mxu0 0.0
    %354 = vmatpush.msra.mxu0 0.0
    %355 = vmatpush.msra.mxu0 0.0
    %356 = vmatpush.msra.mxu0 0.0
    %357 = vmatpush.msra.mxu0 0.0
    %358 = vmatpush.msra.mxu0 0.0
    %359 = vmatpush.msra.mxu0 %v39
    %360 = vmatpush.msra.mxu0 %v38
    %361 = vmatpush.msra.mxu0 %v37
    %362 = vmatpush.msra.mxu0 %v36
    %363 = vmatmul.f32.gmra.mxu0 %v345
    %v364 = vpop.f32.mrf.mxu0
    %v365 = vadd.f32 0.0, %v364
    %366 = vdwg.mxu0
    %v367 = vadd.f32 %v110, %v365
    %v368 = vtanh.pop %v367
    %v369 = vmul.f32 %v368, 0.5
    %v370 = vadd.f32 %v369, 0.5
    %v371 = vmul.f32 %v370, %v335
    %373 = vrot.lane.b32.xlu0 %v368, 32
    %v374 = vpop.permute.xlu0 %373
    %v376 = vmul.f32 %v370, %v374
    %378 = vrot.lane.b32.xlu0 %v376, 32
    %v379 = vpop.permute.xlu0 %378
    %v381 = vadd.f32 %v371, %v379
    %v382 = vtanh.pop %v381
    %384 = vrot.lane.b32.xlu0 %v382, 32
    %v385 = vpop.permute.xlu0 %384
    %v387 = vmul.f32 %v370, %v385
    %389 = vrot.lane.b32.xlu0 %v387, 64
    %v390 = vpop.permute.xlu0 %389
    %v391 = vsel %vm113, %v390, 0
    %393 = vmatpush.msra.mxu0 0.0
    %394 = vmatpush.msra.mxu0 0.0
    %395 = vmatpush.msra.mxu0 0.0
    %396 = vmatpush.msra.mxu0 0.0
    %397 = vmatpush.msra.mxu0 0.0
    %398 = vmatpush.msra.mxu0 0.0
    %399 = vmatpush.msra.mxu0 0.0
    %400 = vmatpush.msra.mxu0 0.0
    %401 = vmatpush.msra.mxu0 0.0
    %402 = vmatpush.msra.mxu0 0.0
    %403 = vmatpush.msra.mxu0 0.0
    %404 = vmatpush.msra.mxu0 0.0
    %405 = vmatpush.msra.mxu0 %v39
    %406 = vmatpush.msra.mxu0 %v38
    %407 = vmatpush.msra.mxu0 %v37
    %408 = vmatpush.msra.mxu0 %v36
    %409 = vmatmul.f32.gmra.mxu0 %v391
    %v410 = vpop.f32.mrf.mxu0
    %v411 = vadd.f32 0.0, %v410
    %412 = vdwg.mxu0
    %v413 = vadd.f32 %v111, %v411
    %v414 = vtanh.pop %v413
    %v415 = vmul.f32 %v414, 0.5
    %v416 = vadd.f32 %v415, 0.5
    %v417 = vmul.f32 %v416, %v381
    %419 = vrot.lane.b32.xlu0 %v414, 32
    %v420 = vpop.permute.xlu0 %419
    %v422 = vmul.f32 %v416, %v420
    %424 = vrot.lane.b32.xlu0 %v422, 32
    %v425 = vpop.permute.xlu0 %424
    %v427 = vadd.f32 %v417, %v425
    %v428 = vtanh.pop %v427
    %430 = vrot.lane.b32.xlu0 %v428, 32
    %v431 = vpop.permute.xlu0 %430
    %v433 = vmul.f32 %v416, %v431
    %435 = vrot.lane.b32.xlu0 %v433, 64
    %v436 = vpop.permute.xlu0 %435
    %v437 = vsel %vm113, %v436, 0
    %439 = vmatpush.msra.mxu0 0.0
    %440 = vmatpush.msra.mxu0 0.0
    %441 = vmatpush.msra.mxu0 0.0
    %442 = vmatpush.msra.mxu0 0.0
    %443 = vmatpush.msra.mxu0 0.0
    %444 = vmatpush.msra.mxu0 0.0
    %445 = vmatpush.msra.mxu0 0.0
    %446 = vmatpush.msra.mxu0 0.0
    %447 = vmatpush.msra.mxu0 0.0
    %448 = vmatpush.msra.mxu0 0.0
    %449 = vmatpush.msra.mxu0 0.0
    %450 = vmatpush.msra.mxu0 0.0
    %451 = vmatpush.msra.mxu0 %v39
    %452 = vmatpush.msra.mxu0 %v38
    %453 = vmatpush.msra.mxu0 %v37
    %454 = vmatpush.msra.mxu0 %v36
    %455 = vmatmul.f32.gmra.mxu0 %v437
    %v456 = vpop.f32.mrf.mxu0
    %v457 = vadd.f32 0.0, %v456
    %458 = vdwg.mxu0
    %v459 = vadd.f32 %v112, %v457
    %v460 = vtanh.pop %v459
    %v461 = vmul.f32 %v460, 0.5
    %v462 = vadd.f32 %v461, 0.5
    %v463 = vmul.f32 %v462, %v427
    %465 = vrot.lane.b32.xlu0 %v460, 32
    %v466 = vpop.permute.xlu0 %465
    %v468 = vmul.f32 %v462, %v466
    %470 = vrot.lane.b32.xlu0 %v468, 32
    %v471 = vpop.permute.xlu0 %470
    %v473 = vadd.f32 %v463, %v471
    %v474 = vtanh.pop %v473
    %476 = vrot.lane.b32.xlu0 %v474, 32
    %v477 = vpop.permute.xlu0 %476
    %v479 = vmul.f32 %v462, %v477
    %481 = vrot.lane.b32.xlu0 %v479, 64
    %v482 = vpop.permute.xlu0 %481
    %v483 = vsel %vm113, %v482, 0
    %485 = vmatpush.msra.mxu0 0.0
    %486 = vmatpush.msra.mxu0 0.0
    %487 = vmatpush.msra.mxu0 0.0
    %488 = vmatpush.msra.mxu0 0.0
    %489 = vmatpush.msra.mxu0 0.0
    %490 = vmatpush.msra.mxu0 0.0
    %491 = vmatpush.msra.mxu0 0.0
    %492 = vmatpush.msra.mxu0 0.0
    %493 = vmatpush.msra.mxu0 0.0
    %494 = vmatpush.msra.mxu0 0.0
    %495 = vmatpush.msra.mxu0 0.0
    %496 = vmatpush.msra.mxu0 0.0
    %497 = vmatpush.msra.mxu0 %v43
    %498 = vmatpush.msra.mxu0 %v42
    %499 = vmatpush.msra.mxu0 %v41
    %500 = vmatpush.msra.mxu0 %v40
    %501 = vmatmul.f32.gmra.mxu0 %v483
    %v502 = vpop.f32.mrf.mxu0
    %v503 = vadd.f32 0.0, %v502
    %504 = vdwg.mxu0
    %v505 = vperm.slane %v33, 0
    %v506 = vadd.f32 %v503, %v505
    %v507 = vld [vmem:[%s2] sm:$0x3]
    %v508 = vld [vmem:[%s2 + $0x2] sm:$0x3]
    %v509 = vld [vmem:[%s2 + $0x4] sm:$0x3]
    %v510 = vld [vmem:[%s2 + $0x6] sm:$0x3]
    %v511 = vld [vmem:[%s2 + $0x8] sm:$0x3]
    %v512 = vld [vmem:[%s2 + $0xa] sm:$0x3]
    %v513 = vld [vmem:[%s2 + $0xc] sm:$0x3]
    %v514 = vld [vmem:[%s2 + $0xe] sm:$0x3]
    %v515 = vld [vmem:[%s2 + $0x10] sm:$0x3]
    %v516 = vld [vmem:[%s2 + $0x12] sm:$0x3]
    %518 = vset.pattern.permute.xlu0 0
    %519 = vperm.xlu0 %518, %v506
    %v520 = vpop.permute.xlu0 %519
    %v522 = vperm.slane %v44, 0
    %v523 = vmul.f32 %v520, %v522
    %524 = vset.pattern.permute.xlu0 1
    %525 = vperm.xlu0 %524, %v506
    %v526 = vpop.permute.xlu0 %525
    %v528 = vperm.slane %v44, 1
    %v529 = vmul.f32 %v526, %v528
    %530 = vset.pattern.permute.xlu0 2
    %531 = vperm.xlu0 %530, %v506
    %v532 = vpop.permute.xlu0 %531
    %v534 = vperm.slane %v44, 2
    %v535 = vmul.f32 %v532, %v534
    %536 = vset.pattern.permute.xlu0 3
    %537 = vperm.xlu0 %536, %v506
    %v538 = vpop.permute.xlu0 %537
    %v540 = vperm.slane %v44, 3
    %v541 = vmul.f32 %v538, %v540
    %v542 = vadd.f32 %v523, %v529
    %v543 = vadd.f32 %v535, %v541
    %v544 = vadd.f32 %v542, %v543
    %v545 = vperm.slane %v34, 0
    %v546 = vadd.f32 %v544, %v545
    %v547 = vtanh.pop %v546
    %549 = vset.pattern.permute.xlu0 0
    %550 = vperm.xlu0 %549, %v547
    %v551 = vpop.permute.xlu0 %550
    %v553 = vperm.slane %v45, 0
    %v554 = vmul.f32 %v551, %v553
    %555 = vset.pattern.permute.xlu0 1
    %556 = vperm.xlu0 %555, %v547
    %v557 = vpop.permute.xlu0 %556
    %v559 = vperm.slane %v45, 1
    %v560 = vmul.f32 %v557, %v559
    %561 = vset.pattern.permute.xlu0 2
    %562 = vperm.xlu0 %561, %v547
    %v563 = vpop.permute.xlu0 %562
    %v565 = vperm.slane %v45, 2
    %v566 = vmul.f32 %v563, %v565
    %567 = vset.pattern.permute.xlu0 3
    %568 = vperm.xlu0 %567, %v547
    %v569 = vpop.permute.xlu0 %568
    %v571 = vperm.slane %v45, 3
    %v572 = vmul.f32 %v569, %v571
    %573 = vset.pattern.permute.xlu0 4
    %574 = vperm.xlu0 %573, %v547
    %v575 = vpop.permute.xlu0 %574
    %v577 = vperm.slane %v45, 4
    %v578 = vmul.f32 %v575, %v577
    %579 = vset.pattern.permute.xlu0 5
    %580 = vperm.xlu0 %579, %v547
    %v581 = vpop.permute.xlu0 %580
    %v583 = vperm.slane %v45, 5
    %v584 = vmul.f32 %v581, %v583
    %585 = vset.pattern.permute.xlu0 6
    %586 = vperm.xlu0 %585, %v547
    %v587 = vpop.permute.xlu0 %586
    %v589 = vperm.slane %v45, 6
    %v590 = vmul.f32 %v587, %v589
    %591 = vset.pattern.permute.xlu0 7
    %592 = vperm.xlu0 %591, %v547
    %v593 = vpop.permute.xlu0 %592
    %v595 = vperm.slane %v45, 7
    %v596 = vmul.f32 %v593, %v595
    %597 = vset.pattern.permute.xlu0 8
    %598 = vperm.xlu0 %597, %v547
    %v599 = vpop.permute.xlu0 %598
    %v601 = vperm.slane %v46, 0
    %v602 = vmul.f32 %v599, %v601
    %603 = vset.pattern.permute.xlu0 9
    %604 = vperm.xlu0 %603, %v547
    %v605 = vpop.permute.xlu0 %604
    %v607 = vperm.slane %v46, 1
    %v608 = vmul.f32 %v605, %v607
    %609 = vset.pattern.permute.xlu0 10
    %610 = vperm.xlu0 %609, %v547
    %v611 = vpop.permute.xlu0 %610
    %v613 = vperm.slane %v46, 2
    %v614 = vmul.f32 %v611, %v613
    %615 = vset.pattern.permute.xlu0 11
    %616 = vperm.xlu0 %615, %v547
    %v617 = vpop.permute.xlu0 %616
    %v619 = vperm.slane %v46, 3
    %v620 = vmul.f32 %v617, %v619
    %621 = vset.pattern.permute.xlu0 12
    %622 = vperm.xlu0 %621, %v547
    %v623 = vpop.permute.xlu0 %622
    %v625 = vperm.slane %v46, 4
    %v626 = vmul.f32 %v623, %v625
    %627 = vset.pattern.permute.xlu0 13
    %628 = vperm.xlu0 %627, %v547
    %v629 = vpop.permute.xlu0 %628
    %v631 = vperm.slane %v46, 5
    %v632 = vmul.f32 %v629, %v631
    %633 = vset.pattern.permute.xlu0 14
    %634 = vperm.xlu0 %633, %v547
    %v635 = vpop.permute.xlu0 %634
    %v637 = vperm.slane %v46, 6
    %v638 = vmul.f32 %v635, %v637
    %639 = vset.pattern.permute.xlu0 15
    %640 = vperm.xlu0 %639, %v547
    %v641 = vpop.permute.xlu0 %640
    %v643 = vperm.slane %v46, 7
    %v644 = vmul.f32 %v641, %v643
    %v645 = vadd.f32 %v554, %v560
    %v646 = vadd.f32 %v566, %v572
    %v647 = vadd.f32 %v578, %v584
    %v648 = vadd.f32 %v590, %v596
    %v649 = vadd.f32 %v602, %v608
    %v650 = vadd.f32 %v614, %v620
    %v651 = vadd.f32 %v626, %v632
    %v652 = vadd.f32 %v638, %v644
    %v653 = vadd.f32 %v645, %v646
    %v654 = vadd.f32 %v647, %v648
    %v655 = vadd.f32 %v649, %v650
    %v656 = vadd.f32 %v651, %v652
    %v657 = vadd.f32 %v653, %v654
    %v658 = vadd.f32 %v655, %v656
    %v659 = vadd.f32 %v657, %v658
    %v660 = vperm.slane %v35, 0
    %v661 = vadd.f32 %v659, %v660
    %v662 = vadd.f32 %v506, %v661
    %664 = vrot.lane.b32.xlu0 %v507, 4
    %v665 = vpop.permute.xlu0 %664
    %v667 = vmul.f32 %v661, %v665
    %669 = vrot.lane.b32.xlu0 %v667, 124
    %v670 = vpop.permute.xlu0 %669
    %v672 = vadd.f32 %v662, %v670
    %674 = vset.pattern.permute.xlu0 0
    %675 = vperm.xlu0 %674, %v672
    %v676 = vpop.permute.xlu0 %675
    %v678 = vmul.f32 %v676, %v522
    %679 = vset.pattern.permute.xlu0 1
    %680 = vperm.xlu0 %679, %v672
    %v681 = vpop.permute.xlu0 %680
    %v683 = vmul.f32 %v681, %v528
    %684 = vset.pattern.permute.xlu0 2
    %685 = vperm.xlu0 %684, %v672
    %v686 = vpop.permute.xlu0 %685
    %v688 = vmul.f32 %v686, %v534
    %689 = vset.pattern.permute.xlu0 3
    %690 = vperm.xlu0 %689, %v672
    %v691 = vpop.permute.xlu0 %690
    %v693 = vmul.f32 %v691, %v540
    %v694 = vadd.f32 %v678, %v683
    %v695 = vadd.f32 %v688, %v693
    %v696 = vadd.f32 %v694, %v695
    %v697 = vadd.f32 %v696, %v545
    %v698 = vtanh.pop %v697
    %700 = vset.pattern.permute.xlu0 0
    %701 = vperm.xlu0 %700, %v698
    %v702 = vpop.permute.xlu0 %701
    %v704 = vmul.f32 %v702, %v553
    %705 = vset.pattern.permute.xlu0 1
    %706 = vperm.xlu0 %705, %v698
    %v707 = vpop.permute.xlu0 %706
    %v709 = vmul.f32 %v707, %v559
    %710 = vset.pattern.permute.xlu0 2
    %711 = vperm.xlu0 %710, %v698
    %v712 = vpop.permute.xlu0 %711
    %v714 = vmul.f32 %v712, %v565
    %715 = vset.pattern.permute.xlu0 3
    %716 = vperm.xlu0 %715, %v698
    %v717 = vpop.permute.xlu0 %716
    %v719 = vmul.f32 %v717, %v571
    %720 = vset.pattern.permute.xlu0 4
    %721 = vperm.xlu0 %720, %v698
    %v722 = vpop.permute.xlu0 %721
    %v724 = vmul.f32 %v722, %v577
    %725 = vset.pattern.permute.xlu0 5
    %726 = vperm.xlu0 %725, %v698
    %v727 = vpop.permute.xlu0 %726
    %v729 = vmul.f32 %v727, %v583
    %730 = vset.pattern.permute.xlu0 6
    %731 = vperm.xlu0 %730, %v698
    %v732 = vpop.permute.xlu0 %731
    %v734 = vmul.f32 %v732, %v589
    %735 = vset.pattern.permute.xlu0 7
    %736 = vperm.xlu0 %735, %v698
    %v737 = vpop.permute.xlu0 %736
    %v739 = vmul.f32 %v737, %v595
    %740 = vset.pattern.permute.xlu0 8
    %741 = vperm.xlu0 %740, %v698
    %v742 = vpop.permute.xlu0 %741
    %v744 = vmul.f32 %v742, %v601
    %745 = vset.pattern.permute.xlu0 9
    %746 = vperm.xlu0 %745, %v698
    %v747 = vpop.permute.xlu0 %746
    %v749 = vmul.f32 %v747, %v607
    %750 = vset.pattern.permute.xlu0 10
    %751 = vperm.xlu0 %750, %v698
    %v752 = vpop.permute.xlu0 %751
    %v754 = vmul.f32 %v752, %v613
    %755 = vset.pattern.permute.xlu0 11
    %756 = vperm.xlu0 %755, %v698
    %v757 = vpop.permute.xlu0 %756
    %v759 = vmul.f32 %v757, %v619
    %760 = vset.pattern.permute.xlu0 12
    %761 = vperm.xlu0 %760, %v698
    %v762 = vpop.permute.xlu0 %761
    %v764 = vmul.f32 %v762, %v625
    %765 = vset.pattern.permute.xlu0 13
    %766 = vperm.xlu0 %765, %v698
    %v767 = vpop.permute.xlu0 %766
    %v769 = vmul.f32 %v767, %v631
    %770 = vset.pattern.permute.xlu0 14
    %771 = vperm.xlu0 %770, %v698
    %v772 = vpop.permute.xlu0 %771
    %v774 = vmul.f32 %v772, %v637
    %775 = vset.pattern.permute.xlu0 15
    %776 = vperm.xlu0 %775, %v698
    %v777 = vpop.permute.xlu0 %776
    %v779 = vmul.f32 %v777, %v643
    %v780 = vadd.f32 %v704, %v709
    %v781 = vadd.f32 %v714, %v719
    %v782 = vadd.f32 %v724, %v729
    %v783 = vadd.f32 %v734, %v739
    %v784 = vadd.f32 %v744, %v749
    %v785 = vadd.f32 %v754, %v759
    %v786 = vadd.f32 %v764, %v769
    %v787 = vadd.f32 %v774, %v779
    %v788 = vadd.f32 %v780, %v781
    %v789 = vadd.f32 %v782, %v783
    %v790 = vadd.f32 %v784, %v785
    %v791 = vadd.f32 %v786, %v787
    %v792 = vadd.f32 %v788, %v789
    %v793 = vadd.f32 %v790, %v791
    %v794 = vadd.f32 %v792, %v793
    %v795 = vadd.f32 %v794, %v660
    %v796 = vadd.f32 %v672, %v795
    %798 = vrot.lane.b32.xlu0 %v508, 4
    %v799 = vpop.permute.xlu0 %798
    %v801 = vmul.f32 %v795, %v799
    %803 = vrot.lane.b32.xlu0 %v801, 124
    %v804 = vpop.permute.xlu0 %803
    %v806 = vadd.f32 %v796, %v804
    %808 = vset.pattern.permute.xlu0 0
    %809 = vperm.xlu0 %808, %v806
    %v810 = vpop.permute.xlu0 %809
    %v812 = vmul.f32 %v810, %v522
    %813 = vset.pattern.permute.xlu0 1
    %814 = vperm.xlu0 %813, %v806
    %v815 = vpop.permute.xlu0 %814
    %v817 = vmul.f32 %v815, %v528
    %818 = vset.pattern.permute.xlu0 2
    %819 = vperm.xlu0 %818, %v806
    %v820 = vpop.permute.xlu0 %819
    %v822 = vmul.f32 %v820, %v534
    %823 = vset.pattern.permute.xlu0 3
    %824 = vperm.xlu0 %823, %v806
    %v825 = vpop.permute.xlu0 %824
    %v827 = vmul.f32 %v825, %v540
    %v828 = vadd.f32 %v812, %v817
    %v829 = vadd.f32 %v822, %v827
    %v830 = vadd.f32 %v828, %v829
    %v831 = vadd.f32 %v830, %v545
    %v832 = vtanh.pop %v831
    %834 = vset.pattern.permute.xlu0 0
    %835 = vperm.xlu0 %834, %v832
    %v836 = vpop.permute.xlu0 %835
    %v838 = vmul.f32 %v836, %v553
    %839 = vset.pattern.permute.xlu0 1
    %840 = vperm.xlu0 %839, %v832
    %v841 = vpop.permute.xlu0 %840
    %v843 = vmul.f32 %v841, %v559
    %844 = vset.pattern.permute.xlu0 2
    %845 = vperm.xlu0 %844, %v832
    %v846 = vpop.permute.xlu0 %845
    %v848 = vmul.f32 %v846, %v565
    %849 = vset.pattern.permute.xlu0 3
    %850 = vperm.xlu0 %849, %v832
    %v851 = vpop.permute.xlu0 %850
    %v853 = vmul.f32 %v851, %v571
    %854 = vset.pattern.permute.xlu0 4
    %855 = vperm.xlu0 %854, %v832
    %v856 = vpop.permute.xlu0 %855
    %v858 = vmul.f32 %v856, %v577
    %859 = vset.pattern.permute.xlu0 5
    %860 = vperm.xlu0 %859, %v832
    %v861 = vpop.permute.xlu0 %860
    %v863 = vmul.f32 %v861, %v583
    %864 = vset.pattern.permute.xlu0 6
    %865 = vperm.xlu0 %864, %v832
    %v866 = vpop.permute.xlu0 %865
    %v868 = vmul.f32 %v866, %v589
    %869 = vset.pattern.permute.xlu0 7
    %870 = vperm.xlu0 %869, %v832
    %v871 = vpop.permute.xlu0 %870
    %v873 = vmul.f32 %v871, %v595
    %874 = vset.pattern.permute.xlu0 8
    %875 = vperm.xlu0 %874, %v832
    %v876 = vpop.permute.xlu0 %875
    %v878 = vmul.f32 %v876, %v601
    %879 = vset.pattern.permute.xlu0 9
    %880 = vperm.xlu0 %879, %v832
    %v881 = vpop.permute.xlu0 %880
    %v883 = vmul.f32 %v881, %v607
    %884 = vset.pattern.permute.xlu0 10
    %885 = vperm.xlu0 %884, %v832
    %v886 = vpop.permute.xlu0 %885
    %v888 = vmul.f32 %v886, %v613
    %889 = vset.pattern.permute.xlu0 11
    %890 = vperm.xlu0 %889, %v832
    %v891 = vpop.permute.xlu0 %890
    %v893 = vmul.f32 %v891, %v619
    %894 = vset.pattern.permute.xlu0 12
    %895 = vperm.xlu0 %894, %v832
    %v896 = vpop.permute.xlu0 %895
    %v898 = vmul.f32 %v896, %v625
    %899 = vset.pattern.permute.xlu0 13
    %900 = vperm.xlu0 %899, %v832
    %v901 = vpop.permute.xlu0 %900
    %v903 = vmul.f32 %v901, %v631
    %904 = vset.pattern.permute.xlu0 14
    %905 = vperm.xlu0 %904, %v832
    %v906 = vpop.permute.xlu0 %905
    %v908 = vmul.f32 %v906, %v637
    %909 = vset.pattern.permute.xlu0 15
    %910 = vperm.xlu0 %909, %v832
    %v911 = vpop.permute.xlu0 %910
    %v913 = vmul.f32 %v911, %v643
    %v914 = vadd.f32 %v838, %v843
    %v915 = vadd.f32 %v848, %v853
    %v916 = vadd.f32 %v858, %v863
    %v917 = vadd.f32 %v868, %v873
    %v918 = vadd.f32 %v878, %v883
    %v919 = vadd.f32 %v888, %v893
    %v920 = vadd.f32 %v898, %v903
    %v921 = vadd.f32 %v908, %v913
    %v922 = vadd.f32 %v914, %v915
    %v923 = vadd.f32 %v916, %v917
    %v924 = vadd.f32 %v918, %v919
    %v925 = vadd.f32 %v920, %v921
    %v926 = vadd.f32 %v922, %v923
    %v927 = vadd.f32 %v924, %v925
    %v928 = vadd.f32 %v926, %v927
    %v929 = vadd.f32 %v928, %v660
    %v930 = vadd.f32 %v806, %v929
    %932 = vrot.lane.b32.xlu0 %v509, 4
    %v933 = vpop.permute.xlu0 %932
    %v935 = vmul.f32 %v929, %v933
    %937 = vrot.lane.b32.xlu0 %v935, 124
    %v938 = vpop.permute.xlu0 %937
    %v940 = vadd.f32 %v930, %v938
    %942 = vset.pattern.permute.xlu0 0
    %943 = vperm.xlu0 %942, %v940
    %v944 = vpop.permute.xlu0 %943
    %v946 = vmul.f32 %v944, %v522
    %947 = vset.pattern.permute.xlu0 1
    %948 = vperm.xlu0 %947, %v940
    %v949 = vpop.permute.xlu0 %948
    %v951 = vmul.f32 %v949, %v528
    %952 = vset.pattern.permute.xlu0 2
    %953 = vperm.xlu0 %952, %v940
    %v954 = vpop.permute.xlu0 %953
    %v956 = vmul.f32 %v954, %v534
    %957 = vset.pattern.permute.xlu0 3
    %958 = vperm.xlu0 %957, %v940
    %v959 = vpop.permute.xlu0 %958
    %v961 = vmul.f32 %v959, %v540
    %v962 = vadd.f32 %v946, %v951
    %v963 = vadd.f32 %v956, %v961
    %v964 = vadd.f32 %v962, %v963
    %v965 = vadd.f32 %v964, %v545
    %v966 = vtanh.pop %v965
    %968 = vset.pattern.permute.xlu0 0
    %969 = vperm.xlu0 %968, %v966
    %v970 = vpop.permute.xlu0 %969
    %v972 = vmul.f32 %v970, %v553
    %973 = vset.pattern.permute.xlu0 1
    %974 = vperm.xlu0 %973, %v966
    %v975 = vpop.permute.xlu0 %974
    %v977 = vmul.f32 %v975, %v559
    %978 = vset.pattern.permute.xlu0 2
    %979 = vperm.xlu0 %978, %v966
    %v980 = vpop.permute.xlu0 %979
    %v982 = vmul.f32 %v980, %v565
    %983 = vset.pattern.permute.xlu0 3
    %984 = vperm.xlu0 %983, %v966
    %v985 = vpop.permute.xlu0 %984
    %v987 = vmul.f32 %v985, %v571
    %988 = vset.pattern.permute.xlu0 4
    %989 = vperm.xlu0 %988, %v966
    %v990 = vpop.permute.xlu0 %989
    %v992 = vmul.f32 %v990, %v577
    %993 = vset.pattern.permute.xlu0 5
    %994 = vperm.xlu0 %993, %v966
    %v995 = vpop.permute.xlu0 %994
    %v997 = vmul.f32 %v995, %v583
    %998 = vset.pattern.permute.xlu0 6
    %999 = vperm.xlu0 %998, %v966
    %v1000 = vpop.permute.xlu0 %999
    %v1002 = vmul.f32 %v1000, %v589
    %1003 = vset.pattern.permute.xlu0 7
    %1004 = vperm.xlu0 %1003, %v966
    %v1005 = vpop.permute.xlu0 %1004
    %v1007 = vmul.f32 %v1005, %v595
    %1008 = vset.pattern.permute.xlu0 8
    %1009 = vperm.xlu0 %1008, %v966
    %v1010 = vpop.permute.xlu0 %1009
    %v1012 = vmul.f32 %v1010, %v601
    %1013 = vset.pattern.permute.xlu0 9
    %1014 = vperm.xlu0 %1013, %v966
    %v1015 = vpop.permute.xlu0 %1014
    %v1017 = vmul.f32 %v1015, %v607
    %1018 = vset.pattern.permute.xlu0 10
    %1019 = vperm.xlu0 %1018, %v966
    %v1020 = vpop.permute.xlu0 %1019
    %v1022 = vmul.f32 %v1020, %v613
    %1023 = vset.pattern.permute.xlu0 11
    %1024 = vperm.xlu0 %1023, %v966
    %v1025 = vpop.permute.xlu0 %1024
    %v1027 = vmul.f32 %v1025, %v619
    %1028 = vset.pattern.permute.xlu0 12
    %1029 = vperm.xlu0 %1028, %v966
    %v1030 = vpop.permute.xlu0 %1029
    %v1032 = vmul.f32 %v1030, %v625
    %1033 = vset.pattern.permute.xlu0 13
    %1034 = vperm.xlu0 %1033, %v966
    %v1035 = vpop.permute.xlu0 %1034
    %v1037 = vmul.f32 %v1035, %v631
    %1038 = vset.pattern.permute.xlu0 14
    %1039 = vperm.xlu0 %1038, %v966
    %v1040 = vpop.permute.xlu0 %1039
    %v1042 = vmul.f32 %v1040, %v637
    %1043 = vset.pattern.permute.xlu0 15
    %1044 = vperm.xlu0 %1043, %v966
    %v1045 = vpop.permute.xlu0 %1044
    %v1047 = vmul.f32 %v1045, %v643
    %v1048 = vadd.f32 %v972, %v977
    %v1049 = vadd.f32 %v982, %v987
    %v1050 = vadd.f32 %v992, %v997
    %v1051 = vadd.f32 %v1002, %v1007
    %v1052 = vadd.f32 %v1012, %v1017
    %v1053 = vadd.f32 %v1022, %v1027
    %v1054 = vadd.f32 %v1032, %v1037
    %v1055 = vadd.f32 %v1042, %v1047
    %v1056 = vadd.f32 %v1048, %v1049
    %v1057 = vadd.f32 %v1050, %v1051
    %v1058 = vadd.f32 %v1052, %v1053
    %v1059 = vadd.f32 %v1054, %v1055
    %v1060 = vadd.f32 %v1056, %v1057
    %v1061 = vadd.f32 %v1058, %v1059
    %v1062 = vadd.f32 %v1060, %v1061
    %v1063 = vadd.f32 %v1062, %v660
    %v1064 = vadd.f32 %v940, %v1063
    %1066 = vrot.lane.b32.xlu0 %v510, 4
    %v1067 = vpop.permute.xlu0 %1066
    %v1069 = vmul.f32 %v1063, %v1067
    %1071 = vrot.lane.b32.xlu0 %v1069, 124
    %v1072 = vpop.permute.xlu0 %1071
    %v1074 = vadd.f32 %v1064, %v1072
    %1076 = vset.pattern.permute.xlu0 0
    %1077 = vperm.xlu0 %1076, %v1074
    %v1078 = vpop.permute.xlu0 %1077
    %v1080 = vmul.f32 %v1078, %v522
    %1081 = vset.pattern.permute.xlu0 1
    %1082 = vperm.xlu0 %1081, %v1074
    %v1083 = vpop.permute.xlu0 %1082
    %v1085 = vmul.f32 %v1083, %v528
    %1086 = vset.pattern.permute.xlu0 2
    %1087 = vperm.xlu0 %1086, %v1074
    %v1088 = vpop.permute.xlu0 %1087
    %v1090 = vmul.f32 %v1088, %v534
    %1091 = vset.pattern.permute.xlu0 3
    %1092 = vperm.xlu0 %1091, %v1074
    %v1093 = vpop.permute.xlu0 %1092
    %v1095 = vmul.f32 %v1093, %v540
    %v1096 = vadd.f32 %v1080, %v1085
    %v1097 = vadd.f32 %v1090, %v1095
    %v1098 = vadd.f32 %v1096, %v1097
    %v1099 = vadd.f32 %v1098, %v545
    %v1100 = vtanh.pop %v1099
    %1102 = vset.pattern.permute.xlu0 0
    %1103 = vperm.xlu0 %1102, %v1100
    %v1104 = vpop.permute.xlu0 %1103
    %v1106 = vmul.f32 %v1104, %v553
    %1107 = vset.pattern.permute.xlu0 1
    %1108 = vperm.xlu0 %1107, %v1100
    %v1109 = vpop.permute.xlu0 %1108
    %v1111 = vmul.f32 %v1109, %v559
    %1112 = vset.pattern.permute.xlu0 2
    %1113 = vperm.xlu0 %1112, %v1100
    %v1114 = vpop.permute.xlu0 %1113
    %v1116 = vmul.f32 %v1114, %v565
    %1117 = vset.pattern.permute.xlu0 3
    %1118 = vperm.xlu0 %1117, %v1100
    %v1119 = vpop.permute.xlu0 %1118
    %v1121 = vmul.f32 %v1119, %v571
    %1122 = vset.pattern.permute.xlu0 4
    %1123 = vperm.xlu0 %1122, %v1100
    %v1124 = vpop.permute.xlu0 %1123
    %v1126 = vmul.f32 %v1124, %v577
    %1127 = vset.pattern.permute.xlu0 5
    %1128 = vperm.xlu0 %1127, %v1100
    %v1129 = vpop.permute.xlu0 %1128
    %v1131 = vmul.f32 %v1129, %v583
    %1132 = vset.pattern.permute.xlu0 6
    %1133 = vperm.xlu0 %1132, %v1100
    %v1134 = vpop.permute.xlu0 %1133
    %v1136 = vmul.f32 %v1134, %v589
    %1137 = vset.pattern.permute.xlu0 7
    %1138 = vperm.xlu0 %1137, %v1100
    %v1139 = vpop.permute.xlu0 %1138
    %v1141 = vmul.f32 %v1139, %v595
    %1142 = vset.pattern.permute.xlu0 8
    %1143 = vperm.xlu0 %1142, %v1100
    %v1144 = vpop.permute.xlu0 %1143
    %v1146 = vmul.f32 %v1144, %v601
    %1147 = vset.pattern.permute.xlu0 9
    %1148 = vperm.xlu0 %1147, %v1100
    %v1149 = vpop.permute.xlu0 %1148
    %v1151 = vmul.f32 %v1149, %v607
    %1152 = vset.pattern.permute.xlu0 10
    %1153 = vperm.xlu0 %1152, %v1100
    %v1154 = vpop.permute.xlu0 %1153
    %v1156 = vmul.f32 %v1154, %v613
    %1157 = vset.pattern.permute.xlu0 11
    %1158 = vperm.xlu0 %1157, %v1100
    %v1159 = vpop.permute.xlu0 %1158
    %v1161 = vmul.f32 %v1159, %v619
    %1162 = vset.pattern.permute.xlu0 12
    %1163 = vperm.xlu0 %1162, %v1100
    %v1164 = vpop.permute.xlu0 %1163
    %v1166 = vmul.f32 %v1164, %v625
    %1167 = vset.pattern.permute.xlu0 13
    %1168 = vperm.xlu0 %1167, %v1100
    %v1169 = vpop.permute.xlu0 %1168
    %v1171 = vmul.f32 %v1169, %v631
    %1172 = vset.pattern.permute.xlu0 14
    %1173 = vperm.xlu0 %1172, %v1100
    %v1174 = vpop.permute.xlu0 %1173
    %v1176 = vmul.f32 %v1174, %v637
    %1177 = vset.pattern.permute.xlu0 15
    %1178 = vperm.xlu0 %1177, %v1100
    %v1179 = vpop.permute.xlu0 %1178
    %v1181 = vmul.f32 %v1179, %v643
    %v1182 = vadd.f32 %v1106, %v1111
    %v1183 = vadd.f32 %v1116, %v1121
    %v1184 = vadd.f32 %v1126, %v1131
    %v1185 = vadd.f32 %v1136, %v1141
    %v1186 = vadd.f32 %v1146, %v1151
    %v1187 = vadd.f32 %v1156, %v1161
    %v1188 = vadd.f32 %v1166, %v1171
    %v1189 = vadd.f32 %v1176, %v1181
    %v1190 = vadd.f32 %v1182, %v1183
    %v1191 = vadd.f32 %v1184, %v1185
    %v1192 = vadd.f32 %v1186, %v1187
    %v1193 = vadd.f32 %v1188, %v1189
    %v1194 = vadd.f32 %v1190, %v1191
    %v1195 = vadd.f32 %v1192, %v1193
    %v1196 = vadd.f32 %v1194, %v1195
    %v1197 = vadd.f32 %v1196, %v660
    %v1198 = vadd.f32 %v1074, %v1197
    %1200 = vrot.lane.b32.xlu0 %v511, 4
    %v1201 = vpop.permute.xlu0 %1200
    %v1203 = vmul.f32 %v1197, %v1201
    %1205 = vrot.lane.b32.xlu0 %v1203, 124
    %v1206 = vpop.permute.xlu0 %1205
    %v1208 = vadd.f32 %v1198, %v1206
    %1210 = vset.pattern.permute.xlu0 0
    %1211 = vperm.xlu0 %1210, %v1208
    %v1212 = vpop.permute.xlu0 %1211
    %v1214 = vmul.f32 %v1212, %v522
    %1215 = vset.pattern.permute.xlu0 1
    %1216 = vperm.xlu0 %1215, %v1208
    %v1217 = vpop.permute.xlu0 %1216
    %v1219 = vmul.f32 %v1217, %v528
    %1220 = vset.pattern.permute.xlu0 2
    %1221 = vperm.xlu0 %1220, %v1208
    %v1222 = vpop.permute.xlu0 %1221
    %v1224 = vmul.f32 %v1222, %v534
    %1225 = vset.pattern.permute.xlu0 3
    %1226 = vperm.xlu0 %1225, %v1208
    %v1227 = vpop.permute.xlu0 %1226
    %v1229 = vmul.f32 %v1227, %v540
    %v1230 = vadd.f32 %v1214, %v1219
    %v1231 = vadd.f32 %v1224, %v1229
    %v1232 = vadd.f32 %v1230, %v1231
    %v1233 = vadd.f32 %v1232, %v545
    %v1234 = vtanh.pop %v1233
    %1236 = vset.pattern.permute.xlu0 0
    %1237 = vperm.xlu0 %1236, %v1234
    %v1238 = vpop.permute.xlu0 %1237
    %v1240 = vmul.f32 %v1238, %v553
    %1241 = vset.pattern.permute.xlu0 1
    %1242 = vperm.xlu0 %1241, %v1234
    %v1243 = vpop.permute.xlu0 %1242
    %v1245 = vmul.f32 %v1243, %v559
    %1246 = vset.pattern.permute.xlu0 2
    %1247 = vperm.xlu0 %1246, %v1234
    %v1248 = vpop.permute.xlu0 %1247
    %v1250 = vmul.f32 %v1248, %v565
    %1251 = vset.pattern.permute.xlu0 3
    %1252 = vperm.xlu0 %1251, %v1234
    %v1253 = vpop.permute.xlu0 %1252
    %v1255 = vmul.f32 %v1253, %v571
    %1256 = vset.pattern.permute.xlu0 4
    %1257 = vperm.xlu0 %1256, %v1234
    %v1258 = vpop.permute.xlu0 %1257
    %v1260 = vmul.f32 %v1258, %v577
    %1261 = vset.pattern.permute.xlu0 5
    %1262 = vperm.xlu0 %1261, %v1234
    %v1263 = vpop.permute.xlu0 %1262
    %v1265 = vmul.f32 %v1263, %v583
    %1266 = vset.pattern.permute.xlu0 6
    %1267 = vperm.xlu0 %1266, %v1234
    %v1268 = vpop.permute.xlu0 %1267
    %v1270 = vmul.f32 %v1268, %v589
    %1271 = vset.pattern.permute.xlu0 7
    %1272 = vperm.xlu0 %1271, %v1234
    %v1273 = vpop.permute.xlu0 %1272
    %v1275 = vmul.f32 %v1273, %v595
    %1276 = vset.pattern.permute.xlu0 8
    %1277 = vperm.xlu0 %1276, %v1234
    %v1278 = vpop.permute.xlu0 %1277
    %v1280 = vmul.f32 %v1278, %v601
    %1281 = vset.pattern.permute.xlu0 9
    %1282 = vperm.xlu0 %1281, %v1234
    %v1283 = vpop.permute.xlu0 %1282
    %v1285 = vmul.f32 %v1283, %v607
    %1286 = vset.pattern.permute.xlu0 10
    %1287 = vperm.xlu0 %1286, %v1234
    %v1288 = vpop.permute.xlu0 %1287
    %v1290 = vmul.f32 %v1288, %v613
    %1291 = vset.pattern.permute.xlu0 11
    %1292 = vperm.xlu0 %1291, %v1234
    %v1293 = vpop.permute.xlu0 %1292
    %v1295 = vmul.f32 %v1293, %v619
    %1296 = vset.pattern.permute.xlu0 12
    %1297 = vperm.xlu0 %1296, %v1234
    %v1298 = vpop.permute.xlu0 %1297
    %v1300 = vmul.f32 %v1298, %v625
    %1301 = vset.pattern.permute.xlu0 13
    %1302 = vperm.xlu0 %1301, %v1234
    %v1303 = vpop.permute.xlu0 %1302
    %v1305 = vmul.f32 %v1303, %v631
    %1306 = vset.pattern.permute.xlu0 14
    %1307 = vperm.xlu0 %1306, %v1234
    %v1308 = vpop.permute.xlu0 %1307
    %v1310 = vmul.f32 %v1308, %v637
    %1311 = vset.pattern.permute.xlu0 15
    %1312 = vperm.xlu0 %1311, %v1234
    %v1313 = vpop.permute.xlu0 %1312
    %v1315 = vmul.f32 %v1313, %v643
    %v1316 = vadd.f32 %v1240, %v1245
    %v1317 = vadd.f32 %v1250, %v1255
    %v1318 = vadd.f32 %v1260, %v1265
    %v1319 = vadd.f32 %v1270, %v1275
    %v1320 = vadd.f32 %v1280, %v1285
    %v1321 = vadd.f32 %v1290, %v1295
    %v1322 = vadd.f32 %v1300, %v1305
    %v1323 = vadd.f32 %v1310, %v1315
    %v1324 = vadd.f32 %v1316, %v1317
    %v1325 = vadd.f32 %v1318, %v1319
    %v1326 = vadd.f32 %v1320, %v1321
    %v1327 = vadd.f32 %v1322, %v1323
    %v1328 = vadd.f32 %v1324, %v1325
    %v1329 = vadd.f32 %v1326, %v1327
    %v1330 = vadd.f32 %v1328, %v1329
    %v1331 = vadd.f32 %v1330, %v660
    %v1332 = vadd.f32 %v1208, %v1331
    %1334 = vrot.lane.b32.xlu0 %v512, 4
    %v1335 = vpop.permute.xlu0 %1334
    %v1337 = vmul.f32 %v1331, %v1335
    %1339 = vrot.lane.b32.xlu0 %v1337, 124
    %v1340 = vpop.permute.xlu0 %1339
    %v1342 = vadd.f32 %v1332, %v1340
    %1344 = vset.pattern.permute.xlu0 0
    %1345 = vperm.xlu0 %1344, %v1342
    %v1346 = vpop.permute.xlu0 %1345
    %v1348 = vmul.f32 %v1346, %v522
    %1349 = vset.pattern.permute.xlu0 1
    %1350 = vperm.xlu0 %1349, %v1342
    %v1351 = vpop.permute.xlu0 %1350
    %v1353 = vmul.f32 %v1351, %v528
    %1354 = vset.pattern.permute.xlu0 2
    %1355 = vperm.xlu0 %1354, %v1342
    %v1356 = vpop.permute.xlu0 %1355
    %v1358 = vmul.f32 %v1356, %v534
    %1359 = vset.pattern.permute.xlu0 3
    %1360 = vperm.xlu0 %1359, %v1342
    %v1361 = vpop.permute.xlu0 %1360
    %v1363 = vmul.f32 %v1361, %v540
    %v1364 = vadd.f32 %v1348, %v1353
    %v1365 = vadd.f32 %v1358, %v1363
    %v1366 = vadd.f32 %v1364, %v1365
    %v1367 = vadd.f32 %v1366, %v545
    %v1368 = vtanh.pop %v1367
    %1370 = vset.pattern.permute.xlu0 0
    %1371 = vperm.xlu0 %1370, %v1368
    %v1372 = vpop.permute.xlu0 %1371
    %v1374 = vmul.f32 %v1372, %v553
    %1375 = vset.pattern.permute.xlu0 1
    %1376 = vperm.xlu0 %1375, %v1368
    %v1377 = vpop.permute.xlu0 %1376
    %v1379 = vmul.f32 %v1377, %v559
    %1380 = vset.pattern.permute.xlu0 2
    %1381 = vperm.xlu0 %1380, %v1368
    %v1382 = vpop.permute.xlu0 %1381
    %v1384 = vmul.f32 %v1382, %v565
    %1385 = vset.pattern.permute.xlu0 3
    %1386 = vperm.xlu0 %1385, %v1368
    %v1387 = vpop.permute.xlu0 %1386
    %v1389 = vmul.f32 %v1387, %v571
    %1390 = vset.pattern.permute.xlu0 4
    %1391 = vperm.xlu0 %1390, %v1368
    %v1392 = vpop.permute.xlu0 %1391
    %v1394 = vmul.f32 %v1392, %v577
    %1395 = vset.pattern.permute.xlu0 5
    %1396 = vperm.xlu0 %1395, %v1368
    %v1397 = vpop.permute.xlu0 %1396
    %v1399 = vmul.f32 %v1397, %v583
    %1400 = vset.pattern.permute.xlu0 6
    %1401 = vperm.xlu0 %1400, %v1368
    %v1402 = vpop.permute.xlu0 %1401
    %v1404 = vmul.f32 %v1402, %v589
    %1405 = vset.pattern.permute.xlu0 7
    %1406 = vperm.xlu0 %1405, %v1368
    %v1407 = vpop.permute.xlu0 %1406
    %v1409 = vmul.f32 %v1407, %v595
    %1410 = vset.pattern.permute.xlu0 8
    %1411 = vperm.xlu0 %1410, %v1368
    %v1412 = vpop.permute.xlu0 %1411
    %v1414 = vmul.f32 %v1412, %v601
    %1415 = vset.pattern.permute.xlu0 9
    %1416 = vperm.xlu0 %1415, %v1368
    %v1417 = vpop.permute.xlu0 %1416
    %v1419 = vmul.f32 %v1417, %v607
    %1420 = vset.pattern.permute.xlu0 10
    %1421 = vperm.xlu0 %1420, %v1368
    %v1422 = vpop.permute.xlu0 %1421
    %v1424 = vmul.f32 %v1422, %v613
    %1425 = vset.pattern.permute.xlu0 11
    %1426 = vperm.xlu0 %1425, %v1368
    %v1427 = vpop.permute.xlu0 %1426
    %v1429 = vmul.f32 %v1427, %v619
    %1430 = vset.pattern.permute.xlu0 12
    %1431 = vperm.xlu0 %1430, %v1368
    %v1432 = vpop.permute.xlu0 %1431
    %v1434 = vmul.f32 %v1432, %v625
    %1435 = vset.pattern.permute.xlu0 13
    %1436 = vperm.xlu0 %1435, %v1368
    %v1437 = vpop.permute.xlu0 %1436
    %v1439 = vmul.f32 %v1437, %v631
    %1440 = vset.pattern.permute.xlu0 14
    %1441 = vperm.xlu0 %1440, %v1368
    %v1442 = vpop.permute.xlu0 %1441
    %v1444 = vmul.f32 %v1442, %v637
    %1445 = vset.pattern.permute.xlu0 15
    %1446 = vperm.xlu0 %1445, %v1368
    %v1447 = vpop.permute.xlu0 %1446
    %v1449 = vmul.f32 %v1447, %v643
    %v1450 = vadd.f32 %v1374, %v1379
    %v1451 = vadd.f32 %v1384, %v1389
    %v1452 = vadd.f32 %v1394, %v1399
    %v1453 = vadd.f32 %v1404, %v1409
    %v1454 = vadd.f32 %v1414, %v1419
    %v1455 = vadd.f32 %v1424, %v1429
    %v1456 = vadd.f32 %v1434, %v1439
    %v1457 = vadd.f32 %v1444, %v1449
    %v1458 = vadd.f32 %v1450, %v1451
    %v1459 = vadd.f32 %v1452, %v1453
    %v1460 = vadd.f32 %v1454, %v1455
    %v1461 = vadd.f32 %v1456, %v1457
    %v1462 = vadd.f32 %v1458, %v1459
    %v1463 = vadd.f32 %v1460, %v1461
    %v1464 = vadd.f32 %v1462, %v1463
    %v1465 = vadd.f32 %v1464, %v660
    %v1466 = vadd.f32 %v1342, %v1465
    %1468 = vrot.lane.b32.xlu0 %v513, 4
    %v1469 = vpop.permute.xlu0 %1468
    %v1471 = vmul.f32 %v1465, %v1469
    %1473 = vrot.lane.b32.xlu0 %v1471, 124
    %v1474 = vpop.permute.xlu0 %1473
    %v1476 = vadd.f32 %v1466, %v1474
    %1478 = vset.pattern.permute.xlu0 0
    %1479 = vperm.xlu0 %1478, %v1476
    %v1480 = vpop.permute.xlu0 %1479
    %v1482 = vmul.f32 %v1480, %v522
    %1483 = vset.pattern.permute.xlu0 1
    %1484 = vperm.xlu0 %1483, %v1476
    %v1485 = vpop.permute.xlu0 %1484
    %v1487 = vmul.f32 %v1485, %v528
    %1488 = vset.pattern.permute.xlu0 2
    %1489 = vperm.xlu0 %1488, %v1476
    %v1490 = vpop.permute.xlu0 %1489
    %v1492 = vmul.f32 %v1490, %v534
    %1493 = vset.pattern.permute.xlu0 3
    %1494 = vperm.xlu0 %1493, %v1476
    %v1495 = vpop.permute.xlu0 %1494
    %v1497 = vmul.f32 %v1495, %v540
    %v1498 = vadd.f32 %v1482, %v1487
    %v1499 = vadd.f32 %v1492, %v1497
    %v1500 = vadd.f32 %v1498, %v1499
    %v1501 = vadd.f32 %v1500, %v545
    %v1502 = vtanh.pop %v1501
    %1504 = vset.pattern.permute.xlu0 0
    %1505 = vperm.xlu0 %1504, %v1502
    %v1506 = vpop.permute.xlu0 %1505
    %v1508 = vmul.f32 %v1506, %v553
    %1509 = vset.pattern.permute.xlu0 1
    %1510 = vperm.xlu0 %1509, %v1502
    %v1511 = vpop.permute.xlu0 %1510
    %v1513 = vmul.f32 %v1511, %v559
    %1514 = vset.pattern.permute.xlu0 2
    %1515 = vperm.xlu0 %1514, %v1502
    %v1516 = vpop.permute.xlu0 %1515
    %v1518 = vmul.f32 %v1516, %v565
    %1519 = vset.pattern.permute.xlu0 3
    %1520 = vperm.xlu0 %1519, %v1502
    %v1521 = vpop.permute.xlu0 %1520
    %v1523 = vmul.f32 %v1521, %v571
    %1524 = vset.pattern.permute.xlu0 4
    %1525 = vperm.xlu0 %1524, %v1502
    %v1526 = vpop.permute.xlu0 %1525
    %v1528 = vmul.f32 %v1526, %v577
    %1529 = vset.pattern.permute.xlu0 5
    %1530 = vperm.xlu0 %1529, %v1502
    %v1531 = vpop.permute.xlu0 %1530
    %v1533 = vmul.f32 %v1531, %v583
    %1534 = vset.pattern.permute.xlu0 6
    %1535 = vperm.xlu0 %1534, %v1502
    %v1536 = vpop.permute.xlu0 %1535
    %v1538 = vmul.f32 %v1536, %v589
    %1539 = vset.pattern.permute.xlu0 7
    %1540 = vperm.xlu0 %1539, %v1502
    %v1541 = vpop.permute.xlu0 %1540
    %v1543 = vmul.f32 %v1541, %v595
    %1544 = vset.pattern.permute.xlu0 8
    %1545 = vperm.xlu0 %1544, %v1502
    %v1546 = vpop.permute.xlu0 %1545
    %v1548 = vmul.f32 %v1546, %v601
    %1549 = vset.pattern.permute.xlu0 9
    %1550 = vperm.xlu0 %1549, %v1502
    %v1551 = vpop.permute.xlu0 %1550
    %v1553 = vmul.f32 %v1551, %v607
    %1554 = vset.pattern.permute.xlu0 10
    %1555 = vperm.xlu0 %1554, %v1502
    %v1556 = vpop.permute.xlu0 %1555
    %v1558 = vmul.f32 %v1556, %v613
    %1559 = vset.pattern.permute.xlu0 11
    %1560 = vperm.xlu0 %1559, %v1502
    %v1561 = vpop.permute.xlu0 %1560
    %v1563 = vmul.f32 %v1561, %v619
    %1564 = vset.pattern.permute.xlu0 12
    %1565 = vperm.xlu0 %1564, %v1502
    %v1566 = vpop.permute.xlu0 %1565
    %v1568 = vmul.f32 %v1566, %v625
    %1569 = vset.pattern.permute.xlu0 13
    %1570 = vperm.xlu0 %1569, %v1502
    %v1571 = vpop.permute.xlu0 %1570
    %v1573 = vmul.f32 %v1571, %v631
    %1574 = vset.pattern.permute.xlu0 14
    %1575 = vperm.xlu0 %1574, %v1502
    %v1576 = vpop.permute.xlu0 %1575
    %v1578 = vmul.f32 %v1576, %v637
    %1579 = vset.pattern.permute.xlu0 15
    %1580 = vperm.xlu0 %1579, %v1502
    %v1581 = vpop.permute.xlu0 %1580
    %v1583 = vmul.f32 %v1581, %v643
    %v1584 = vadd.f32 %v1508, %v1513
    %v1585 = vadd.f32 %v1518, %v1523
    %v1586 = vadd.f32 %v1528, %v1533
    %v1587 = vadd.f32 %v1538, %v1543
    %v1588 = vadd.f32 %v1548, %v1553
    %v1589 = vadd.f32 %v1558, %v1563
    %v1590 = vadd.f32 %v1568, %v1573
    %v1591 = vadd.f32 %v1578, %v1583
    %v1592 = vadd.f32 %v1584, %v1585
    %v1593 = vadd.f32 %v1586, %v1587
    %v1594 = vadd.f32 %v1588, %v1589
    %v1595 = vadd.f32 %v1590, %v1591
    %v1596 = vadd.f32 %v1592, %v1593
    %v1597 = vadd.f32 %v1594, %v1595
    %v1598 = vadd.f32 %v1596, %v1597
    %v1599 = vadd.f32 %v1598, %v660
    %v1600 = vadd.f32 %v1476, %v1599
    %1602 = vrot.lane.b32.xlu0 %v514, 4
    %v1603 = vpop.permute.xlu0 %1602
    %v1605 = vmul.f32 %v1599, %v1603
    %1607 = vrot.lane.b32.xlu0 %v1605, 124
    %v1608 = vpop.permute.xlu0 %1607
    %v1610 = vadd.f32 %v1600, %v1608
    %1612 = vset.pattern.permute.xlu0 0
    %1613 = vperm.xlu0 %1612, %v1610
    %v1614 = vpop.permute.xlu0 %1613
    %v1616 = vmul.f32 %v1614, %v522
    %1617 = vset.pattern.permute.xlu0 1
    %1618 = vperm.xlu0 %1617, %v1610
    %v1619 = vpop.permute.xlu0 %1618
    %v1621 = vmul.f32 %v1619, %v528
    %1622 = vset.pattern.permute.xlu0 2
    %1623 = vperm.xlu0 %1622, %v1610
    %v1624 = vpop.permute.xlu0 %1623
    %v1626 = vmul.f32 %v1624, %v534
    %1627 = vset.pattern.permute.xlu0 3
    %1628 = vperm.xlu0 %1627, %v1610
    %v1629 = vpop.permute.xlu0 %1628
    %v1631 = vmul.f32 %v1629, %v540
    %v1632 = vadd.f32 %v1616, %v1621
    %v1633 = vadd.f32 %v1626, %v1631
    %v1634 = vadd.f32 %v1632, %v1633
    %v1635 = vadd.f32 %v1634, %v545
    %v1636 = vtanh.pop %v1635
    %1638 = vset.pattern.permute.xlu0 0
    %1639 = vperm.xlu0 %1638, %v1636
    %v1640 = vpop.permute.xlu0 %1639
    %v1642 = vmul.f32 %v1640, %v553
    %1643 = vset.pattern.permute.xlu0 1
    %1644 = vperm.xlu0 %1643, %v1636
    %v1645 = vpop.permute.xlu0 %1644
    %v1647 = vmul.f32 %v1645, %v559
    %1648 = vset.pattern.permute.xlu0 2
    %1649 = vperm.xlu0 %1648, %v1636
    %v1650 = vpop.permute.xlu0 %1649
    %v1652 = vmul.f32 %v1650, %v565
    %1653 = vset.pattern.permute.xlu0 3
    %1654 = vperm.xlu0 %1653, %v1636
    %v1655 = vpop.permute.xlu0 %1654
    %v1657 = vmul.f32 %v1655, %v571
    %1658 = vset.pattern.permute.xlu0 4
    %1659 = vperm.xlu0 %1658, %v1636
    %v1660 = vpop.permute.xlu0 %1659
    %v1662 = vmul.f32 %v1660, %v577
    %1663 = vset.pattern.permute.xlu0 5
    %1664 = vperm.xlu0 %1663, %v1636
    %v1665 = vpop.permute.xlu0 %1664
    %v1667 = vmul.f32 %v1665, %v583
    %1668 = vset.pattern.permute.xlu0 6
    %1669 = vperm.xlu0 %1668, %v1636
    %v1670 = vpop.permute.xlu0 %1669
    %v1672 = vmul.f32 %v1670, %v589
    %1673 = vset.pattern.permute.xlu0 7
    %1674 = vperm.xlu0 %1673, %v1636
    %v1675 = vpop.permute.xlu0 %1674
    %v1677 = vmul.f32 %v1675, %v595
    %1678 = vset.pattern.permute.xlu0 8
    %1679 = vperm.xlu0 %1678, %v1636
    %v1680 = vpop.permute.xlu0 %1679
    %v1682 = vmul.f32 %v1680, %v601
    %1683 = vset.pattern.permute.xlu0 9
    %1684 = vperm.xlu0 %1683, %v1636
    %v1685 = vpop.permute.xlu0 %1684
    %v1687 = vmul.f32 %v1685, %v607
    %1688 = vset.pattern.permute.xlu0 10
    %1689 = vperm.xlu0 %1688, %v1636
    %v1690 = vpop.permute.xlu0 %1689
    %v1692 = vmul.f32 %v1690, %v613
    %1693 = vset.pattern.permute.xlu0 11
    %1694 = vperm.xlu0 %1693, %v1636
    %v1695 = vpop.permute.xlu0 %1694
    %v1697 = vmul.f32 %v1695, %v619
    %1698 = vset.pattern.permute.xlu0 12
    %1699 = vperm.xlu0 %1698, %v1636
    %v1700 = vpop.permute.xlu0 %1699
    %v1702 = vmul.f32 %v1700, %v625
    %1703 = vset.pattern.permute.xlu0 13
    %1704 = vperm.xlu0 %1703, %v1636
    %v1705 = vpop.permute.xlu0 %1704
    %v1707 = vmul.f32 %v1705, %v631
    %1708 = vset.pattern.permute.xlu0 14
    %1709 = vperm.xlu0 %1708, %v1636
    %v1710 = vpop.permute.xlu0 %1709
    %v1712 = vmul.f32 %v1710, %v637
    %1713 = vset.pattern.permute.xlu0 15
    %1714 = vperm.xlu0 %1713, %v1636
    %v1715 = vpop.permute.xlu0 %1714
    %v1717 = vmul.f32 %v1715, %v643
    %v1718 = vadd.f32 %v1642, %v1647
    %v1719 = vadd.f32 %v1652, %v1657
    %v1720 = vadd.f32 %v1662, %v1667
    %v1721 = vadd.f32 %v1672, %v1677
    %v1722 = vadd.f32 %v1682, %v1687
    %v1723 = vadd.f32 %v1692, %v1697
    %v1724 = vadd.f32 %v1702, %v1707
    %v1725 = vadd.f32 %v1712, %v1717
    %v1726 = vadd.f32 %v1718, %v1719
    %v1727 = vadd.f32 %v1720, %v1721
    %v1728 = vadd.f32 %v1722, %v1723
    %v1729 = vadd.f32 %v1724, %v1725
    %v1730 = vadd.f32 %v1726, %v1727
    %v1731 = vadd.f32 %v1728, %v1729
    %v1732 = vadd.f32 %v1730, %v1731
    %v1733 = vadd.f32 %v1732, %v660
    %v1734 = vadd.f32 %v1610, %v1733
    %1736 = vrot.lane.b32.xlu0 %v515, 4
    %v1737 = vpop.permute.xlu0 %1736
    %v1739 = vmul.f32 %v1733, %v1737
    %1741 = vrot.lane.b32.xlu0 %v1739, 124
    %v1742 = vpop.permute.xlu0 %1741
    %v1744 = vadd.f32 %v1734, %v1742
    %1746 = vset.pattern.permute.xlu0 0
    %1747 = vperm.xlu0 %1746, %v1744
    %v1748 = vpop.permute.xlu0 %1747
    %v1750 = vmul.f32 %v1748, %v522
    %1751 = vset.pattern.permute.xlu0 1
    %1752 = vperm.xlu0 %1751, %v1744
    %v1753 = vpop.permute.xlu0 %1752
    %v1755 = vmul.f32 %v1753, %v528
    %1756 = vset.pattern.permute.xlu0 2
    %1757 = vperm.xlu0 %1756, %v1744
    %v1758 = vpop.permute.xlu0 %1757
    %v1760 = vmul.f32 %v1758, %v534
    %1761 = vset.pattern.permute.xlu0 3
    %1762 = vperm.xlu0 %1761, %v1744
    %v1763 = vpop.permute.xlu0 %1762
    %v1765 = vmul.f32 %v1763, %v540
    %v1766 = vadd.f32 %v1750, %v1755
    %v1767 = vadd.f32 %v1760, %v1765
    %v1768 = vadd.f32 %v1766, %v1767
    %v1769 = vadd.f32 %v1768, %v545
    %v1770 = vtanh.pop %v1769
    %1772 = vset.pattern.permute.xlu0 0
    %1773 = vperm.xlu0 %1772, %v1770
    %v1774 = vpop.permute.xlu0 %1773
    %v1776 = vmul.f32 %v1774, %v553
    %1777 = vset.pattern.permute.xlu0 1
    %1778 = vperm.xlu0 %1777, %v1770
    %v1779 = vpop.permute.xlu0 %1778
    %v1781 = vmul.f32 %v1779, %v559
    %1782 = vset.pattern.permute.xlu0 2
    %1783 = vperm.xlu0 %1782, %v1770
    %v1784 = vpop.permute.xlu0 %1783
    %v1786 = vmul.f32 %v1784, %v565
    %1787 = vset.pattern.permute.xlu0 3
    %1788 = vperm.xlu0 %1787, %v1770
    %v1789 = vpop.permute.xlu0 %1788
    %v1791 = vmul.f32 %v1789, %v571
    %1792 = vset.pattern.permute.xlu0 4
    %1793 = vperm.xlu0 %1792, %v1770
    %v1794 = vpop.permute.xlu0 %1793
    %v1796 = vmul.f32 %v1794, %v577
    %1797 = vset.pattern.permute.xlu0 5
    %1798 = vperm.xlu0 %1797, %v1770
    %v1799 = vpop.permute.xlu0 %1798
    %v1801 = vmul.f32 %v1799, %v583
    %1802 = vset.pattern.permute.xlu0 6
    %1803 = vperm.xlu0 %1802, %v1770
    %v1804 = vpop.permute.xlu0 %1803
    %v1806 = vmul.f32 %v1804, %v589
    %1807 = vset.pattern.permute.xlu0 7
    %1808 = vperm.xlu0 %1807, %v1770
    %v1809 = vpop.permute.xlu0 %1808
    %v1811 = vmul.f32 %v1809, %v595
    %1812 = vset.pattern.permute.xlu0 8
    %1813 = vperm.xlu0 %1812, %v1770
    %v1814 = vpop.permute.xlu0 %1813
    %v1816 = vmul.f32 %v1814, %v601
    %1817 = vset.pattern.permute.xlu0 9
    %1818 = vperm.xlu0 %1817, %v1770
    %v1819 = vpop.permute.xlu0 %1818
    %v1821 = vmul.f32 %v1819, %v607
    %1822 = vset.pattern.permute.xlu0 10
    %1823 = vperm.xlu0 %1822, %v1770
    %v1824 = vpop.permute.xlu0 %1823
    %v1826 = vmul.f32 %v1824, %v613
    %1827 = vset.pattern.permute.xlu0 11
    %1828 = vperm.xlu0 %1827, %v1770
    %v1829 = vpop.permute.xlu0 %1828
    %v1831 = vmul.f32 %v1829, %v619
    %1832 = vset.pattern.permute.xlu0 12
    %1833 = vperm.xlu0 %1832, %v1770
    %v1834 = vpop.permute.xlu0 %1833
    %v1836 = vmul.f32 %v1834, %v625
    %1837 = vset.pattern.permute.xlu0 13
    %1838 = vperm.xlu0 %1837, %v1770
    %v1839 = vpop.permute.xlu0 %1838
    %v1841 = vmul.f32 %v1839, %v631
    %1842 = vset.pattern.permute.xlu0 14
    %1843 = vperm.xlu0 %1842, %v1770
    %v1844 = vpop.permute.xlu0 %1843
    %v1846 = vmul.f32 %v1844, %v637
    %1847 = vset.pattern.permute.xlu0 15
    %1848 = vperm.xlu0 %1847, %v1770
    %v1849 = vpop.permute.xlu0 %1848
    %v1851 = vmul.f32 %v1849, %v643
    %v1852 = vadd.f32 %v1776, %v1781
    %v1853 = vadd.f32 %v1786, %v1791
    %v1854 = vadd.f32 %v1796, %v1801
    %v1855 = vadd.f32 %v1806, %v1811
    %v1856 = vadd.f32 %v1816, %v1821
    %v1857 = vadd.f32 %v1826, %v1831
    %v1858 = vadd.f32 %v1836, %v1841
    %v1859 = vadd.f32 %v1846, %v1851
    %v1860 = vadd.f32 %v1852, %v1853
    %v1861 = vadd.f32 %v1854, %v1855
    %v1862 = vadd.f32 %v1856, %v1857
    %v1863 = vadd.f32 %v1858, %v1859
    %v1864 = vadd.f32 %v1860, %v1861
    %v1865 = vadd.f32 %v1862, %v1863
    %v1866 = vadd.f32 %v1864, %v1865
    %v1867 = vadd.f32 %v1866, %v660
    %v1868 = vadd.f32 %v1744, %v1867
    %1870 = vrot.lane.b32.xlu0 %v516, 4
    %v1871 = vpop.permute.xlu0 %1870
    %v1873 = vmul.f32 %v1867, %v1871
    %1875 = vrot.lane.b32.xlu0 %v1873, 124
    %v1876 = vpop.permute.xlu0 %1875
    %v1878 = vadd.f32 %v1868, %v1876
    %vm1879 = vcmask 25600
    %1880 = vst.msk [vmem:[#allocation5] sm:$0x3] %vm1879, %v1878
    // Predicated region
    $region18: #{tpu_custom_call.1} parent=1 // pred_check
      _
    $region19: #{tpu_custom_call.1} parent=1 // pred_check_branch
      %1882 = sbr.rel (0) target = $region21
    $region20: #{tpu_custom_call.1} parent=1 // pred_region
      %1884 = vsyncadd [#allocation4], 0
      %s1886 = sshll.u32 [#allocation5], 4
      %s1887 = int_to_ptr.vmem [resolvable:$true] %s1886
      %s1888 = sshll.u32 %s3, 4
      %s1889 = int_to_ptr.hbm [resolvable:$true] %s1888
      %1891 = dma.vmem_to_hbm [thread:$0]  %s1887, 32, %s1889, [#allocation4]
    $region21: #{tpu_custom_call.1} parent=1 // pred_fallthru
      _
    // Predicated region
    $region22: #{tpu_custom_call.1} parent=1 // pred_check
      _
    $region23: #{tpu_custom_call.1} parent=1 // pred_check_branch
      %1893 = sbr.rel (0) target = $region25
    $region24: #{tpu_custom_call.1} parent=1 // pred_region
      %1895 = dma.done [#allocation4], 32
    $region25: #{tpu_custom_call.1} parent=1 // pred_fallthru
      _
    %1896 = vsyncpa [#allocation3], 1
    %1897 = vsyncpa [#allocation4], 1

</llo_original>
